<compile_context>
chip_gen: v7x
topology: tpu7x:2x2x1
jax: 0.10.0
libtpu: 0.0.40
codegen_flags: <defaults>
</compile_context>

<pallas_src>
import functools

import numpy as np
import jax
import jax.numpy as jnp
from jax.experimental import pallas as pl
from jax.experimental.pallas import tpu as pltpu

_BN_EPS = 1e-5


def _vmem_limit():
    # Generation-aware scoped-VMEM cap: ~3/4 of per-core VMEM, capped at 100 MiB
    # (v5e/v6e: 128 MiB physical -> ~96 MiB; v7x: 64 MiB physical -> 48 MiB).
    try:
        cap = int(pltpu.get_tpu_info().vmem_capacity_bytes)
    except Exception:
        cap = 64 * 1024 * 1024
    return int(max(32 * 1024 * 1024, min(cap * 3 // 4, 100 * 1024 * 1024)))


# ----------------------------- in-kernel activations -----------------------------

def _elu(x):
    # ELU(alpha=1): x if x>0 else exp(x)-1 (clamp arg so exp never overflows)
    return jnp.where(x > 0, x, jnp.exp(jnp.minimum(x, 0.0)) - 1.0)


def _gelu_tanh(x):
    # TODO(synk): PyTorch nn.GELU() defaults to the exact erf form; the tanh
    # approximation (~1e-3 abs error) is used for Mosaic-safe lowering.
    c = float(np.sqrt(2.0 / np.pi))
    return 0.5 * x * (1.0 + jnp.tanh(c * (x + 0.044715 * x * x * x)))


# ----------------------------- fused conv stack + adaptive pool -----------------------------

def _conv_stack_kernel(H, W, chans,
                       x_ref, w0, w1, w2, w3, b0, b1, b2, b3,
                       mask_ref, pool_ref, o_ref, feat_ref, slab_ref):
    """4x (3x3 conv + folded BN + ELU) + AdaptiveAvgPool2d((32,32)) for ONE image.

    Layout: y[c, p] with p = h*W + w (spatial on lanes).  Each conv builds a
    (9*cin, HW) bf16 im2col slab (lane-rolled taps, zero padding via masks) and
    runs ONE (cout, 9*cin) @ (9*cin, HW) MXU matmul with f32 accumulation.
    """
    HW = H * W
    w_refs = (w0, w1, w2, w3)
    b_refs = (b0, b1, b2, b3)

    y = x_ref[0]                                             # (1, HW) f32
    for li in range(4):
        cin, cout = chans[li], chans[li + 1]

        # ---- in-VMEM im2col: 9 lane-rolled taps stacked along the K dim ----
        taps = [] if cin == 1 else None
        for t in range(9):
            off = (t // 3 - 1) * W + (t % 3 - 1)
            if off == 0:
                tap = y                          # center tap: no roll, mask is all-ones
            else:
                # TODO(synk): rolls/mask-mul kept in f32 (bf16 lane-roll lowering is
                # generation dependent); the slab itself is stored as bf16.
                tap = pltpu.roll(y, shift=(-off) % HW, axis=1) * mask_ref[t:t + 1, :]
            if cin == 1:
                taps.append(tap)                 # avoid unaligned 1-row packed stores
            else:
                slab_ref[t * cin:(t + 1) * cin, :] = tap.astype(jnp.bfloat16)
        if cin == 1:
            slab = jnp.concatenate(taps, axis=0).astype(jnp.bfloat16)   # (9, HW)
        else:
            slab = slab_ref[0:9 * cin, :]                               # (9*cin, HW) bf16

        # ---- one MXU matmul per layer: (cout, 9*cin) @ (9*cin, HW) ----
        acc = jnp.dot(w_refs[li][...], slab, preferred_element_type=jnp.float32)
        y = _elu(acc + b_refs[li][...])                      # BN2d folded into w / b
        feat_ref[0:cout, :] = y                              # feature map stays in VMEM
        y = feat_ref[0:cout, :]

    # AdaptiveAvgPool2d((32,32)) + Flatten: one (cout, HW) @ (HW, 1024) matmul.
    # TODO(synk): separable (H,32)/(W,32) pooling would cut MXU flops further but
    # needs a lane-splitting reshape in this layout; dense pool matrix kept (bf16).
    o_ref[0] = jnp.dot(y.astype(jnp.bfloat16), pool_ref[...],
                       preferred_element_type=jnp.float32).astype(o_ref.dtype)


def conv_pool(x_imgs, conv_w, conv_b, masks, pool_mat, B, H, W, chans):
    HW = H * W
    c_last = chans[-1]
    c_max = max(chans[1:])
    kernel = functools.partial(_conv_stack_kernel, H, W, chans)

    in_specs = [pl.BlockSpec((1, 1, HW), lambda b: (b, 0, 0))]
    for li in range(4):
        cin, cout = chans[li], chans[li + 1]
        in_specs.append(pl.BlockSpec((cout, 9 * cin), lambda b: (0, 0)))   # packed bf16 weights
    for li in range(4):
        cout = chans[li + 1]
        in_specs.append(pl.BlockSpec((cout, 1), lambda b: (0, 0)))         # folded biases (f32)
    # TODO(synk): masks / pool matrix / weights are grid-invariant; pl.Buffered(1)
    # would reclaim their second pipeline buffer.
    in_specs.append(pl.BlockSpec((9, HW), lambda b: (0, 0)))               # tap masks (f32)
    in_specs.append(pl.BlockSpec((HW, 32 * 32), lambda b: (0, 0)))         # pool matrix (bf16)

    return pl.pallas_call(
        kernel,
        out_shape=jax.ShapeDtypeStruct((B, c_last, 32 * 32), jnp.bfloat16),
        grid_spec=pltpu.PrefetchScalarGridSpec(
            num_scalar_prefetch=0,
            grid=(B,),                                 # batch-tiled: one image per step
            in_specs=in_specs,
            out_specs=pl.BlockSpec((1, c_last, 32 * 32), lambda b: (b, 0, 0)),
            scratch_shapes=[
                pltpu.VMEM((c_max, HW), jnp.float32),        # resident feature map
                pltpu.VMEM((9 * c_max, HW), jnp.bfloat16),   # im2col slab (stacked K)
            ],
        ),
        compiler_params=pltpu.CompilerParams(
            dimension_semantics=("parallel",),          # images are independent (megacore)
            vmem_limit_bytes=_vmem_limit()),
    )(x_imgs, *conv_w, *conv_b, masks, pool_mat)


# ----------------------------- fused feature head -----------------------------

def _head_kernel(x_ref, w1_ref, b1_ref, w2_ref, b2_ref, o_ref, acc_ref):
    """out = z + GELU(z) @ W2 + b2, where z = x @ W1fold + b1fold (Linear+BN1d)."""
    k = pl.program_id(1)

    @pl.when(k == 0)
    def _():
        acc_ref[...] = jnp.zeros_like(acc_ref)

    acc_ref[...] += jnp.dot(x_ref[...], w1_ref[...],
                            preferred_element_type=jnp.float32)

    @pl.when(k == pl.num_programs(1) - 1)
    def _():
        z = acc_ref[...] + b1_ref[...]                       # f32 epilogue
        g = _gelu_tanh(z)
        y = z + jnp.dot(g.astype(jnp.bfloat16), w2_ref[...],
                        preferred_element_type=jnp.float32) + b2_ref[...]
        o_ref[...] = y.astype(o_ref.dtype)


def feature_head(flat_bf16, w1_bf16, b1, w2_bf16, b2):
    M, K = flat_bf16.shape
    P = w1_bf16.shape[1]

    # M tiling: >=2 blocks when M > 8 (v7x dual-TC + deeper pipeline), cdiv-padded
    # so awkward batch sizes never fall back to one oversized block.
    if M <= 8:
        bm = M
    else:
        bm = min(256, max(8, (M // 2) // 8 * 8))
    Mp = pl.cdiv(M, bm) * bm
    x = flat_bf16 if Mp == M else jnp.pad(flat_bf16, ((0, Mp - M), (0, 0)))

    bk = K
    for cand in (4096, 2048, 1024, 512, 256):
        if K % cand == 0:
            bk = cand
            break

    grid = (Mp // bm, K // bk)               # M leading (parallel), K last (reduction)
    out = pl.pallas_call(
        _head_kernel,
        out_shape=jax.ShapeDtypeStruct((Mp, P), jnp.float32),
        grid_spec=pltpu.PrefetchScalarGridSpec(
            num_scalar_prefetch=0,
            grid=grid,
            in_specs=[
                pl.BlockSpec((bm, bk), lambda i, k: (i, k)),
                pl.BlockSpec((bk, P), lambda i, k: (k, 0)),
                # TODO(synk): b1 / w2 / b2 are grid-invariant; pl.Buffered(1) would
                # reclaim their second pipeline buffer.
                pl.BlockSpec((1, P), lambda i, k: (0, 0)),
                pl.BlockSpec((P, P), lambda i, k: (0, 0)),
                pl.BlockSpec((1, P), lambda i, k: (0, 0)),
            ],
            out_specs=pl.BlockSpec((bm, P), lambda i, k: (i, 0)),
            scratch_shapes=[pltpu.VMEM((bm, P), jnp.float32)],
        ),
        compiler_params=pltpu.CompilerParams(
            dimension_semantics=("parallel", "arbitrary"),
            vmem_limit_bytes=_vmem_limit()),
    )(x, w1_bf16, b1, w2_bf16, b2)
    return out if Mp == M else out[:M]


# ----------------------------- parameter algebra / wrapper -----------------------------

def _adaptive_pool_matrix(in_size, out_size):
    """PyTorch AdaptiveAvgPool window rule as a (out, in) averaging matrix."""
    P = np.zeros((out_size, in_size), np.float32)
    for i in range(out_size):
        s = (i * in_size) // out_size
        e = -(-((i + 1) * in_size) // out_size)  # ceil
        P[i, s:e] = 1.0 / (e - s)
    return P


def init_params(key, proj_dim=768):
    chans = [1, 64, 32, 16, 8]
    params = {"conv": []}
    for li in range(4):
        cin, cout = chans[li], chans[li + 1]
        key, k1, k2, k3, k4, k5, k6 = jax.random.split(key, 7)
        fan_in = cin * 9
        params["conv"].append(dict(
            w=jax.random.normal(k1, (cout, cin, 3, 3), jnp.float32) / np.sqrt(fan_in),
            b=0.05 * jax.random.normal(k2, (cout,), jnp.float32),
            gamma=1.0 + 0.1 * jax.random.normal(k3, (cout,), jnp.float32),
            beta=0.1 * jax.random.normal(k4, (cout,), jnp.float32),
            mean=0.1 * jax.random.normal(k5, (cout,), jnp.float32),
            var=0.5 + jax.random.uniform(k6, (cout,), jnp.float32),
        ))
    # TODO(synk): the reference __init__ declares nn.Linear(1024, proj_dim), which is
    # inconsistent with the 8*32*32 = 8192 features that encoder + AdaptiveAvgPool2d((32,32))
    # + Flatten actually produce; we use 8192 so the defined forward path is shape-consistent.
    feat_in = 8 * 32 * 32
    key, k1, k2, k3, k4, k5, k6, k7, k8 = jax.random.split(key, 9)
    params["lin1_w"] = jax.random.normal(k1, (feat_in, proj_dim), jnp.float32) / np.sqrt(feat_in)
    params["lin1_b"] = 0.05 * jax.random.normal(k2, (proj_dim,), jnp.float32)
    params["bn1_gamma"] = 1.0 + 0.1 * jax.random.normal(k3, (proj_dim,), jnp.float32)
    params["bn1_beta"] = 0.1 * jax.random.normal(k4, (proj_dim,), jnp.float32)
    params["bn1_mean"] = 0.1 * jax.random.normal(k5, (proj_dim,), jnp.float32)
    params["bn1_var"] = 0.5 + jax.random.uniform(k6, (proj_dim,), jnp.float32)
    params["lin2_w"] = jax.random.normal(k7, (proj_dim, proj_dim), jnp.float32) / np.sqrt(proj_dim)
    params["lin2_b"] = 0.05 * jax.random.normal(k8, (proj_dim,), jnp.float32)
    return params


def dynamic_eeg2d_encoder_forward(params, x):
    """x: NCHW (B, 1, H, W) float32 -> (B, proj_dim) float32 (eval-mode semantics)."""
    if x.ndim == 4:
        x = x[:, 0]                                   # x.squeeze(1) -> (B, H, W)
    B, H, W = x.shape
    HW = H * W
    chans = (1,) + tuple(int(l["w"].shape[0]) for l in params["conv"])  # (1,64,32,16,8)

    # TODO(synk): forward() references undefined self.tsconv_1d / self.global_pool_1d;
    # mapped to the modules actually defined in __init__ (encoder / global_pool).
    x_imgs = x.astype(jnp.float32).reshape(B, 1, HW)  # per image, channels-major (1, H*W)

    # fold BN2d (eval) into conv weights / bias; pack weights as (cout, 9*cin) bf16
    # matching the stacked-K im2col slab (row t*cin + i  <->  tap t, channel i).
    conv_w, conv_b = [], []
    for layer in params["conv"]:
        s = layer["gamma"] / jnp.sqrt(layer["var"] + _BN_EPS)
        w = layer["w"] * s[:, None, None, None]                         # (cout, cin, 3, 3)
        cout, cin = w.shape[0], w.shape[1]
        conv_w.append(jnp.transpose(w, (0, 2, 3, 1)).reshape(cout, 9 * cin)
                      .astype(jnp.bfloat16))
        conv_b.append((layer["beta"] + (layer["b"] - layer["mean"]) * s)[:, None])

    # per-tap validity masks (3x3 zero padding), host precomputed, per image
    p = np.arange(HW)
    h_pos, w_pos = p // W, p % W
    masks = np.zeros((9, HW), np.float32)
    for t in range(9):
        dy, dx = t // 3 - 1, t % 3 - 1
        masks[t] = ((h_pos + dy >= 0) & (h_pos + dy < H) &
                    (w_pos + dx >= 0) & (w_pos + dx < W)).astype(np.float32)

    # AdaptiveAvgPool2d((32,32)) + Flatten(1) as one (H*W, 1024) averaging matrix (bf16)
    Ph = _adaptive_pool_matrix(H, 32)
    Pw = _adaptive_pool_matrix(W, 32)
    A = np.einsum("ih,jw->hwij", Ph, Pw).reshape(HW, 32 * 32)

    pooled = conv_pool(x_imgs, conv_w, conv_b,
                       jnp.asarray(masks),
                       jnp.asarray(A).astype(jnp.bfloat16),
                       B, H, W, chans)                # (B, 8, 1024) bf16
    flat = pooled.reshape(B, chans[-1] * 32 * 32)     # NCHW flatten order, (B, 8192) bf16

    # feature_head: Linear + BatchNorm1d(eval) folded into w1/b1; residual GELU-Linear
    # fused into the same kernel's epilogue. Dropout is identity in eval mode.
    s1 = params["bn1_gamma"] / jnp.sqrt(params["bn1_var"] + _BN_EPS)
    w1 = (params["lin1_w"] * s1[None, :]).astype(jnp.bfloat16)
    b1 = (params["bn1_beta"] + (params["lin1_b"] - params["bn1_mean"]) * s1)[None, :]
    w2 = params["lin2_w"].astype(jnp.bfloat16)
    b2 = params["lin2_b"][None, :]
    return feature_head(flat, w1, b1, w2, b2)


# ----------------------------- pure-JAX reference (f32) -----------------------------

def _reference_forward(params, x):
    if x.ndim == 4:
        x = x[:, 0]
    B, H, W = x.shape
    y = x[:, None, :, :].astype(jnp.float32)          # NCHW
    for layer in params["conv"]:
        y = jax.lax.conv_general_dilated(
            y, layer["w"], (1, 1), "SAME",
            dimension_numbers=("NCHW", "OIHW", "NCHW"))
        s = layer["gamma"] / jnp.sqrt(layer["var"] + _BN_EPS)
        y = ((y + layer["b"][None, :, None, None] - layer["mean"][None, :, None, None])
             * s[None, :, None, None] + layer["beta"][None, :, None, None])
        y = jnp.where(y > 0, y, jnp.exp(jnp.minimum(y, 0.0)) - 1.0)
    Ph = jnp.asarray(_adaptive_pool_matrix(H, 32))
    Pw = jnp.asarray(_adaptive_pool_matrix(W, 32))
    y = jnp.einsum("bchw,ih,jw->bcij", y, Ph, Pw)
    flat = y.reshape(B, -1)
    s1 = params["bn1_gamma"] / jnp.sqrt(params["bn1_var"] + _BN_EPS)
    z = (flat @ params["lin1_w"] + params["lin1_b"] - params["bn1_mean"]) * s1 + params["bn1_beta"]
    return z + _gelu_tanh(z) @ params["lin2_w"] + params["lin2_b"]


if __name__ == "__main__":
    key = jax.random.PRNGKey(0)
    kp, kx = jax.random.split(key)
    proj_dim = 128                      # small test size (module default is 768)
    params = init_params(kp, proj_dim=proj_dim)
    x = jax.random.normal(kx, (2, 1, 16, 16), jnp.float32)   # NCHW, small EEG-like grid

    out = dynamic_eeg2d_encoder_forward(params, x)
    out = jax.block_until_ready(out)
    assert out.shape == (2, proj_dim), out.shape
    assert bool(jnp.all(jnp.isfinite(out)))

    ref = _reference_forward(params, x)
    err = float(jnp.max(jnp.abs(out - ref)) / (jnp.max(jnp.abs(ref)) + 1e-6))
    assert err < 5e-2, f"mismatch vs f32 reference: rel-max err {err}"
    print("KERNEL_OK")
</pallas_src>

<mosaic_0001>
module attributes {stable_mosaic.version = 11 : i64} {
  func.func @_conv_stack_kernel(%arg0: i32, %arg1: memref<1x1x256xf32, #tpu.memory_space<vmem>>, %arg2: memref<64x9xbf16, #tpu.memory_space<vmem>>, %arg3: memref<32x576xbf16, #tpu.memory_space<vmem>>, %arg4: memref<16x288xbf16, #tpu.memory_space<vmem>>, %arg5: memref<8x144xbf16, #tpu.memory_space<vmem>>, %arg6: memref<64x1xf32, #tpu.memory_space<vmem>>, %arg7: memref<32x1xf32, #tpu.memory_space<vmem>>, %arg8: memref<16x1xf32, #tpu.memory_space<vmem>>, %arg9: memref<8x1xf32, #tpu.memory_space<vmem>>, %arg10: memref<9x256xf32, #tpu.memory_space<vmem>>, %arg11: memref<256x1024xbf16, #tpu.memory_space<vmem>>, %arg12: memref<1x8x1024xbf16, #tpu.memory_space<vmem>>, %arg13: memref<64x256xf32, #tpu.memory_space<vmem>>, %arg14: memref<576x256xbf16, #tpu.memory_space<vmem>>) attributes {dimension_semantics = [#tpu.dimension_semantics<parallel>], iteration_bounds = array<i64: 2>, scalar_prefetch = 0 : i64, scratch_operands = 2 : i64, tpu.core_type = #tpu.core_type<tc>, window_params = [{transform_indices = @transform_0, window_bounds = array<i64: 1, 1, 256>}, {pipeline_mode = #tpu.pipeline_mode<synchronous>, transform_indices = @transform_1, window_bounds = array<i64: 64, 9>}, {pipeline_mode = #tpu.pipeline_mode<synchronous>, transform_indices = @transform_2, window_bounds = array<i64: 32, 576>}, {pipeline_mode = #tpu.pipeline_mode<synchronous>, transform_indices = @transform_3, window_bounds = array<i64: 16, 288>}, {pipeline_mode = #tpu.pipeline_mode<synchronous>, transform_indices = @transform_4, window_bounds = array<i64: 8, 144>}, {pipeline_mode = #tpu.pipeline_mode<synchronous>, transform_indices = @transform_5, window_bounds = array<i64: 64, 1>}, {pipeline_mode = #tpu.pipeline_mode<synchronous>, transform_indices = @transform_6, window_bounds = array<i64: 32, 1>}, {pipeline_mode = #tpu.pipeline_mode<synchronous>, transform_indices = @transform_7, window_bounds = array<i64: 16, 1>}, {pipeline_mode = #tpu.pipeline_mode<synchronous>, transform_indices = @transform_8, window_bounds = array<i64: 8, 1>}, {pipeline_mode = #tpu.pipeline_mode<synchronous>, transform_indices = @transform_9, window_bounds = array<i64: 9, 256>}, {pipeline_mode = #tpu.pipeline_mode<synchronous>, transform_indices = @transform_10, window_bounds = array<i64: 256, 1024>}, {transform_indices = @transform_11, window_bounds = array<i64: 1, 8, 1024>}]} {
    %c0 = arith.constant 0 : index
    %c0_0 = arith.constant 0 : index
    %c0_1 = arith.constant 0 : index
    %0 = vector.load %arg1[%c0, %c0_0, %c0_1] : memref<1x1x256xf32, #tpu.memory_space<vmem>>, vector<1x1x256xf32>
    %1 = vector.shape_cast %0 : vector<1x1x256xf32> to vector<1x256xf32>
    %c17_i32 = arith.constant 17 : i32
    %2 = tpu.dynamic_rotate %1 by %c17_i32 dim 1 : vector<1x256xf32>, i32 -> vector<1x256xf32>
    %c0_2 = arith.constant 0 : index
    %c0_3 = arith.constant 0 : index
    %3 = vector.load %arg10[%c0_2, %c0_3] : memref<9x256xf32, #tpu.memory_space<vmem>>, vector<1x256xf32>
    %4 = arith.mulf %2, %3 : vector<1x256xf32>
    %c16_i32 = arith.constant 16 : i32
    %5 = tpu.dynamic_rotate %1 by %c16_i32 dim 1 : vector<1x256xf32>, i32 -> vector<1x256xf32>
    %c1 = arith.constant 1 : index
    %c0_4 = arith.constant 0 : index
    %6 = vector.load %arg10[%c1, %c0_4] : memref<9x256xf32, #tpu.memory_space<vmem>>, vector<1x256xf32>
    %7 = arith.mulf %5, %6 : vector<1x256xf32>
    %c15_i32 = arith.constant 15 : i32
    %8 = tpu.dynamic_rotate %1 by %c15_i32 dim 1 : vector<1x256xf32>, i32 -> vector<1x256xf32>
    %c2 = arith.constant 2 : index
    %c0_5 = arith.constant 0 : index
    %9 = vector.load %arg10[%c2, %c0_5] : memref<9x256xf32, #tpu.memory_space<vmem>>, vector<1x256xf32>
    %10 = arith.mulf %8, %9 : vector<1x256xf32>
    %c1_i32 = arith.constant 1 : i32
    %11 = tpu.dynamic_rotate %1 by %c1_i32 dim 1 : vector<1x256xf32>, i32 -> vector<1x256xf32>
    %c3 = arith.constant 3 : index
    %c0_6 = arith.constant 0 : index
    %12 = vector.load %arg10[%c3, %c0_6] : memref<9x256xf32, #tpu.memory_space<vmem>>, vector<1x256xf32>
    %13 = arith.mulf %11, %12 : vector<1x256xf32>
    %c255_i32 = arith.constant 255 : i32
    %14 = tpu.dynamic_rotate %1 by %c255_i32 dim 1 : vector<1x256xf32>, i32 -> vector<1x256xf32>
    %c5 = arith.constant 5 : index
    %c0_7 = arith.constant 0 : index
    %15 = vector.load %arg10[%c5, %c0_7] : memref<9x256xf32, #tpu.memory_space<vmem>>, vector<1x256xf32>
    %16 = arith.mulf %14, %15 : vector<1x256xf32>
    %c241_i32 = arith.constant 241 : i32
    %17 = tpu.dynamic_rotate %1 by %c241_i32 dim 1 : vector<1x256xf32>, i32 -> vector<1x256xf32>
    %c6 = arith.constant 6 : index
    %c0_8 = arith.constant 0 : index
    %18 = vector.load %arg10[%c6, %c0_8] : memref<9x256xf32, #tpu.memory_space<vmem>>, vector<1x256xf32>
    %19 = arith.mulf %17, %18 : vector<1x256xf32>
    %c240_i32 = arith.constant 240 : i32
    %20 = tpu.dynamic_rotate %1 by %c240_i32 dim 1 : vector<1x256xf32>, i32 -> vector<1x256xf32>
    %c7 = arith.constant 7 : index
    %c0_9 = arith.constant 0 : index
    %21 = vector.load %arg10[%c7, %c0_9] : memref<9x256xf32, #tpu.memory_space<vmem>>, vector<1x256xf32>
    %22 = arith.mulf %20, %21 : vector<1x256xf32>
    %c239_i32 = arith.constant 239 : i32
    %23 = tpu.dynamic_rotate %1 by %c239_i32 dim 1 : vector<1x256xf32>, i32 -> vector<1x256xf32>
    %c8 = arith.constant 8 : index
    %c0_10 = arith.constant 0 : index
    %24 = vector.load %arg10[%c8, %c0_10] : memref<9x256xf32, #tpu.memory_space<vmem>>, vector<1x256xf32>
    %25 = arith.mulf %23, %24 : vector<1x256xf32>
    %26 = tpu.concatenate %4, %7, %10, %13, %1, %16, %19, %22, %25 in 0 : vector<1x256xf32>, vector<1x256xf32>, vector<1x256xf32>, vector<1x256xf32>, vector<1x256xf32>, vector<1x256xf32>, vector<1x256xf32>, vector<1x256xf32>, vector<1x256xf32> -> vector<9x256xf32>
    %27 = arith.truncf %26 : vector<9x256xf32> to vector<9x256xbf16>
    %c0_11 = arith.constant 0 : index
    %c0_12 = arith.constant 0 : index
    %28 = vector.load %arg2[%c0_11, %c0_12] : memref<64x9xbf16, #tpu.memory_space<vmem>>, vector<64x9xbf16>
    %cst = arith.constant dense<0.000000e+00> : vector<64x256xf32>
    %29 = tpu.matmul %28, %27, %cst {dimension_numbers = #tpu.dot_dimension_numbers<[1], [0], [0], [1], [0, 0, 1, 1], [], []>} : vector<64x9xbf16>, vector<9x256xbf16>, vector<64x256xf32> -> vector<64x256xf32>
    %c0_13 = arith.constant 0 : index
    %c0_14 = arith.constant 0 : index
    %30 = vector.load %arg6[%c0_13, %c0_14] : memref<64x1xf32, #tpu.memory_space<vmem>>, vector<64x1xf32>
    %31 = vector.broadcast %30 : vector<64x1xf32> to vector<64x256xf32>
    %32 = arith.addf %29, %31 : vector<64x256xf32>
    %cst_15 = arith.constant 0.000000e+00 : f32
    %33 = vector.broadcast %cst_15 : f32 to vector<64x256xf32>
    %34 = arith.cmpf ogt, %32, %33 : vector<64x256xf32>
    %cst_16 = arith.constant 0.000000e+00 : f32
    %35 = vector.broadcast %cst_16 : f32 to vector<64x256xf32>
    %36 = arith.minimumf %32, %35 : vector<64x256xf32>
    %37 = math.exp %36 : vector<64x256xf32>
    %cst_17 = arith.constant 1.000000e+00 : f32
    %38 = vector.broadcast %cst_17 : f32 to vector<64x256xf32>
    %39 = arith.subf %37, %38 : vector<64x256xf32>
    %40 = arith.select %34, %32, %39 : vector<64x256xi1>, vector<64x256xf32>
    %c0_18 = arith.constant 0 : index
    %c0_19 = arith.constant 0 : index
    %41 = vector.load %arg13[%c0_18, %c0_19] : memref<64x256xf32, #tpu.memory_space<vmem>>, vector<64x256xf32>
    tpu.vector_store %arg13[%c0_18, %c0_19], %40 {strides = array<i32>} : memref<64x256xf32, #tpu.memory_space<vmem>>, vector<64x256xf32>,
    %c0_20 = arith.constant 0 : index
    %c0_21 = arith.constant 0 : index
    %42 = vector.load %arg13[%c0_20, %c0_21] : memref<64x256xf32, #tpu.memory_space<vmem>>, vector<64x256xf32>
    %c17_i32_22 = arith.constant 17 : i32
    %43 = tpu.dynamic_rotate %42 by %c17_i32_22 dim 1 : vector<64x256xf32>, i32 -> vector<64x256xf32>
    %c0_23 = arith.constant 0 : index
    %c0_24 = arith.constant 0 : index
    %44 = vector.load %arg10[%c0_23, %c0_24] : memref<9x256xf32, #tpu.memory_space<vmem>>, vector<1x256xf32>
    %45 = vector.broadcast %44 : vector<1x256xf32> to vector<64x256xf32>
    %46 = arith.mulf %43, %45 : vector<64x256xf32>
    %47 = arith.truncf %46 : vector<64x256xf32> to vector<64x256xbf16>
    %c0_25 = arith.constant 0 : index
    %c0_26 = arith.constant 0 : index
    %48 = vector.load %arg14[%c0_25, %c0_26] : memref<576x256xbf16, #tpu.memory_space<vmem>>, vector<64x256xbf16>
    tpu.vector_store %arg14[%c0_25, %c0_26], %47 {strides = array<i32>} : memref<576x256xbf16, #tpu.memory_space<vmem>>, vector<64x256xbf16>,
    %c16_i32_27 = arith.constant 16 : i32
    %49 = tpu.dynamic_rotate %42 by %c16_i32_27 dim 1 : vector<64x256xf32>, i32 -> vector<64x256xf32>
    %c1_28 = arith.constant 1 : index
    %c0_29 = arith.constant 0 : index
    %50 = vector.load %arg10[%c1_28, %c0_29] : memref<9x256xf32, #tpu.memory_space<vmem>>, vector<1x256xf32>
    %51 = vector.broadcast %50 : vector<1x256xf32> to vector<64x256xf32>
    %52 = arith.mulf %49, %51 : vector<64x256xf32>
    %53 = arith.truncf %52 : vector<64x256xf32> to vector<64x256xbf16>
    %c64 = arith.constant 64 : index
    %c0_30 = arith.constant 0 : index
    %54 = vector.load %arg14[%c64, %c0_30] : memref<576x256xbf16, #tpu.memory_space<vmem>>, vector<64x256xbf16>
    tpu.vector_store %arg14[%c64, %c0_30], %53 {strides = array<i32>} : memref<576x256xbf16, #tpu.memory_space<vmem>>, vector<64x256xbf16>,
    %c15_i32_31 = arith.constant 15 : i32
    %55 = tpu.dynamic_rotate %42 by %c15_i32_31 dim 1 : vector<64x256xf32>, i32 -> vector<64x256xf32>
    %c2_32 = arith.constant 2 : index
    %c0_33 = arith.constant 0 : index
    %56 = vector.load %arg10[%c2_32, %c0_33] : memref<9x256xf32, #tpu.memory_space<vmem>>, vector<1x256xf32>
    %57 = vector.broadcast %56 : vector<1x256xf32> to vector<64x256xf32>
    %58 = arith.mulf %55, %57 : vector<64x256xf32>
    %59 = arith.truncf %58 : vector<64x256xf32> to vector<64x256xbf16>
    %c128 = arith.constant 128 : index
    %c0_34 = arith.constant 0 : index
    %60 = vector.load %arg14[%c128, %c0_34] : memref<576x256xbf16, #tpu.memory_space<vmem>>, vector<64x256xbf16>
    tpu.vector_store %arg14[%c128, %c0_34], %59 {strides = array<i32>} : memref<576x256xbf16, #tpu.memory_space<vmem>>, vector<64x256xbf16>,
    %c1_i32_35 = arith.constant 1 : i32
    %61 = tpu.dynamic_rotate %42 by %c1_i32_35 dim 1 : vector<64x256xf32>, i32 -> vector<64x256xf32>
    %c3_36 = arith.constant 3 : index
    %c0_37 = arith.constant 0 : index
    %62 = vector.load %arg10[%c3_36, %c0_37] : memref<9x256xf32, #tpu.memory_space<vmem>>, vector<1x256xf32>
    %63 = vector.broadcast %62 : vector<1x256xf32> to vector<64x256xf32>
    %64 = arith.mulf %61, %63 : vector<64x256xf32>
    %65 = arith.truncf %64 : vector<64x256xf32> to vector<64x256xbf16>
    %c192 = arith.constant 192 : index
    %c0_38 = arith.constant 0 : index
    %66 = vector.load %arg14[%c192, %c0_38] : memref<576x256xbf16, #tpu.memory_space<vmem>>, vector<64x256xbf16>
    tpu.vector_store %arg14[%c192, %c0_38], %65 {strides = array<i32>} : memref<576x256xbf16, #tpu.memory_space<vmem>>, vector<64x256xbf16>,
    %67 = arith.truncf %42 : vector<64x256xf32> to vector<64x256xbf16>
    %c256 = arith.constant 256 : index
    %c0_39 = arith.constant 0 : index
    %68 = vector.load %arg14[%c256, %c0_39] : memref<576x256xbf16, #tpu.memory_space<vmem>>, vector<64x256xbf16>
    tpu.vector_store %arg14[%c256, %c0_39], %67 {strides = array<i32>} : memref<576x256xbf16, #tpu.memory_space<vmem>>, vector<64x256xbf16>,
    %c255_i32_40 = arith.constant 255 : i32
    %69 = tpu.dynamic_rotate %42 by %c255_i32_40 dim 1 : vector<64x256xf32>, i32 -> vector<64x256xf32>
    %c5_41 = arith.constant 5 : index
    %c0_42 = arith.constant 0 : index
    %70 = vector.load %arg10[%c5_41, %c0_42] : memref<9x256xf32, #tpu.memory_space<vmem>>, vector<1x256xf32>
    %71 = vector.broadcast %70 : vector<1x256xf32> to vector<64x256xf32>
    %72 = arith.mulf %69, %71 : vector<64x256xf32>
    %73 = arith.truncf %72 : vector<64x256xf32> to vector<64x256xbf16>
    %c320 = arith.constant 320 : index
    %c0_43 = arith.constant 0 : index
    %74 = vector.load %arg14[%c320, %c0_43] : memref<576x256xbf16, #tpu.memory_space<vmem>>, vector<64x256xbf16>
    tpu.vector_store %arg14[%c320, %c0_43], %73 {strides = array<i32>} : memref<576x256xbf16, #tpu.memory_space<vmem>>, vector<64x256xbf16>,
    %c241_i32_44 = arith.constant 241 : i32
    %75 = tpu.dynamic_rotate %42 by %c241_i32_44 dim 1 : vector<64x256xf32>, i32 -> vector<64x256xf32>
    %c6_45 = arith.constant 6 : index
    %c0_46 = arith.constant 0 : index
    %76 = vector.load %arg10[%c6_45, %c0_46] : memref<9x256xf32, #tpu.memory_space<vmem>>, vector<1x256xf32>
    %77 = vector.broadcast %76 : vector<1x256xf32> to vector<64x256xf32>
    %78 = arith.mulf %75, %77 : vector<64x256xf32>
    %79 = arith.truncf %78 : vector<64x256xf32> to vector<64x256xbf16>
    %c384 = arith.constant 384 : index
    %c0_47 = arith.constant 0 : index
    %80 = vector.load %arg14[%c384, %c0_47] : memref<576x256xbf16, #tpu.memory_space<vmem>>, vector<64x256xbf16>
    tpu.vector_store %arg14[%c384, %c0_47], %79 {strides = array<i32>} : memref<576x256xbf16, #tpu.memory_space<vmem>>, vector<64x256xbf16>,
    %c240_i32_48 = arith.constant 240 : i32
    %81 = tpu.dynamic_rotate %42 by %c240_i32_48 dim 1 : vector<64x256xf32>, i32 -> vector<64x256xf32>
    %c7_49 = arith.constant 7 : index
    %c0_50 = arith.constant 0 : index
    %82 = vector.load %arg10[%c7_49, %c0_50] : memref<9x256xf32, #tpu.memory_space<vmem>>, vector<1x256xf32>
    %83 = vector.broadcast %82 : vector<1x256xf32> to vector<64x256xf32>
    %84 = arith.mulf %81, %83 : vector<64x256xf32>
    %85 = arith.truncf %84 : vector<64x256xf32> to vector<64x256xbf16>
    %c448 = arith.constant 448 : index
    %c0_51 = arith.constant 0 : index
    %86 = vector.load %arg14[%c448, %c0_51] : memref<576x256xbf16, #tpu.memory_space<vmem>>, vector<64x256xbf16>
    tpu.vector_store %arg14[%c448, %c0_51], %85 {strides = array<i32>} : memref<576x256xbf16, #tpu.memory_space<vmem>>, vector<64x256xbf16>,
    %c239_i32_52 = arith.constant 239 : i32
    %87 = tpu.dynamic_rotate %42 by %c239_i32_52 dim 1 : vector<64x256xf32>, i32 -> vector<64x256xf32>
    %c8_53 = arith.constant 8 : index
    %c0_54 = arith.constant 0 : index
    %88 = vector.load %arg10[%c8_53, %c0_54] : memref<9x256xf32, #tpu.memory_space<vmem>>, vector<1x256xf32>
    %89 = vector.broadcast %88 : vector<1x256xf32> to vector<64x256xf32>
    %90 = arith.mulf %87, %89 : vector<64x256xf32>
    %91 = arith.truncf %90 : vector<64x256xf32> to vector<64x256xbf16>
    %c512 = arith.constant 512 : index
    %c0_55 = arith.constant 0 : index
    %92 = vector.load %arg14[%c512, %c0_55] : memref<576x256xbf16, #tpu.memory_space<vmem>>, vector<64x256xbf16>
    tpu.vector_store %arg14[%c512, %c0_55], %91 {strides = array<i32>} : memref<576x256xbf16, #tpu.memory_space<vmem>>, vector<64x256xbf16>,
    %c0_56 = arith.constant 0 : index
    %c0_57 = arith.constant 0 : index
    %93 = vector.load %arg14[%c0_56, %c0_57] : memref<576x256xbf16, #tpu.memory_space<vmem>>, vector<576x256xbf16>
    %c0_58 = arith.constant 0 : index
    %c0_59 = arith.constant 0 : index
    %94 = vector.load %arg3[%c0_58, %c0_59] : memref<32x576xbf16, #tpu.memory_space<vmem>>, vector<32x576xbf16>
    %cst_60 = arith.constant dense<0.000000e+00> : vector<32x256xf32>
    %95 = tpu.matmul %94, %93, %cst_60 {dimension_numbers = #tpu.dot_dimension_numbers<[1], [0], [0], [1], [0, 0, 1, 1], [], []>} : vector<32x576xbf16>, vector<576x256xbf16>, vector<32x256xf32> -> vector<32x256xf32>
    %c0_61 = arith.constant 0 : index
    %c0_62 = arith.constant 0 : index
    %96 = vector.load %arg7[%c0_61, %c0_62] : memref<32x1xf32, #tpu.memory_space<vmem>>, vector<32x1xf32>
    %97 = vector.broadcast %96 : vector<32x1xf32> to vector<32x256xf32>
    %98 = arith.addf %95, %97 : vector<32x256xf32>
    %cst_63 = arith.constant 0.000000e+00 : f32
    %99 = vector.broadcast %cst_63 : f32 to vector<32x256xf32>
    %100 = arith.cmpf ogt, %98, %99 : vector<32x256xf32>
    %cst_64 = arith.constant 0.000000e+00 : f32
    %101 = vector.broadcast %cst_64 : f32 to vector<32x256xf32>
    %102 = arith.minimumf %98, %101 : vector<32x256xf32>
    %103 = math.exp %102 : vector<32x256xf32>
    %cst_65 = arith.constant 1.000000e+00 : f32
    %104 = vector.broadcast %cst_65 : f32 to vector<32x256xf32>
    %105 = arith.subf %103, %104 : vector<32x256xf32>
    %106 = arith.select %100, %98, %105 : vector<32x256xi1>, vector<32x256xf32>
    %c0_66 = arith.constant 0 : index
    %c0_67 = arith.constant 0 : index
    %107 = vector.load %arg13[%c0_66, %c0_67] : memref<64x256xf32, #tpu.memory_space<vmem>>, vector<32x256xf32>
    tpu.vector_store %arg13[%c0_66, %c0_67], %106 {strides = array<i32>} : memref<64x256xf32, #tpu.memory_space<vmem>>, vector<32x256xf32>,
    %c0_68 = arith.constant 0 : index
    %c0_69 = arith.constant 0 : index
    %108 = vector.load %arg13[%c0_68, %c0_69] : memref<64x256xf32, #tpu.memory_space<vmem>>, vector<32x256xf32>
    %c17_i32_70 = arith.constant 17 : i32
    %109 = tpu.dynamic_rotate %108 by %c17_i32_70 dim 1 : vector<32x256xf32>, i32 -> vector<32x256xf32>
    %c0_71 = arith.constant 0 : index
    %c0_72 = arith.constant 0 : index
    %110 = vector.load %arg10[%c0_71, %c0_72] : memref<9x256xf32, #tpu.memory_space<vmem>>, vector<1x256xf32>
    %111 = vector.broadcast %110 : vector<1x256xf32> to vector<32x256xf32>
    %112 = arith.mulf %109, %111 : vector<32x256xf32>
    %113 = arith.truncf %112 : vector<32x256xf32> to vector<32x256xbf16>
    %c0_73 = arith.constant 0 : index
    %c0_74 = arith.constant 0 : index
    %114 = vector.load %arg14[%c0_73, %c0_74] : memref<576x256xbf16, #tpu.memory_space<vmem>>, vector<32x256xbf16>
    tpu.vector_store %arg14[%c0_73, %c0_74], %113 {strides = array<i32>} : memref<576x256xbf16, #tpu.memory_space<vmem>>, vector<32x256xbf16>,
    %c16_i32_75 = arith.constant 16 : i32
    %115 = tpu.dynamic_rotate %108 by %c16_i32_75 dim 1 : vector<32x256xf32>, i32 -> vector<32x256xf32>
    %c1_76 = arith.constant 1 : index
    %c0_77 = arith.constant 0 : index
    %116 = vector.load %arg10[%c1_76, %c0_77] : memref<9x256xf32, #tpu.memory_space<vmem>>, vector<1x256xf32>
    %117 = vector.broadcast %116 : vector<1x256xf32> to vector<32x256xf32>
    %118 = arith.mulf %115, %117 : vector<32x256xf32>
    %119 = arith.truncf %118 : vector<32x256xf32> to vector<32x256xbf16>
    %c32 = arith.constant 32 : index
    %c0_78 = arith.constant 0 : index
    %120 = vector.load %arg14[%c32, %c0_78] : memref<576x256xbf16, #tpu.memory_space<vmem>>, vector<32x256xbf16>
    tpu.vector_store %arg14[%c32, %c0_78], %119 {strides = array<i32>} : memref<576x256xbf16, #tpu.memory_space<vmem>>, vector<32x256xbf16>,
    %c15_i32_79 = arith.constant 15 : i32
    %121 = tpu.dynamic_rotate %108 by %c15_i32_79 dim 1 : vector<32x256xf32>, i32 -> vector<32x256xf32>
    %c2_80 = arith.constant 2 : index
    %c0_81 = arith.constant 0 : index
    %122 = vector.load %arg10[%c2_80, %c0_81] : memref<9x256xf32, #tpu.memory_space<vmem>>, vector<1x256xf32>
    %123 = vector.broadcast %122 : vector<1x256xf32> to vector<32x256xf32>
    %124 = arith.mulf %121, %123 : vector<32x256xf32>
    %125 = arith.truncf %124 : vector<32x256xf32> to vector<32x256xbf16>
    %c64_82 = arith.constant 64 : index
    %c0_83 = arith.constant 0 : index
    %126 = vector.load %arg14[%c64_82, %c0_83] : memref<576x256xbf16, #tpu.memory_space<vmem>>, vector<32x256xbf16>
    tpu.vector_store %arg14[%c64_82, %c0_83], %125 {strides = array<i32>} : memref<576x256xbf16, #tpu.memory_space<vmem>>, vector<32x256xbf16>,
    %c1_i32_84 = arith.constant 1 : i32
    %127 = tpu.dynamic_rotate %108 by %c1_i32_84 dim 1 : vector<32x256xf32>, i32 -> vector<32x256xf32>
    %c3_85 = arith.constant 3 : index
    %c0_86 = arith.constant 0 : index
    %128 = vector.load %arg10[%c3_85, %c0_86] : memref<9x256xf32, #tpu.memory_space<vmem>>, vector<1x256xf32>
    %129 = vector.broadcast %128 : vector<1x256xf32> to vector<32x256xf32>
    %130 = arith.mulf %127, %129 : vector<32x256xf32>
    %131 = arith.truncf %130 : vector<32x256xf32> to vector<32x256xbf16>
    %c96 = arith.constant 96 : index
    %c0_87 = arith.constant 0 : index
    %132 = vector.load %arg14[%c96, %c0_87] : memref<576x256xbf16, #tpu.memory_space<vmem>>, vector<32x256xbf16>
    tpu.vector_store %arg14[%c96, %c0_87], %131 {strides = array<i32>} : memref<576x256xbf16, #tpu.memory_space<vmem>>, vector<32x256xbf16>,
    %133 = arith.truncf %108 : vector<32x256xf32> to vector<32x256xbf16>
    %c128_88 = arith.constant 128 : index
    %c0_89 = arith.constant 0 : index
    %134 = vector.load %arg14[%c128_88, %c0_89] : memref<576x256xbf16, #tpu.memory_space<vmem>>, vector<32x256xbf16>
    tpu.vector_store %arg14[%c128_88, %c0_89], %133 {strides = array<i32>} : memref<576x256xbf16, #tpu.memory_space<vmem>>, vector<32x256xbf16>,
    %c255_i32_90 = arith.constant 255 : i32
    %135 = tpu.dynamic_rotate %108 by %c255_i32_90 dim 1 : vector<32x256xf32>, i32 -> vector<32x256xf32>
    %c5_91 = arith.constant 5 : index
    %c0_92 = arith.constant 0 : index
    %136 = vector.load %arg10[%c5_91, %c0_92] : memref<9x256xf32, #tpu.memory_space<vmem>>, vector<1x256xf32>
    %137 = vector.broadcast %136 : vector<1x256xf32> to vector<32x256xf32>
    %138 = arith.mulf %135, %137 : vector<32x256xf32>
    %139 = arith.truncf %138 : vector<32x256xf32> to vector<32x256xbf16>
    %c160 = arith.constant 160 : index
    %c0_93 = arith.constant 0 : index
    %140 = vector.load %arg14[%c160, %c0_93] : memref<576x256xbf16, #tpu.memory_space<vmem>>, vector<32x256xbf16>
    tpu.vector_store %arg14[%c160, %c0_93], %139 {strides = array<i32>} : memref<576x256xbf16, #tpu.memory_space<vmem>>, vector<32x256xbf16>,
    %c241_i32_94 = arith.constant 241 : i32
    %141 = tpu.dynamic_rotate %108 by %c241_i32_94 dim 1 : vector<32x256xf32>, i32 -> vector<32x256xf32>
    %c6_95 = arith.constant 6 : index
    %c0_96 = arith.constant 0 : index
    %142 = vector.load %arg10[%c6_95, %c0_96] : memref<9x256xf32, #tpu.memory_space<vmem>>, vector<1x256xf32>
    %143 = vector.broadcast %142 : vector<1x256xf32> to vector<32x256xf32>
    %144 = arith.mulf %141, %143 : vector<32x256xf32>
    %145 = arith.truncf %144 : vector<32x256xf32> to vector<32x256xbf16>
    %c192_97 = arith.constant 192 : index
    %c0_98 = arith.constant 0 : index
    %146 = vector.load %arg14[%c192_97, %c0_98] : memref<576x256xbf16, #tpu.memory_space<vmem>>, vector<32x256xbf16>
    tpu.vector_store %arg14[%c192_97, %c0_98], %145 {strides = array<i32>} : memref<576x256xbf16, #tpu.memory_space<vmem>>, vector<32x256xbf16>,
    %c240_i32_99 = arith.constant 240 : i32
    %147 = tpu.dynamic_rotate %108 by %c240_i32_99 dim 1 : vector<32x256xf32>, i32 -> vector<32x256xf32>
    %c7_100 = arith.constant 7 : index
    %c0_101 = arith.constant 0 : index
    %148 = vector.load %arg10[%c7_100, %c0_101] : memref<9x256xf32, #tpu.memory_space<vmem>>, vector<1x256xf32>
    %149 = vector.broadcast %148 : vector<1x256xf32> to vector<32x256xf32>
    %150 = arith.mulf %147, %149 : vector<32x256xf32>
    %151 = arith.truncf %150 : vector<32x256xf32> to vector<32x256xbf16>
    %c224 = arith.constant 224 : index
    %c0_102 = arith.constant 0 : index
    %152 = vector.load %arg14[%c224, %c0_102] : memref<576x256xbf16, #tpu.memory_space<vmem>>, vector<32x256xbf16>
    tpu.vector_store %arg14[%c224, %c0_102], %151 {strides = array<i32>} : memref<576x256xbf16, #tpu.memory_space<vmem>>, vector<32x256xbf16>,
    %c239_i32_103 = arith.constant 239 : i32
    %153 = tpu.dynamic_rotate %108 by %c239_i32_103 dim 1 : vector<32x256xf32>, i32 -> vector<32x256xf32>
    %c8_104 = arith.constant 8 : index
    %c0_105 = arith.constant 0 : index
    %154 = vector.load %arg10[%c8_104, %c0_105] : memref<9x256xf32, #tpu.memory_space<vmem>>, vector<1x256xf32>
    %155 = vector.broadcast %154 : vector<1x256xf32> to vector<32x256xf32>
    %156 = arith.mulf %153, %155 : vector<32x256xf32>
    %157 = arith.truncf %156 : vector<32x256xf32> to vector<32x256xbf16>
    %c256_106 = arith.constant 256 : index
    %c0_107 = arith.constant 0 : index
    %158 = vector.load %arg14[%c256_106, %c0_107] : memref<576x256xbf16, #tpu.memory_space<vmem>>, vector<32x256xbf16>
    tpu.vector_store %arg14[%c256_106, %c0_107], %157 {strides = array<i32>} : memref<576x256xbf16, #tpu.memory_space<vmem>>, vector<32x256xbf16>,
    %c0_108 = arith.constant 0 : index
    %c0_109 = arith.constant 0 : index
    %159 = vector.load %arg14[%c0_108, %c0_109] : memref<576x256xbf16, #tpu.memory_space<vmem>>, vector<288x256xbf16>
    %c0_110 = arith.constant 0 : index
    %c0_111 = arith.constant 0 : index
    %160 = vector.load %arg4[%c0_110, %c0_111] : memref<16x288xbf16, #tpu.memory_space<vmem>>, vector<16x288xbf16>
    %cst_112 = arith.constant dense<0.000000e+00> : vector<16x256xf32>
    %161 = tpu.matmul %160, %159, %cst_112 {dimension_numbers = #tpu.dot_dimension_numbers<[1], [0], [0], [1], [0, 0, 1, 1], [], []>} : vector<16x288xbf16>, vector<288x256xbf16>, vector<16x256xf32> -> vector<16x256xf32>
    %c0_113 = arith.constant 0 : index
    %c0_114 = arith.constant 0 : index
    %162 = vector.load %arg8[%c0_113, %c0_114] : memref<16x1xf32, #tpu.memory_space<vmem>>, vector<16x1xf32>
    %163 = vector.broadcast %162 : vector<16x1xf32> to vector<16x256xf32>
    %164 = arith.addf %161, %163 : vector<16x256xf32>
    %cst_115 = arith.constant 0.000000e+00 : f32
    %165 = vector.broadcast %cst_115 : f32 to vector<16x256xf32>
    %166 = arith.cmpf ogt, %164, %165 : vector<16x256xf32>
    %cst_116 = arith.constant 0.000000e+00 : f32
    %167 = vector.broadcast %cst_116 : f32 to vector<16x256xf32>
    %168 = arith.minimumf %164, %167 : vector<16x256xf32>
    %169 = math.exp %168 : vector<16x256xf32>
    %cst_117 = arith.constant 1.000000e+00 : f32
    %170 = vector.broadcast %cst_117 : f32 to vector<16x256xf32>
    %171 = arith.subf %169, %170 : vector<16x256xf32>
    %172 = arith.select %166, %164, %171 : vector<16x256xi1>, vector<16x256xf32>
    %c0_118 = arith.constant 0 : index
    %c0_119 = arith.constant 0 : index
    %173 = vector.load %arg13[%c0_118, %c0_119] : memref<64x256xf32, #tpu.memory_space<vmem>>, vector<16x256xf32>
    tpu.vector_store %arg13[%c0_118, %c0_119], %172 {strides = array<i32>} : memref<64x256xf32, #tpu.memory_space<vmem>>, vector<16x256xf32>,
    %c0_120 = arith.constant 0 : index
    %c0_121 = arith.constant 0 : index
    %174 = vector.load %arg13[%c0_120, %c0_121] : memref<64x256xf32, #tpu.memory_space<vmem>>, vector<16x256xf32>
    %c17_i32_122 = arith.constant 17 : i32
    %175 = tpu.dynamic_rotate %174 by %c17_i32_122 dim 1 : vector<16x256xf32>, i32 -> vector<16x256xf32>
    %c0_123 = arith.constant 0 : index
    %c0_124 = arith.constant 0 : index
    %176 = vector.load %arg10[%c0_123, %c0_124] : memref<9x256xf32, #tpu.memory_space<vmem>>, vector<1x256xf32>
    %177 = vector.broadcast %176 : vector<1x256xf32> to vector<16x256xf32>
    %178 = arith.mulf %175, %177 : vector<16x256xf32>
    %179 = arith.truncf %178 : vector<16x256xf32> to vector<16x256xbf16>
    %c0_125 = arith.constant 0 : index
    %c0_126 = arith.constant 0 : index
    %180 = vector.load %arg14[%c0_125, %c0_126] : memref<576x256xbf16, #tpu.memory_space<vmem>>, vector<16x256xbf16>
    tpu.vector_store %arg14[%c0_125, %c0_126], %179 {strides = array<i32>} : memref<576x256xbf16, #tpu.memory_space<vmem>>, vector<16x256xbf16>,
    %c16_i32_127 = arith.constant 16 : i32
    %181 = tpu.dynamic_rotate %174 by %c16_i32_127 dim 1 : vector<16x256xf32>, i32 -> vector<16x256xf32>
    %c1_128 = arith.constant 1 : index
    %c0_129 = arith.constant 0 : index
    %182 = vector.load %arg10[%c1_128, %c0_129] : memref<9x256xf32, #tpu.memory_space<vmem>>, vector<1x256xf32>
    %183 = vector.broadcast %182 : vector<1x256xf32> to vector<16x256xf32>
    %184 = arith.mulf %181, %183 : vector<16x256xf32>
    %185 = arith.truncf %184 : vector<16x256xf32> to vector<16x256xbf16>
    %c16 = arith.constant 16 : index
    %c0_130 = arith.constant 0 : index
    %186 = vector.load %arg14[%c16, %c0_130] : memref<576x256xbf16, #tpu.memory_space<vmem>>, vector<16x256xbf16>
    tpu.vector_store %arg14[%c16, %c0_130], %185 {strides = array<i32>} : memref<576x256xbf16, #tpu.memory_space<vmem>>, vector<16x256xbf16>,
    %c15_i32_131 = arith.constant 15 : i32
    %187 = tpu.dynamic_rotate %174 by %c15_i32_131 dim 1 : vector<16x256xf32>, i32 -> vector<16x256xf32>
    %c2_132 = arith.constant 2 : index
    %c0_133 = arith.constant 0 : index
    %188 = vector.load %arg10[%c2_132, %c0_133] : memref<9x256xf32, #tpu.memory_space<vmem>>, vector<1x256xf32>
    %189 = vector.broadcast %188 : vector<1x256xf32> to vector<16x256xf32>
    %190 = arith.mulf %187, %189 : vector<16x256xf32>
    %191 = arith.truncf %190 : vector<16x256xf32> to vector<16x256xbf16>
    %c32_134 = arith.constant 32 : index
    %c0_135 = arith.constant 0 : index
    %192 = vector.load %arg14[%c32_134, %c0_135] : memref<576x256xbf16, #tpu.memory_space<vmem>>, vector<16x256xbf16>
    tpu.vector_store %arg14[%c32_134, %c0_135], %191 {strides = array<i32>} : memref<576x256xbf16, #tpu.memory_space<vmem>>, vector<16x256xbf16>,
    %c1_i32_136 = arith.constant 1 : i32
    %193 = tpu.dynamic_rotate %174 by %c1_i32_136 dim 1 : vector<16x256xf32>, i32 -> vector<16x256xf32>
    %c3_137 = arith.constant 3 : index
    %c0_138 = arith.constant 0 : index
    %194 = vector.load %arg10[%c3_137, %c0_138] : memref<9x256xf32, #tpu.memory_space<vmem>>, vector<1x256xf32>
    %195 = vector.broadcast %194 : vector<1x256xf32> to vector<16x256xf32>
    %196 = arith.mulf %193, %195 : vector<16x256xf32>
    %197 = arith.truncf %196 : vector<16x256xf32> to vector<16x256xbf16>
    %c48 = arith.constant 48 : index
    %c0_139 = arith.constant 0 : index
    %198 = vector.load %arg14[%c48, %c0_139] : memref<576x256xbf16, #tpu.memory_space<vmem>>, vector<16x256xbf16>
    tpu.vector_store %arg14[%c48, %c0_139], %197 {strides = array<i32>} : memref<576x256xbf16, #tpu.memory_space<vmem>>, vector<16x256xbf16>,
    %199 = arith.truncf %174 : vector<16x256xf32> to vector<16x256xbf16>
    %c64_140 = arith.constant 64 : index
    %c0_141 = arith.constant 0 : index
    %200 = vector.load %arg14[%c64_140, %c0_141] : memref<576x256xbf16, #tpu.memory_space<vmem>>, vector<16x256xbf16>
    tpu.vector_store %arg14[%c64_140, %c0_141], %199 {strides = array<i32>} : memref<576x256xbf16, #tpu.memory_space<vmem>>, vector<16x256xbf16>,
    %c255_i32_142 = arith.constant 255 : i32
    %201 = tpu.dynamic_rotate %174 by %c255_i32_142 dim 1 : vector<16x256xf32>, i32 -> vector<16x256xf32>
    %c5_143 = arith.constant 5 : index
    %c0_144 = arith.constant 0 : index
    %202 = vector.load %arg10[%c5_143, %c0_144] : memref<9x256xf32, #tpu.memory_space<vmem>>, vector<1x256xf32>
    %203 = vector.broadcast %202 : vector<1x256xf32> to vector<16x256xf32>
    %204 = arith.mulf %201, %203 : vector<16x256xf32>
    %205 = arith.truncf %204 : vector<16x256xf32> to vector<16x256xbf16>
    %c80 = arith.constant 80 : index
    %c0_145 = arith.constant 0 : index
    %206 = vector.load %arg14[%c80, %c0_145] : memref<576x256xbf16, #tpu.memory_space<vmem>>, vector<16x256xbf16>
    tpu.vector_store %arg14[%c80, %c0_145], %205 {strides = array<i32>} : memref<576x256xbf16, #tpu.memory_space<vmem>>, vector<16x256xbf16>,
    %c241_i32_146 = arith.constant 241 : i32
    %207 = tpu.dynamic_rotate %174 by %c241_i32_146 dim 1 : vector<16x256xf32>, i32 -> vector<16x256xf32>
    %c6_147 = arith.constant 6 : index
    %c0_148 = arith.constant 0 : index
    %208 = vector.load %arg10[%c6_147, %c0_148] : memref<9x256xf32, #tpu.memory_space<vmem>>, vector<1x256xf32>
    %209 = vector.broadcast %208 : vector<1x256xf32> to vector<16x256xf32>
    %210 = arith.mulf %207, %209 : vector<16x256xf32>
    %211 = arith.truncf %210 : vector<16x256xf32> to vector<16x256xbf16>
    %c96_149 = arith.constant 96 : index
    %c0_150 = arith.constant 0 : index
    %212 = vector.load %arg14[%c96_149, %c0_150] : memref<576x256xbf16, #tpu.memory_space<vmem>>, vector<16x256xbf16>
    tpu.vector_store %arg14[%c96_149, %c0_150], %211 {strides = array<i32>} : memref<576x256xbf16, #tpu.memory_space<vmem>>, vector<16x256xbf16>,
    %c240_i32_151 = arith.constant 240 : i32
    %213 = tpu.dynamic_rotate %174 by %c240_i32_151 dim 1 : vector<16x256xf32>, i32 -> vector<16x256xf32>
    %c7_152 = arith.constant 7 : index
    %c0_153 = arith.constant 0 : index
    %214 = vector.load %arg10[%c7_152, %c0_153] : memref<9x256xf32, #tpu.memory_space<vmem>>, vector<1x256xf32>
    %215 = vector.broadcast %214 : vector<1x256xf32> to vector<16x256xf32>
    %216 = arith.mulf %213, %215 : vector<16x256xf32>
    %217 = arith.truncf %216 : vector<16x256xf32> to vector<16x256xbf16>
    %c112 = arith.constant 112 : index
    %c0_154 = arith.constant 0 : index
    %218 = vector.load %arg14[%c112, %c0_154] : memref<576x256xbf16, #tpu.memory_space<vmem>>, vector<16x256xbf16>
    tpu.vector_store %arg14[%c112, %c0_154], %217 {strides = array<i32>} : memref<576x256xbf16, #tpu.memory_space<vmem>>, vector<16x256xbf16>,
    %c239_i32_155 = arith.constant 239 : i32
    %219 = tpu.dynamic_rotate %174 by %c239_i32_155 dim 1 : vector<16x256xf32>, i32 -> vector<16x256xf32>
    %c8_156 = arith.constant 8 : index
    %c0_157 = arith.constant 0 : index
    %220 = vector.load %arg10[%c8_156, %c0_157] : memref<9x256xf32, #tpu.memory_space<vmem>>, vector<1x256xf32>
    %221 = vector.broadcast %220 : vector<1x256xf32> to vector<16x256xf32>
    %222 = arith.mulf %219, %221 : vector<16x256xf32>
    %223 = arith.truncf %222 : vector<16x256xf32> to vector<16x256xbf16>
    %c128_158 = arith.constant 128 : index
    %c0_159 = arith.constant 0 : index
    %224 = vector.load %arg14[%c128_158, %c0_159] : memref<576x256xbf16, #tpu.memory_space<vmem>>, vector<16x256xbf16>
    tpu.vector_store %arg14[%c128_158, %c0_159], %223 {strides = array<i32>} : memref<576x256xbf16, #tpu.memory_space<vmem>>, vector<16x256xbf16>,
    %c0_160 = arith.constant 0 : index
    %c0_161 = arith.constant 0 : index
    %225 = vector.load %arg14[%c0_160, %c0_161] : memref<576x256xbf16, #tpu.memory_space<vmem>>, vector<144x256xbf16>
    %c0_162 = arith.constant 0 : index
    %c0_163 = arith.constant 0 : index
    %226 = vector.load %arg5[%c0_162, %c0_163] : memref<8x144xbf16, #tpu.memory_space<vmem>>, vector<8x144xbf16>
    %cst_164 = arith.constant dense<0.000000e+00> : vector<8x256xf32>
    %227 = tpu.matmul %226, %225, %cst_164 {dimension_numbers = #tpu.dot_dimension_numbers<[1], [0], [0], [1], [0, 0, 1, 1], [], []>} : vector<8x144xbf16>, vector<144x256xbf16>, vector<8x256xf32> -> vector<8x256xf32>
    %c0_165 = arith.constant 0 : index
    %c0_166 = arith.constant 0 : index
    %228 = vector.load %arg9[%c0_165, %c0_166] : memref<8x1xf32, #tpu.memory_space<vmem>>, vector<8x1xf32>
    %229 = vector.broadcast %228 : vector<8x1xf32> to vector<8x256xf32>
    %230 = arith.addf %227, %229 : vector<8x256xf32>
    %cst_167 = arith.constant 0.000000e+00 : f32
    %231 = vector.broadcast %cst_167 : f32 to vector<8x256xf32>
    %232 = arith.cmpf ogt, %230, %231 : vector<8x256xf32>
    %cst_168 = arith.constant 0.000000e+00 : f32
    %233 = vector.broadcast %cst_168 : f32 to vector<8x256xf32>
    %234 = arith.minimumf %230, %233 : vector<8x256xf32>
    %235 = math.exp %234 : vector<8x256xf32>
    %cst_169 = arith.constant 1.000000e+00 : f32
    %236 = vector.broadcast %cst_169 : f32 to vector<8x256xf32>
    %237 = arith.subf %235, %236 : vector<8x256xf32>
    %238 = arith.select %232, %230, %237 : vector<8x256xi1>, vector<8x256xf32>
    %c0_170 = arith.constant 0 : index
    %c0_171 = arith.constant 0 : index
    %239 = vector.load %arg13[%c0_170, %c0_171] : memref<64x256xf32, #tpu.memory_space<vmem>>, vector<8x256xf32>
    tpu.vector_store %arg13[%c0_170, %c0_171], %238 {strides = array<i32>} : memref<64x256xf32, #tpu.memory_space<vmem>>, vector<8x256xf32>,
    %c0_172 = arith.constant 0 : index
    %c0_173 = arith.constant 0 : index
    %240 = vector.load %arg13[%c0_172, %c0_173] : memref<64x256xf32, #tpu.memory_space<vmem>>, vector<8x256xf32>
    %241 = arith.truncf %240 : vector<8x256xf32> to vector<8x256xbf16>
    %c0_174 = arith.constant 0 : index
    %c0_175 = arith.constant 0 : index
    %242 = vector.load %arg11[%c0_174, %c0_175] : memref<256x1024xbf16, #tpu.memory_space<vmem>>, vector<256x1024xbf16>
    %cst_176 = arith.constant dense<0.000000e+00> : vector<8x1024xf32>
    %243 = tpu.matmul %241, %242, %cst_176 {dimension_numbers = #tpu.dot_dimension_numbers<[1], [0], [0], [1], [0, 0, 1, 1], [], []>} : vector<8x256xbf16>, vector<256x1024xbf16>, vector<8x1024xf32> -> vector<8x1024xf32>
    %244 = arith.truncf %243 : vector<8x1024xf32> to vector<8x1024xbf16>
    %c0_177 = arith.constant 0 : index
    %c0_178 = arith.constant 0 : index
    %c0_179 = arith.constant 0 : index
    %245 = vector.load %arg12[%c0_177, %c0_178, %c0_179] : memref<1x8x1024xbf16, #tpu.memory_space<vmem>>, vector<1x8x1024xbf16>
    %246 = vector.shape_cast %245 : vector<1x8x1024xbf16> to vector<8x1024xbf16>
    %247 = vector.shape_cast %244 : vector<8x1024xbf16> to vector<1x8x1024xbf16>
    tpu.vector_store %arg12[%c0_177, %c0_178, %c0_179], %247 {strides = array<i32>} : memref<1x8x1024xbf16, #tpu.memory_space<vmem>>, vector<1x8x1024xbf16>,
    return
  }
  func.func @transform_0(%arg0: i32) -> (i32, i32, i32) {
    %c0_i32 = arith.constant 0 : i32
    %c0_i32_0 = arith.constant 0 : i32
    %c0_i32_1 = arith.constant 0 : i32
    return %arg0, %c0_i32, %c0_i32_0 : i32, i32, i32
  }
  func.func @transform_1(%arg0: i32) -> (i32, i32) {
    %c0_i32 = arith.constant 0 : i32
    %c0_i32_0 = arith.constant 0 : i32
    %c0_i32_1 = arith.constant 0 : i32
    return %c0_i32, %c0_i32_0 : i32, i32
  }
  func.func @transform_2(%arg0: i32) -> (i32, i32) {
    %c0_i32 = arith.constant 0 : i32
    %c0_i32_0 = arith.constant 0 : i32
    %c0_i32_1 = arith.constant 0 : i32
    return %c0_i32, %c0_i32_0 : i32, i32
  }
  func.func @transform_3(%arg0: i32) -> (i32, i32) {
    %c0_i32 = arith.constant 0 : i32
    %c0_i32_0 = arith.constant 0 : i32
    %c0_i32_1 = arith.constant 0 : i32
    return %c0_i32, %c0_i32_0 : i32, i32
  }
  func.func @transform_4(%arg0: i32) -> (i32, i32) {
    %c0_i32 = arith.constant 0 : i32
    %c0_i32_0 = arith.constant 0 : i32
    %c0_i32_1 = arith.constant 0 : i32
    return %c0_i32, %c0_i32_0 : i32, i32
  }
  func.func @transform_5(%arg0: i32) -> (i32, i32) {
    %c0_i32 = arith.constant 0 : i32
    %c0_i32_0 = arith.constant 0 : i32
    %c0_i32_1 = arith.constant 0 : i32
    return %c0_i32, %c0_i32_0 : i32, i32
  }
  func.func @transform_6(%arg0: i32) -> (i32, i32) {
    %c0_i32 = arith.constant 0 : i32
    %c0_i32_0 = arith.constant 0 : i32
    %c0_i32_1 = arith.constant 0 : i32
    return %c0_i32, %c0_i32_0 : i32, i32
  }
  func.func @transform_7(%arg0: i32) -> (i32, i32) {
    %c0_i32 = arith.constant 0 : i32
    %c0_i32_0 = arith.constant 0 : i32
    %c0_i32_1 = arith.constant 0 : i32
    return %c0_i32, %c0_i32_0 : i32, i32
  }
  func.func @transform_8(%arg0: i32) -> (i32, i32) {
    %c0_i32 = arith.constant 0 : i32
    %c0_i32_0 = arith.constant 0 : i32
    %c0_i32_1 = arith.constant 0 : i32
    return %c0_i32, %c0_i32_0 : i32, i32
  }
  func.func @transform_9(%arg0: i32) -> (i32, i32) {
    %c0_i32 = arith.constant 0 : i32
    %c0_i32_0 = arith.constant 0 : i32
    %c0_i32_1 = arith.constant 0 : i32
    return %c0_i32, %c0_i32_0 : i32, i32
  }
  func.func @transform_10(%arg0: i32) -> (i32, i32) {
    %c0_i32 = arith.constant 0 : i32
    %c0_i32_0 = arith.constant 0 : i32
    %c0_i32_1 = arith.constant 0 : i32
    return %c0_i32, %c0_i32_0 : i32, i32
  }
  func.func @transform_11(%arg0: i32) -> (i32, i32, i32) {
    %c0_i32 = arith.constant 0 : i32
    %c0_i32_0 = arith.constant 0 : i32
    %c0_i32_1 = arith.constant 0 : i32
    return %arg0, %c0_i32, %c0_i32_0 : i32, i32, i32
  }
}

</mosaic_0001>

<llo_original>
// kernel: tpu_custom_call.1
$region0: #{tpu_custom_call.1}
  #allocation0 [shape = 'u32[]', space=smem, size = 0x4, offset = 0x4, fixed_abs, tag = 'smem constant byte address 0x4 - core index']
  #allocation1 [shape = 'u32[144,128]{1,0:T(1,128)}', space=vmem, size = 0x12000, scoped, tag = 'internal scratch']
  #allocation2 [shape = 'f32[64,256]{1,0:T(8,128)}', space=vmem, size = 0x10000, scoped, tag = 'scratch operand']
  #allocation3 [shape = 'bf16[576,256]{1,0:T(16,128)(2,1)}', space=vmem, size = 0x48000, scoped, tag = 'scratch operand']
  %s0 = inlined_call_operand.vmem [shape: f32[2,1,256], index: 0, kind: input, shape index: {}]
  %s1 = inlined_call_operand.vmem [shape: bf16[64,9], index: 1, kind: input, shape index: {}]
  %s2 = inlined_call_operand.vmem [shape: bf16[32,576], index: 2, kind: input, shape index: {}]
  %s3 = inlined_call_operand.vmem [shape: bf16[16,288], index: 3, kind: input, shape index: {}]
  %s4 = inlined_call_operand.vmem [shape: bf16[8,144], index: 4, kind: input, shape index: {}]
  %s5 = inlined_call_operand.vmem [shape: f32[64,1], index: 5, kind: input, shape index: {}]
  %s6 = inlined_call_operand.vmem [shape: f32[32,1], index: 6, kind: input, shape index: {}]
  %s7 = inlined_call_operand.vmem [shape: f32[16,1], index: 7, kind: input, shape index: {}]
  %s8 = inlined_call_operand.vmem [shape: f32[8,1], index: 8, kind: input, shape index: {}]
  %s9 = inlined_call_operand.vmem [shape: f32[9,256], index: 9, kind: input, shape index: {}]
  %s10 = inlined_call_operand.hbm [shape: bf16[256,1024], index: 10, kind: input, shape index: {}]
  %s11 = inlined_call_operand.hbm [shape: bf16[2,8,1024], index: 11, kind: output, shape index: {}]
  %s12 = sld [smem:[#allocation0]]
  $region81: #{tpu_custom_call.1} parent=0
    _
  %s14 = ssub.s32 1, %s12
  %s15 = scalar_select 0, %s14, %s12
  $region1: #{tpu_custom_call.1} parent=0
    #allocation4 [shape = 'u8[524288]{0}', space=vmem, size = 0x80000, scoped, tag = 'input window, operand 10, single buffered']
    #allocation5 [shape = 's32[2]{0}', space=sflag, size = 0x8, scoped, tag = 'scoped memory for tpu_custom_call.1']
    #allocation6 [shape = 's32[2]{0}', space=sflag, size = 0x8, scoped, tag = 'scoped memory for tpu_custom_call.1']
    #allocation7 [shape = 'u8[32768]{0}', space=vmem, size = 0x8000, scoped, tag = 'output window, operand 0']
    %16 = vsyncpa [#allocation5], 0
    %17 = vsyncpa [#allocation6], 0
    %s18 = scalar_lea.sflag [#allocation6], 1
    %19 = vsyncpa %s18, 0
    loop: start=0, step=1, limit=4
    $region2: #{tpu_custom_call.1} parent=1 // loop_pre_header
      _
    $region3: #{tpu_custom_call.1} parent=1 // loop_header
      %s21 = sphi 0, %s25
      %p22 = scmp.ge.s32.totalorder %s21, 4
      %s31 = sphi 0, %s33
      %s34 = sphi 0, %s31
      %s35 = sphi 0, %s34
      %s51 = sphi 0, %s35
      %s55 = sphi 0, %s55
      %s57 = sphi 0, %s55
      %s58 = sphi 0, %s57
      %s72 = sphi 0, %s58
      %s76 = sphi 0, %s76
      %s78 = sphi 0, %s76
      %s79 = sphi 0, %s78
      %s93 = sphi 0, %s79
      %s97 = sphi 0, %s97
      %s99 = sphi 0, %s97
      %s100 = sphi 0, %s99
      %s114 = sphi 0, %s100
      %s118 = sphi 0, %s118
      %s120 = sphi 0, %s118
      %s121 = sphi 0, %s120
      %s135 = sphi 0, %s121
      %s139 = sphi 0, %s139
      %s141 = sphi 0, %s139
      %s142 = sphi 0, %s141
      %s156 = sphi 0, %s142
      %s160 = sphi 0, %s160
      %s162 = sphi 0, %s160
      %s163 = sphi 0, %s162
      %s177 = sphi 0, %s163
      %s181 = sphi 0, %s181
      %s183 = sphi 0, %s181
      %s184 = sphi 0, %s183
      %s198 = sphi 0, %s184
      %s202 = sphi 0, %s202
      %s204 = sphi 0, %s202
      %s205 = sphi 0, %s204
      %s219 = sphi 0, %s205
      %s223 = sphi 0, %s223
      %s225 = sphi 0, %s223
      %s226 = sphi 0, %s225
      %s240 = sphi 0, %s226
      %s244 = sphi 0, %s244
      %s246 = sphi 0, %s244
      %s247 = sphi 0, %s246
      %s261 = sphi 0, %s247
      %s267 = sphi 0, %s269
      %s270 = sphi 0, %s267
      %s271 = sphi 0, %s270
      %s287 = sphi 0, %s271
    $region4: #{tpu_custom_call.1} parent=1 // loop_header_branch
      %24 = sbr.rel (%p22) target = $region8
    $region5: #{tpu_custom_call.1} parent=1 // loop_body
      %s26 = ssub.s32 %s21, 1
      %s27 = ssub.s32 %s21, 2
      %s28 = sadd.s32 %s21, 1
      %s29 = ssub.s32 %s21, %s28
      %p30 = scmp.eq.s32.totalorder %s29, 0
      %s32 = sadd.s32 %s31, 1
      %s33 = scalar_select %p30, %s31, %s32
      %p36 = pneg %p30
      %p37 = scmp.eq.s32.totalorder %s21, 1
      %p38 = por %p36, %p37
      %p39 = scmp.ne.s32.totalorder %s31, %s34
      %p40 = scmp.eq.s32.totalorder %s21, 0
      %p41 = por %p39, %p40
      %p42 = scmp.ne.s32.totalorder %s31, %s34
      %p43 = scmp.eq.s32.totalorder %s26, 1
      %p44 = por %p42, %p43
      %p45 = scmp.ne.s32.totalorder %s34, %s35
      %p46 = scmp.eq.s32.totalorder %s26, 0
      %p47 = por %p45, %p46
      %p48 = scmp.ne.s32.totalorder %s34, %s35
      %p49 = scmp.eq.s32.totalorder %s27, 1
      %p50 = por %p48, %p49
      %p52 = scmp.ne.s32.totalorder %s35, %s51
      %p53 = scmp.eq.s32.totalorder %s27, 0
      %p54 = por %p52, %p53
      %s56 = sadd.s32 %s55, 1
      %p59 = scmp.eq.s32.totalorder %s21, 1
      %p60 = scmp.ne.s32.totalorder %s55, %s57
      %p61 = scmp.eq.s32.totalorder %s21, 0
      %p62 = por %p60, %p61
      %p63 = scmp.ne.s32.totalorder %s55, %s57
      %p64 = scmp.eq.s32.totalorder %s26, 1
      %p65 = por %p63, %p64
      %p66 = scmp.ne.s32.totalorder %s57, %s58
      %p67 = scmp.eq.s32.totalorder %s26, 0
      %p68 = por %p66, %p67
      %p69 = scmp.ne.s32.totalorder %s57, %s58
      %p70 = scmp.eq.s32.totalorder %s27, 1
      %p71 = por %p69, %p70
      %p73 = scmp.ne.s32.totalorder %s58, %s72
      %p74 = scmp.eq.s32.totalorder %s27, 0
      %p75 = por %p73, %p74
      %s77 = sadd.s32 %s76, 1
      %p80 = scmp.eq.s32.totalorder %s21, 1
      %p81 = scmp.ne.s32.totalorder %s76, %s78
      %p82 = scmp.eq.s32.totalorder %s21, 0
      %p83 = por %p81, %p82
      %p84 = scmp.ne.s32.totalorder %s76, %s78
      %p85 = scmp.eq.s32.totalorder %s26, 1
      %p86 = por %p84, %p85
      %p87 = scmp.ne.s32.totalorder %s78, %s79
      %p88 = scmp.eq.s32.totalorder %s26, 0
      %p89 = por %p87, %p88
      %p90 = scmp.ne.s32.totalorder %s78, %s79
      %p91 = scmp.eq.s32.totalorder %s27, 1
      %p92 = por %p90, %p91
      %p94 = scmp.ne.s32.totalorder %s79, %s93
      %p95 = scmp.eq.s32.totalorder %s27, 0
      %p96 = por %p94, %p95
      %s98 = sadd.s32 %s97, 1
      %p101 = scmp.eq.s32.totalorder %s21, 1
      %p102 = scmp.ne.s32.totalorder %s97, %s99
      %p103 = scmp.eq.s32.totalorder %s21, 0
      %p104 = por %p102, %p103
      %p105 = scmp.ne.s32.totalorder %s97, %s99
      %p106 = scmp.eq.s32.totalorder %s26, 1
      %p107 = por %p105, %p106
      %p108 = scmp.ne.s32.totalorder %s99, %s100
      %p109 = scmp.eq.s32.totalorder %s26, 0
      %p110 = por %p108, %p109
      %p111 = scmp.ne.s32.totalorder %s99, %s100
      %p112 = scmp.eq.s32.totalorder %s27, 1
      %p113 = por %p111, %p112
      %p115 = scmp.ne.s32.totalorder %s100, %s114
      %p116 = scmp.eq.s32.totalorder %s27, 0
      %p117 = por %p115, %p116
      %s119 = sadd.s32 %s118, 1
      %p122 = scmp.eq.s32.totalorder %s21, 1
      %p123 = scmp.ne.s32.totalorder %s118, %s120
      %p124 = scmp.eq.s32.totalorder %s21, 0
      %p125 = por %p123, %p124
      %p126 = scmp.ne.s32.totalorder %s118, %s120
      %p127 = scmp.eq.s32.totalorder %s26, 1
      %p128 = por %p126, %p127
      %p129 = scmp.ne.s32.totalorder %s120, %s121
      %p130 = scmp.eq.s32.totalorder %s26, 0
      %p131 = por %p129, %p130
      %p132 = scmp.ne.s32.totalorder %s120, %s121
      %p133 = scmp.eq.s32.totalorder %s27, 1
      %p134 = por %p132, %p133
      %p136 = scmp.ne.s32.totalorder %s121, %s135
      %p137 = scmp.eq.s32.totalorder %s27, 0
      %p138 = por %p136, %p137
      %s140 = sadd.s32 %s139, 1
      %p143 = scmp.eq.s32.totalorder %s21, 1
      %p144 = scmp.ne.s32.totalorder %s139, %s141
      %p145 = scmp.eq.s32.totalorder %s21, 0
      %p146 = por %p144, %p145
      %p147 = scmp.ne.s32.totalorder %s139, %s141
      %p148 = scmp.eq.s32.totalorder %s26, 1
      %p149 = por %p147, %p148
      %p150 = scmp.ne.s32.totalorder %s141, %s142
      %p151 = scmp.eq.s32.totalorder %s26, 0
      %p152 = por %p150, %p151
      %p153 = scmp.ne.s32.totalorder %s141, %s142
      %p154 = scmp.eq.s32.totalorder %s27, 1
      %p155 = por %p153, %p154
      %p157 = scmp.ne.s32.totalorder %s142, %s156
      %p158 = scmp.eq.s32.totalorder %s27, 0
      %p159 = por %p157, %p158
      %s161 = sadd.s32 %s160, 1
      %p164 = scmp.eq.s32.totalorder %s21, 1
      %p165 = scmp.ne.s32.totalorder %s160, %s162
      %p166 = scmp.eq.s32.totalorder %s21, 0
      %p167 = por %p165, %p166
      %p168 = scmp.ne.s32.totalorder %s160, %s162
      %p169 = scmp.eq.s32.totalorder %s26, 1
      %p170 = por %p168, %p169
      %p171 = scmp.ne.s32.totalorder %s162, %s163
      %p172 = scmp.eq.s32.totalorder %s26, 0
      %p173 = por %p171, %p172
      %p174 = scmp.ne.s32.totalorder %s162, %s163
      %p175 = scmp.eq.s32.totalorder %s27, 1
      %p176 = por %p174, %p175
      %p178 = scmp.ne.s32.totalorder %s163, %s177
      %p179 = scmp.eq.s32.totalorder %s27, 0
      %p180 = por %p178, %p179
      %s182 = sadd.s32 %s181, 1
      %p185 = scmp.eq.s32.totalorder %s21, 1
      %p186 = scmp.ne.s32.totalorder %s181, %s183
      %p187 = scmp.eq.s32.totalorder %s21, 0
      %p188 = por %p186, %p187
      %p189 = scmp.ne.s32.totalorder %s181, %s183
      %p190 = scmp.eq.s32.totalorder %s26, 1
      %p191 = por %p189, %p190
      %p192 = scmp.ne.s32.totalorder %s183, %s184
      %p193 = scmp.eq.s32.totalorder %s26, 0
      %p194 = por %p192, %p193
      %p195 = scmp.ne.s32.totalorder %s183, %s184
      %p196 = scmp.eq.s32.totalorder %s27, 1
      %p197 = por %p195, %p196
      %p199 = scmp.ne.s32.totalorder %s184, %s198
      %p200 = scmp.eq.s32.totalorder %s27, 0
      %p201 = por %p199, %p200
      %s203 = sadd.s32 %s202, 1
      %p206 = scmp.eq.s32.totalorder %s21, 1
      %p207 = scmp.ne.s32.totalorder %s202, %s204
      %p208 = scmp.eq.s32.totalorder %s21, 0
      %p209 = por %p207, %p208
      %p210 = scmp.ne.s32.totalorder %s202, %s204
      %p211 = scmp.eq.s32.totalorder %s26, 1
      %p212 = por %p210, %p211
      %p213 = scmp.ne.s32.totalorder %s204, %s205
      %p214 = scmp.eq.s32.totalorder %s26, 0
      %p215 = por %p213, %p214
      %p216 = scmp.ne.s32.totalorder %s204, %s205
      %p217 = scmp.eq.s32.totalorder %s27, 1
      %p218 = por %p216, %p217
      %p220 = scmp.ne.s32.totalorder %s205, %s219
      %p221 = scmp.eq.s32.totalorder %s27, 0
      %p222 = por %p220, %p221
      %s224 = sadd.s32 %s223, 1
      %p227 = scmp.eq.s32.totalorder %s21, 1
      %p228 = scmp.ne.s32.totalorder %s223, %s225
      %p229 = scmp.eq.s32.totalorder %s21, 0
      %p230 = por %p228, %p229
      %p231 = scmp.ne.s32.totalorder %s223, %s225
      %p232 = scmp.eq.s32.totalorder %s26, 1
      %p233 = por %p231, %p232
      %p234 = scmp.ne.s32.totalorder %s225, %s226
      %p235 = scmp.eq.s32.totalorder %s26, 0
      %p236 = por %p234, %p235
      %p237 = scmp.ne.s32.totalorder %s225, %s226
      %p238 = scmp.eq.s32.totalorder %s27, 1
      %p239 = por %p237, %p238
      %p241 = scmp.ne.s32.totalorder %s226, %s240
      %p242 = scmp.eq.s32.totalorder %s27, 0
      %p243 = por %p241, %p242
      %s245 = sadd.s32 %s244, 1
      %p248 = scmp.eq.s32.totalorder %s21, 1
      %p249 = scmp.ne.s32.totalorder %s244, %s246
      %p250 = scmp.eq.s32.totalorder %s21, 0
      %p251 = por %p249, %p250
      %p252 = scmp.ne.s32.totalorder %s244, %s246
      %p253 = scmp.eq.s32.totalorder %s26, 1
      %p254 = por %p252, %p253
      %p255 = scmp.ne.s32.totalorder %s246, %s247
      %p256 = scmp.eq.s32.totalorder %s26, 0
      %p257 = por %p255, %p256
      %p258 = scmp.ne.s32.totalorder %s246, %s247
      %p259 = scmp.eq.s32.totalorder %s27, 1
      %p260 = por %p258, %p259
      %p262 = scmp.ne.s32.totalorder %s247, %s261
      %p263 = scmp.eq.s32.totalorder %s27, 0
      %p264 = por %p262, %p263
      %s265 = ssub.s32 %s21, %s28
      %p266 = scmp.eq.s32.totalorder %s265, 0
      %s268 = sadd.s32 %s267, 1
      %s269 = scalar_select %p266, %s267, %s268
      %p272 = pneg %p266
      %p273 = scmp.eq.s32.totalorder %s21, 1
      %p274 = por %p272, %p273
      %p275 = scmp.ne.s32.totalorder %s267, %s270
      %p276 = scmp.eq.s32.totalorder %s21, 0
      %p277 = por %p275, %p276
      %p278 = scmp.ne.s32.totalorder %s267, %s270
      %p279 = scmp.eq.s32.totalorder %s26, 1
      %p280 = por %p278, %p279
      %p281 = scmp.ne.s32.totalorder %s270, %s271
      %p282 = scmp.eq.s32.totalorder %s26, 0
      %p283 = por %p281, %p282
      %p284 = scmp.ne.s32.totalorder %s270, %s271
      %p285 = scmp.eq.s32.totalorder %s27, 1
      %p286 = por %p284, %p285
      %p288 = scmp.ne.s32.totalorder %s271, %s287
      %p289 = scmp.eq.s32.totalorder %s27, 0
      %p290 = por %p288, %p289
      %p291 = scmp.le.s32.totalorder 1, %s21
      %p292 = scmp.lt.s32.totalorder %s21, 3
      %p293 = pnand %p291, %p292
      %p294 = pneg %p293
      // Predicated region
      $region9: #{tpu_custom_call.1} parent=5 // pred_check
        _
      $region10: #{tpu_custom_call.1} parent=5 // pred_check_branch
        %296 = sbr.rel (%p293) target = $region12
      $region11: #{tpu_custom_call.1} parent=5 // pred_region
        %s297 = ssub.s32 %s21, 1
        // Predicated region
        $region13: #{tpu_custom_call.1} parent=11 // pred_check
          %p298 = pneg %p68
        $region14: #{tpu_custom_call.1} parent=11 // pred_check_branch
          %300 = sbr.rel (%p298) target = $region16
        $region15: #{tpu_custom_call.1} parent=11 // pred_region
          _
        $region16: #{tpu_custom_call.1} parent=11 // pred_fallthru
          _
        // Predicated region
        $region17: #{tpu_custom_call.1} parent=11 // pred_check
          %p301 = pneg %p89
        $region18: #{tpu_custom_call.1} parent=11 // pred_check_branch
          %303 = sbr.rel (%p301) target = $region20
        $region19: #{tpu_custom_call.1} parent=11 // pred_region
          _
        $region20: #{tpu_custom_call.1} parent=11 // pred_fallthru
          _
        // Predicated region
        $region21: #{tpu_custom_call.1} parent=11 // pred_check
          %p304 = pneg %p110
        $region22: #{tpu_custom_call.1} parent=11 // pred_check_branch
          %306 = sbr.rel (%p304) target = $region24
        $region23: #{tpu_custom_call.1} parent=11 // pred_region
          _
        $region24: #{tpu_custom_call.1} parent=11 // pred_fallthru
          _
        // Predicated region
        $region25: #{tpu_custom_call.1} parent=11 // pred_check
          %p307 = pneg %p131
        $region26: #{tpu_custom_call.1} parent=11 // pred_check_branch
          %309 = sbr.rel (%p307) target = $region28
        $region27: #{tpu_custom_call.1} parent=11 // pred_region
          _
        $region28: #{tpu_custom_call.1} parent=11 // pred_fallthru
          _
        // Predicated region
        $region29: #{tpu_custom_call.1} parent=11 // pred_check
          %p310 = pneg %p152
        $region30: #{tpu_custom_call.1} parent=11 // pred_check_branch
          %312 = sbr.rel (%p310) target = $region32
        $region31: #{tpu_custom_call.1} parent=11 // pred_region
          _
        $region32: #{tpu_custom_call.1} parent=11 // pred_fallthru
          _
        // Predicated region
        $region33: #{tpu_custom_call.1} parent=11 // pred_check
          %p313 = pneg %p173
        $region34: #{tpu_custom_call.1} parent=11 // pred_check_branch
          %315 = sbr.rel (%p313) target = $region36
        $region35: #{tpu_custom_call.1} parent=11 // pred_region
          _
        $region36: #{tpu_custom_call.1} parent=11 // pred_fallthru
          _
        // Predicated region
        $region37: #{tpu_custom_call.1} parent=11 // pred_check
          %p316 = pneg %p194
        $region38: #{tpu_custom_call.1} parent=11 // pred_check_branch
          %318 = sbr.rel (%p316) target = $region40
        $region39: #{tpu_custom_call.1} parent=11 // pred_region
          _
        $region40: #{tpu_custom_call.1} parent=11 // pred_fallthru
          _
        // Predicated region
        $region41: #{tpu_custom_call.1} parent=11 // pred_check
          %p319 = pneg %p215
        $region42: #{tpu_custom_call.1} parent=11 // pred_check_branch
          %321 = sbr.rel (%p319) target = $region44
        $region43: #{tpu_custom_call.1} parent=11 // pred_region
          _
        $region44: #{tpu_custom_call.1} parent=11 // pred_fallthru
          _
        // Predicated region
        $region45: #{tpu_custom_call.1} parent=11 // pred_check
          %p322 = pneg %p236
        $region46: #{tpu_custom_call.1} parent=11 // pred_check_branch
          %324 = sbr.rel (%p322) target = $region48
        $region47: #{tpu_custom_call.1} parent=11 // pred_region
          _
        $region48: #{tpu_custom_call.1} parent=11 // pred_fallthru
          _
        // Predicated region
        $region49: #{tpu_custom_call.1} parent=11 // pred_check
          %p325 = pneg %p257
        $region50: #{tpu_custom_call.1} parent=11 // pred_check_branch
          %327 = sbr.rel (%p325) target = $region52
        $region51: #{tpu_custom_call.1} parent=11 // pred_region
          %s329 = ssub.s32 16384, 16384
          %330 = vsyncadd [#allocation5], %s329
          %s331 = sshll.u32 [#allocation4], 4
          %s332 = int_to_ptr.vmem [resolvable:$true] %s331
          %337 = dma.hbm_to_vmem [thread:$0]  %s10, 16384, %s332, [#allocation5], 512, 512, 32
        $region52: #{tpu_custom_call.1} parent=11 // pred_fallthru
          _
      $region12: #{tpu_custom_call.1} parent=5 // pred_fallthru
        _
      %p338 = scmp.lt.s32.totalorder %s21, 2
      // Predicated region
      $region53: #{tpu_custom_call.1} parent=5 // pred_check
        %p339 = pneg %p338
      $region54: #{tpu_custom_call.1} parent=5 // pred_check_branch
        %341 = sbr.rel (%p339) target = $region56
      $region55: #{tpu_custom_call.1} parent=5 // pred_region
        // Predicated region
        $region57: #{tpu_custom_call.1} parent=55 // pred_check
          %p342 = pneg %p41
        $region58: #{tpu_custom_call.1} parent=55 // pred_check_branch
          %344 = sbr.rel (%p342) target = $region60
        $region59: #{tpu_custom_call.1} parent=55 // pred_region
          %p345 = scmp.lt.s32.totalorder %s21, 1
          %s346 = scalar_select %p345, %s21, 1
          %s347 = smul.addr %s346, 2
          %s348 = scalar_lea.vmem %s0, %s347
        $region60: #{tpu_custom_call.1} parent=55 // pred_fallthru
          _
      $region56: #{tpu_custom_call.1} parent=5 // pred_fallthru
        _
      %p349 = scmp.le.s32.totalorder 1, %s21
      %p350 = scmp.lt.s32.totalorder %s21, 3
      %p351 = pnand %p349, %p350
      %p352 = pneg %p351
      // Predicated region
      $region61: #{tpu_custom_call.1} parent=5 // pred_check
        _
      $region62: #{tpu_custom_call.1} parent=5 // pred_check_branch
        %354 = sbr.rel (%p351) target = $region64
      $region63: #{tpu_custom_call.1} parent=5 // pred_region
        %s355 = ssub.s32 %s21, 1
        // Predicated region
        $region65: #{tpu_custom_call.1} parent=63 // pred_check
          %p356 = pneg %p257
        $region66: #{tpu_custom_call.1} parent=63 // pred_check_branch
          %358 = sbr.rel (%p356) target = $region68
        $region67: #{tpu_custom_call.1} parent=63 // pred_region
          %359 = dma.done [#allocation5], 16384
        $region68: #{tpu_custom_call.1} parent=63 // pred_fallthru
          _
        %p360 = scmp.lt.s32.totalorder %s26, 1
        %s361 = scalar_select %p360, %s26, 1
        %s362 = smul.addr %s361, 2
        %s363 = scalar_lea.vmem %s0, %s362
        %p364 = pneg %p47
        %p365 = pneg %p44
        %p366 = pneg %p68
        %p367 = pneg %p65
        %p368 = pneg %p89
        %p369 = pneg %p86
        %p370 = pneg %p110
        %p371 = pneg %p107
        %p372 = pneg %p131
        %p373 = pneg %p128
        %p374 = pneg %p152
        %p375 = pneg %p149
        %p376 = pneg %p173
        %p377 = pneg %p170
        %p378 = pneg %p194
        %p379 = pneg %p191
        %p380 = pneg %p215
        %p381 = pneg %p212
        %p382 = pneg %p236
        %p383 = pneg %p233
        %p384 = pneg %p257
        %p385 = pneg %p254
        %p386 = pneg %p283
        %p387 = pneg %p280
        %s388 = sand.u32 %s270, 1
        %s389 = scalar_lea.sflag [#allocation6], %s388
        %s390 = sand.u32 %s270, 1
        %s391 = smul.addr %s390, 32
        %s392 = scalar_lea.vmem [#allocation7], %s391
        %p393 = scmp.lt.s32.totalorder %s26, 1
        %s394 = scalar_select %p393, %s26, 1
        %s395 = smul.addr %s394, 2
        %s396 = scalar_lea.vmem %s0, %s395
        %v398 = vld [vmem:[%s396] sm:$0x3]
        %v400 = vlaneseq
        %v401 = vshrl.u32 %v400, 7
        %v402 = vsub.s32 0, %v401
        %v403 = vrot.slane %v398, %v402
        %v404 = vlaneseq
        %v405 = vshrl.u32 %v404, 7
        %v406 = vsub.s32 1, %v405
        %v407 = vrot.slane %v398, %v406
        %410 = vrot.lane.b32.xlu0 %v403, 17
        %v411 = vpop.permute.xlu0 %410
        %412 = vrot.lane.b32.xlu0 %v407, 17
        %v413 = vpop.permute.xlu0 %412
        %v414 = vlaneseq
        %v415 = vand.u32 %v414, 127
        %vm416 = vcmp.lt.s32.totalorder %v415, 17
        %v417 = vsel %vm416, %v411, %v413
        %v418 = vsel %vm416, %v413, %v411
        %v419 = vld [vmem:[%s9] ss:$8 sm:$0x3]
        %v421 = vlaneseq
        %v422 = vshrl.u32 %v421, 7
        %v423 = vsub.s32 0, %v422
        %v424 = vrot.slane %v419, %v423
        %v425 = vlaneseq
        %v426 = vshrl.u32 %v425, 7
        %v427 = vsub.s32 1, %v426
        %v428 = vrot.slane %v419, %v427
        %v431 = vmul.f32 %v418, %v424
        %v432 = vmul.f32 %v417, %v428
        %433 = vrot.lane.b32.xlu0 %v403, 16
        %v434 = vpop.permute.xlu0 %433
        %435 = vrot.lane.b32.xlu0 %v407, 16
        %v436 = vpop.permute.xlu0 %435
        %vm437 = vcmp.lt.s32.totalorder %v415, 16
        %v438 = vsel %vm437, %v434, %v436
        %v439 = vsel %vm437, %v436, %v434
        %s440 = scalar_lea.vmem %s9, 1
        %v441 = vld [vmem:[%s440] ss:$8 sm:$0x3]
        %v443 = vlaneseq
        %v444 = vshrl.u32 %v443, 7
        %v445 = vsub.s32 0, %v444
        %v446 = vrot.slane %v441, %v445
        %v447 = vlaneseq
        %v448 = vshrl.u32 %v447, 7
        %v449 = vsub.s32 1, %v448
        %v450 = vrot.slane %v441, %v449
        %v453 = vmul.f32 %v439, %v446
        %v454 = vmul.f32 %v438, %v450
        %455 = vrot.lane.b32.xlu0 %v403, 15
        %v456 = vpop.permute.xlu0 %455
        %457 = vrot.lane.b32.xlu0 %v407, 15
        %v458 = vpop.permute.xlu0 %457
        %vm459 = vcmp.lt.s32.totalorder %v415, 15
        %v460 = vsel %vm459, %v456, %v458
        %v461 = vsel %vm459, %v458, %v456
        %s462 = scalar_lea.vmem %s9, 2
        %v463 = vld [vmem:[%s462] ss:$8 sm:$0x3]
        %v465 = vlaneseq
        %v466 = vshrl.u32 %v465, 7
        %v467 = vsub.s32 0, %v466
        %v468 = vrot.slane %v463, %v467
        %v469 = vlaneseq
        %v470 = vshrl.u32 %v469, 7
        %v471 = vsub.s32 1, %v470
        %v472 = vrot.slane %v463, %v471
        %v475 = vmul.f32 %v461, %v468
        %v476 = vmul.f32 %v460, %v472
        %477 = vrot.lane.b32.xlu0 %v403, 1
        %v478 = vpop.permute.xlu0 %477
        %479 = vrot.lane.b32.xlu0 %v407, 1
        %v480 = vpop.permute.xlu0 %479
        %vm481 = vcmp.lt.s32.totalorder %v415, 1
        %v482 = vsel %vm481, %v478, %v480
        %v483 = vsel %vm481, %v480, %v478
        %s484 = scalar_lea.vmem %s9, 3
        %v485 = vld [vmem:[%s484] ss:$8 sm:$0x3]
        %v487 = vlaneseq
        %v488 = vshrl.u32 %v487, 7
        %v489 = vsub.s32 0, %v488
        %v490 = vrot.slane %v485, %v489
        %v491 = vlaneseq
        %v492 = vshrl.u32 %v491, 7
        %v493 = vsub.s32 1, %v492
        %v494 = vrot.slane %v485, %v493
        %v497 = vmul.f32 %v483, %v490
        %v498 = vmul.f32 %v482, %v494
        %499 = vrot.lane.b32.xlu0 %v403, 127
        %v500 = vpop.permute.xlu0 %499
        %501 = vrot.lane.b32.xlu0 %v407, 127
        %v502 = vpop.permute.xlu0 %501
        %vm503 = vcmp.lt.s32.totalorder %v415, 127
        %v504 = vsel %vm503, %v500, %v502
        %v505 = vsel %vm503, %v502, %v500
        %s506 = scalar_lea.vmem %s9, 5
        %v507 = vld [vmem:[%s506] ss:$8 sm:$0x3]
        %v509 = vlaneseq
        %v510 = vshrl.u32 %v509, 7
        %v511 = vsub.s32 0, %v510
        %v512 = vrot.slane %v507, %v511
        %v513 = vlaneseq
        %v514 = vshrl.u32 %v513, 7
        %v515 = vsub.s32 1, %v514
        %v516 = vrot.slane %v507, %v515
        %v519 = vmul.f32 %v504, %v512
        %v520 = vmul.f32 %v505, %v516
        %521 = vrot.lane.b32.xlu0 %v403, 113
        %v522 = vpop.permute.xlu0 %521
        %523 = vrot.lane.b32.xlu0 %v407, 113
        %v524 = vpop.permute.xlu0 %523
        %vm525 = vcmp.lt.s32.totalorder %v415, 113
        %v526 = vsel %vm525, %v522, %v524
        %v527 = vsel %vm525, %v524, %v522
        %s528 = scalar_lea.vmem %s9, 6
        %v529 = vld [vmem:[%s528] ss:$8 sm:$0x3]
        %v531 = vlaneseq
        %v532 = vshrl.u32 %v531, 7
        %v533 = vsub.s32 0, %v532
        %v534 = vrot.slane %v529, %v533
        %v535 = vlaneseq
        %v536 = vshrl.u32 %v535, 7
        %v537 = vsub.s32 1, %v536
        %v538 = vrot.slane %v529, %v537
        %v541 = vmul.f32 %v526, %v534
        %v542 = vmul.f32 %v527, %v538
        %543 = vrot.lane.b32.xlu0 %v403, 112
        %v544 = vpop.permute.xlu0 %543
        %545 = vrot.lane.b32.xlu0 %v407, 112
        %v546 = vpop.permute.xlu0 %545
        %vm547 = vcmp.lt.s32.totalorder %v415, 112
        %v548 = vsel %vm547, %v544, %v546
        %v549 = vsel %vm547, %v546, %v544
        %s550 = scalar_lea.vmem %s9, 7
        %v551 = vld [vmem:[%s550] ss:$8 sm:$0x3]
        %v553 = vlaneseq
        %v554 = vshrl.u32 %v553, 7
        %v555 = vsub.s32 0, %v554
        %v556 = vrot.slane %v551, %v555
        %v557 = vlaneseq
        %v558 = vshrl.u32 %v557, 7
        %v559 = vsub.s32 1, %v558
        %v560 = vrot.slane %v551, %v559
        %v563 = vmul.f32 %v548, %v556
        %v564 = vmul.f32 %v549, %v560
        %565 = vrot.lane.b32.xlu0 %v403, 111
        %v566 = vpop.permute.xlu0 %565
        %567 = vrot.lane.b32.xlu0 %v407, 111
        %v568 = vpop.permute.xlu0 %567
        %vm569 = vcmp.lt.s32.totalorder %v415, 111
        %v570 = vsel %vm569, %v566, %v568
        %v571 = vsel %vm569, %v568, %v566
        %s572 = scalar_lea.vmem %s9, 16
        %v573 = vld [vmem:[%s572] ss:$8 sm:$0x3]
        %v575 = vlaneseq
        %v576 = vshrl.u32 %v575, 7
        %v577 = vsub.s32 0, %v576
        %v578 = vrot.slane %v573, %v577
        %v579 = vlaneseq
        %v580 = vshrl.u32 %v579, 7
        %v581 = vsub.s32 1, %v580
        %v582 = vrot.slane %v573, %v581
        %v585 = vmul.f32 %v570, %v578
        %v586 = vmul.f32 %v571, %v582
        %v589 = vrot.slane %v453, 7
        %v590 = vrot.slane %v454, 7
        %v595 = vrot.slane %v475, 6
        %v596 = vrot.slane %v476, 6
        %v601 = vrot.slane %v497, 5
        %v602 = vrot.slane %v498, 5
        %v607 = vrot.slane %v519, 3
        %v608 = vrot.slane %v520, 3
        %v613 = vrot.slane %v541, 2
        %v614 = vrot.slane %v542, 2
        %v619 = vrot.slane %v563, 1
        %v620 = vrot.slane %v564, 1
        %vm623 = vcmask 1040384
        %v624 = vsel %vm623, %v431, %v589
        %v625 = vsel %vm623, %v432, %v590
        %vm626 = vcmask 1041408
        %v627 = vsel %vm626, %v624, %v595
        %v628 = vsel %vm626, %v625, %v596
        %vm629 = vcmask 1042432
        %v630 = vsel %vm629, %v627, %v601
        %v631 = vsel %vm629, %v628, %v602
        %vm632 = vcmask 1043456
        %v633 = vsel %vm632, %v630, %v403
        %v634 = vsel %vm632, %v631, %v407
        %vm635 = vcmask 1044480
        %v636 = vsel %vm635, %v633, %v607
        %v637 = vsel %vm635, %v634, %v608
        %vm638 = vcmask 1045504
        %v639 = vsel %vm638, %v636, %v613
        %v640 = vsel %vm638, %v637, %v614
        %vm641 = vcmask 1046528
        %v642 = vsel %vm641, %v639, %v619
        %v643 = vsel %vm641, %v640, %v620
        %v644 = vpack.c.bf16 %v585, %v642
        %v645 = vpack.c.bf16 %v586, %v643
        %v646 = vld [vmem:[%s1] sm:$0xf]
        %v647 = vld [vmem:[%s1 + $0x4] sm:$0xf]
        %v648 = vld [vmem:[%s1 + $0x8] sm:$0xf]
        %v649 = vld [vmem:[%s1 + $0xc] sm:$0xf]
        %v650 = vld [vmem:[%s1 + $0x10] sm:$0xf]
        %v651 = vld [vmem:[%s1 + $0x14] sm:$0xf]
        %v652 = vld [vmem:[%s1 + $0x18] sm:$0xf]
        %v653 = vld [vmem:[%s1 + $0x1c] sm:$0xf]
        %v654 = vld [vmem:[%s5] sm:$0xff]
        %v655 = vld [vmem:[%s5 + $0x8] sm:$0xff]
        %v656 = vld [vmem:[%s5 + $0x10] sm:$0xff]
        %v657 = vld [vmem:[%s5 + $0x18] sm:$0xff]
        %v658 = vld [vmem:[%s5 + $0x20] sm:$0xff]
        %v659 = vld [vmem:[%s5 + $0x28] sm:$0xff]
        %v660 = vld [vmem:[%s5 + $0x30] sm:$0xff]
        %v661 = vld [vmem:[%s5 + $0x38] sm:$0xff]
        %663 = vset.pattern.permute.xlu0 0
        %664 = vperm.xlu0 %663, %v654
        %v665 = vpop.permute.xlu0 %664
        %668 = vset.pattern.permute.xlu0 0
        %669 = vperm.xlu0 %668, %v655
        %v670 = vpop.permute.xlu0 %669
        %673 = vset.pattern.permute.xlu0 0
        %674 = vperm.xlu0 %673, %v656
        %v675 = vpop.permute.xlu0 %674
        %678 = vset.pattern.permute.xlu0 0
        %679 = vperm.xlu0 %678, %v657
        %v680 = vpop.permute.xlu0 %679
        %683 = vset.pattern.permute.xlu0 0
        %684 = vperm.xlu0 %683, %v658
        %v685 = vpop.permute.xlu0 %684
        %688 = vset.pattern.permute.xlu0 0
        %689 = vperm.xlu0 %688, %v659
        %v690 = vpop.permute.xlu0 %689
        %693 = vset.pattern.permute.xlu0 0
        %694 = vperm.xlu0 %693, %v660
        %v695 = vpop.permute.xlu0 %694
        %698 = vset.pattern.permute.xlu0 0
        %699 = vperm.xlu0 %698, %v661
        %v700 = vpop.permute.xlu0 %699
        %v710 = vunpack.c.l.b16 %v646
        %v711 = vunpack.c.l.b16 %v647
        %v712 = vunpack.c.l.b16 %v648
        %v713 = vunpack.c.l.b16 %v649
        %v714 = vunpack.c.l.b16 %v650
        %v715 = vunpack.c.l.b16 %v651
        %v716 = vunpack.c.l.b16 %v652
        %v717 = vunpack.c.l.b16 %v653
        %v718 = vpack.c.b16 %v711, %v710
        %v719 = vpack.c.b16 %v713, %v712
        %v720 = vpack.c.b16 %v715, %v714
        %v721 = vpack.c.b16 %v717, %v716
        %vm722 = vcmask 72704
        %v724 = vsel %vm722, %v718, 0
        %v727 = vsel %vm722, %v719, 0
        %v730 = vsel %vm722, %v720, 0
        %v733 = vsel %vm722, %v721, 0
        %v735 = vsel %vm632, 4294967295, 65535
        %v736 = vsel %vm635, %v735, 0
        %v738 = vand.u32 %v644, %v736
        %v741 = vand.u32 %v645, %v736
        %743 = vmatprep.subr.bf16.mxu0 %v741
        %744 = vmatpush1.bf16.msra.mxu0 %v738
        %745 = vmatprep.subr.bf16.mxu0 0
        %746 = vmatpush1.bf16.msra.mxu0 0
        %747 = vmatprep.subr.bf16.mxu0 0
        %748 = vmatpush1.bf16.msra.mxu0 0
        %749 = vmatprep.subr.bf16.mxu0 0
        %750 = vmatpush1.bf16.msra.mxu0 0
        %751 = vmatprep.subr.bf16.mxu0 0
        %752 = vmatpush1.bf16.msra.mxu0 0
        %753 = vmatprep.subr.bf16.mxu0 0
        %754 = vmatpush1.bf16.msra.mxu0 0
        %755 = vmatprep.subr.bf16.mxu0 0
        %756 = vmatpush1.bf16.msra.mxu0 0
        %757 = vmatprep.subr.bf16.mxu0 0
        %758 = vmatpush1.bf16.msra.mxu0 0
        %759 = vmatprep.subr.bf16.mxu0 0
        %760 = vmatpush1.bf16.msra.mxu0 0
        %761 = vmatprep.subr.bf16.mxu0 0
        %762 = vmatpush1.bf16.msra.mxu0 0
        %763 = vmatprep.subr.bf16.mxu0 0
        %764 = vmatpush1.bf16.msra.mxu0 0
        %765 = vmatprep.subr.bf16.mxu0 0
        %766 = vmatpush1.bf16.msra.mxu0 0
        %767 = vmatprep.subr.bf16.mxu0 0
        %768 = vmatpush1.bf16.msra.mxu0 0
        %769 = vmatprep.subr.bf16.mxu0 0
        %770 = vmatpush1.bf16.msra.mxu0 0
        %771 = vmatprep.subr.bf16.mxu0 0
        %772 = vmatpush1.bf16.msra.mxu0 0
        %773 = vmatprep.subr.bf16.mxu0 0
        %774 = vmatpush1.bf16.msra.mxu0 0
        %775 = vmatprep.mubr.bf16.mxu0 0
        %776 = vmatmul.mubr.bf16.gmra.mrb[0].mxu0 %v724
        %v777 = vpop.f32.mrb[0].mxu0
        %v778 = vadd.f32 %v665, %v777
        %v779 = vpop.f32.mrb[0].mxu0
        %v780 = vadd.f32 %v665, %v779
        %v781 = vpop.f32.mrb[0].mxu0
        %v782 = vadd.f32 %v670, %v781
        %v783 = vpop.f32.mrb[0].mxu0
        %v784 = vadd.f32 %v670, %v783
        %785 = vmatprep.mubr.bf16.mxu0 0
        %786 = vmatmul.mubr.bf16.gmra.mrb[0].mxu0 %v727
        %v787 = vpop.f32.mrb[0].mxu0
        %v788 = vadd.f32 %v675, %v787
        %v789 = vpop.f32.mrb[0].mxu0
        %v790 = vadd.f32 %v675, %v789
        %v791 = vpop.f32.mrb[0].mxu0
        %v792 = vadd.f32 %v680, %v791
        %v793 = vpop.f32.mrb[0].mxu0
        %v794 = vadd.f32 %v680, %v793
        %795 = vmatprep.mubr.bf16.mxu0 0
        %796 = vmatmul.mubr.bf16.gmra.mrb[0].mxu0 %v730
        %v797 = vpop.f32.mrb[0].mxu0
        %v798 = vadd.f32 %v685, %v797
        %v799 = vpop.f32.mrb[0].mxu0
        %v800 = vadd.f32 %v685, %v799
        %v801 = vpop.f32.mrb[0].mxu0
        %v802 = vadd.f32 %v690, %v801
        %v803 = vpop.f32.mrb[0].mxu0
        %v804 = vadd.f32 %v690, %v803
        %805 = vmatprep.mubr.bf16.mxu0 0
        %806 = vmatmul.mubr.bf16.gmra.mrb[0].mxu0 %v733
        %v807 = vpop.f32.mrb[0].mxu0
        %v808 = vadd.f32 %v695, %v807
        %v809 = vpop.f32.mrb[0].mxu0
        %v810 = vadd.f32 %v695, %v809
        %v811 = vpop.f32.mrb[0].mxu0
        %v812 = vadd.f32 %v700, %v811
        %v813 = vpop.f32.mrb[0].mxu0
        %v814 = vadd.f32 %v700, %v813
        %815 = vdwg.mxu0
        %vm816 = vcmp.gt.f32.partialorder %v778, 0.0
        %vm817 = vcmp.gt.f32.partialorder %v780, 0.0
        %vm818 = vcmp.gt.f32.partialorder %v782, 0.0
        %vm819 = vcmp.gt.f32.partialorder %v784, 0.0
        %vm820 = vcmp.gt.f32.partialorder %v788, 0.0
        %vm821 = vcmp.gt.f32.partialorder %v790, 0.0
        %vm822 = vcmp.gt.f32.partialorder %v792, 0.0
        %vm823 = vcmp.gt.f32.partialorder %v794, 0.0
        %vm824 = vcmp.gt.f32.partialorder %v798, 0.0
        %vm825 = vcmp.gt.f32.partialorder %v800, 0.0
        %vm826 = vcmp.gt.f32.partialorder %v802, 0.0
        %vm827 = vcmp.gt.f32.partialorder %v804, 0.0
        %vm828 = vcmp.gt.f32.partialorder %v808, 0.0
        %vm829 = vcmp.gt.f32.partialorder %v810, 0.0
        %vm830 = vcmp.gt.f32.partialorder %v812, 0.0
        %vm831 = vcmp.gt.f32.partialorder %v814, 0.0
        %v832 = vmin.f32 %v778, 0.0
        %v833 = vmin.f32 %v780, 0.0
        %v834 = vmin.f32 %v782, 0.0
        %v835 = vmin.f32 %v784, 0.0
        %v836 = vmin.f32 %v788, 0.0
        %v837 = vmin.f32 %v790, 0.0
        %v838 = vmin.f32 %v792, 0.0
        %v839 = vmin.f32 %v794, 0.0
        %v840 = vmin.f32 %v798, 0.0
        %v841 = vmin.f32 %v800, 0.0
        %v842 = vmin.f32 %v802, 0.0
        %v843 = vmin.f32 %v804, 0.0
        %v844 = vmin.f32 %v808, 0.0
        %v845 = vmin.f32 %v810, 0.0
        %v846 = vmin.f32 %v812, 0.0
        %v847 = vmin.f32 %v814, 0.0
        %v848 = vmul.f32 %v832, 1.442695
        %v849 = vpow.pop %v848
        %v850 = vmul.f32 %v833, 1.442695
        %v851 = vpow.pop %v850
        %v852 = vmul.f32 %v834, 1.442695
        %v853 = vpow.pop %v852
        %v854 = vmul.f32 %v835, 1.442695
        %v855 = vpow.pop %v854
        %v856 = vmul.f32 %v836, 1.442695
        %v857 = vpow.pop %v856
        %v858 = vmul.f32 %v837, 1.442695
        %v859 = vpow.pop %v858
        %v860 = vmul.f32 %v838, 1.442695
        %v861 = vpow.pop %v860
        %v862 = vmul.f32 %v839, 1.442695
        %v863 = vpow.pop %v862
        %v864 = vmul.f32 %v840, 1.442695
        %v865 = vpow.pop %v864
        %v866 = vmul.f32 %v841, 1.442695
        %v867 = vpow.pop %v866
        %v868 = vmul.f32 %v842, 1.442695
        %v869 = vpow.pop %v868
        %v870 = vmul.f32 %v843, 1.442695
        %v871 = vpow.pop %v870
        %v872 = vmul.f32 %v844, 1.442695
        %v873 = vpow.pop %v872
        %v874 = vmul.f32 %v845, 1.442695
        %v875 = vpow.pop %v874
        %v876 = vmul.f32 %v846, 1.442695
        %v877 = vpow.pop %v876
        %v878 = vmul.f32 %v847, 1.442695
        %v879 = vpow.pop %v878
        %v880 = vsub.f32 %v849, 1.0
        %v881 = vsub.f32 %v851, 1.0
        %v882 = vsub.f32 %v853, 1.0
        %v883 = vsub.f32 %v855, 1.0
        %v884 = vsub.f32 %v857, 1.0
        %v885 = vsub.f32 %v859, 1.0
        %v886 = vsub.f32 %v861, 1.0
        %v887 = vsub.f32 %v863, 1.0
        %v888 = vsub.f32 %v865, 1.0
        %v889 = vsub.f32 %v867, 1.0
        %v890 = vsub.f32 %v869, 1.0
        %v891 = vsub.f32 %v871, 1.0
        %v892 = vsub.f32 %v873, 1.0
        %v893 = vsub.f32 %v875, 1.0
        %v894 = vsub.f32 %v877, 1.0
        %v895 = vsub.f32 %v879, 1.0
        %v896 = vsel %vm816, %v778, %v880
        %v897 = vsel %vm817, %v780, %v881
        %v898 = vsel %vm818, %v782, %v882
        %v899 = vsel %vm819, %v784, %v883
        %v900 = vsel %vm820, %v788, %v884
        %v901 = vsel %vm821, %v790, %v885
        %v902 = vsel %vm822, %v792, %v886
        %v903 = vsel %vm823, %v794, %v887
        %v904 = vsel %vm824, %v798, %v888
        %v905 = vsel %vm825, %v800, %v889
        %v906 = vsel %vm826, %v802, %v890
        %v907 = vsel %vm827, %v804, %v891
        %v908 = vsel %vm828, %v808, %v892
        %v909 = vsel %vm829, %v810, %v893
        %v910 = vsel %vm830, %v812, %v894
        %v911 = vsel %vm831, %v814, %v895
        %912 = vst [vmem:[#allocation2] sm:$0xff] %v896
        %913 = vst [vmem:[#allocation2 + $0x8] sm:$0xff] %v897
        %914 = vst [vmem:[#allocation2 + $0x10] sm:$0xff] %v898
        %915 = vst [vmem:[#allocation2 + $0x18] sm:$0xff] %v899
        %916 = vst [vmem:[#allocation2 + $0x20] sm:$0xff] %v900
        %917 = vst [vmem:[#allocation2 + $0x28] sm:$0xff] %v901
        %918 = vst [vmem:[#allocation2 + $0x30] sm:$0xff] %v902
        %919 = vst [vmem:[#allocation2 + $0x38] sm:$0xff] %v903
        %920 = vst [vmem:[#allocation2 + $0x40] sm:$0xff] %v904
        %921 = vst [vmem:[#allocation2 + $0x48] sm:$0xff] %v905
        %922 = vst [vmem:[#allocation2 + $0x50] sm:$0xff] %v906
        %923 = vst [vmem:[#allocation2 + $0x58] sm:$0xff] %v907
        %924 = vst [vmem:[#allocation2 + $0x60] sm:$0xff] %v908
        %925 = vst [vmem:[#allocation2 + $0x68] sm:$0xff] %v909
        %926 = vst [vmem:[#allocation2 + $0x70] sm:$0xff] %v910
        %927 = vst [vmem:[#allocation2 + $0x78] sm:$0xff] %v911
        %v928 = vld [vmem:[#allocation2] sm:$0xff]
        %v929 = vld [vmem:[#allocation2 + $0x8] sm:$0xff]
        %v930 = vld [vmem:[#allocation2 + $0x10] sm:$0xff]
        %v931 = vld [vmem:[#allocation2 + $0x18] sm:$0xff]
        %v932 = vld [vmem:[#allocation2 + $0x20] sm:$0xff]
        %v933 = vld [vmem:[#allocation2 + $0x28] sm:$0xff]
        %v934 = vld [vmem:[#allocation2 + $0x30] sm:$0xff]
        %v935 = vld [vmem:[#allocation2 + $0x38] sm:$0xff]
        %v936 = vld [vmem:[#allocation2 + $0x40] sm:$0xff]
        %v937 = vld [vmem:[#allocation2 + $0x48] sm:$0xff]
        %v938 = vld [vmem:[#allocation2 + $0x50] sm:$0xff]
        %v939 = vld [vmem:[#allocation2 + $0x58] sm:$0xff]
        %v940 = vld [vmem:[#allocation2 + $0x60] sm:$0xff]
        %v941 = vld [vmem:[#allocation2 + $0x68] sm:$0xff]
        %v942 = vld [vmem:[#allocation2 + $0x70] sm:$0xff]
        %v943 = vld [vmem:[#allocation2 + $0x78] sm:$0xff]
        %944 = vrot.lane.b32.xlu0 %v928, 17
        %v945 = vpop.permute.xlu0 %944
        %946 = vrot.lane.b32.xlu0 %v930, 17
        %v947 = vpop.permute.xlu0 %946
        %948 = vrot.lane.b32.xlu0 %v932, 17
        %v949 = vpop.permute.xlu0 %948
        %950 = vrot.lane.b32.xlu0 %v934, 17
        %v951 = vpop.permute.xlu0 %950
        %952 = vrot.lane.b32.xlu0 %v936, 17
        %v953 = vpop.permute.xlu0 %952
        %954 = vrot.lane.b32.xlu0 %v938, 17
        %v955 = vpop.permute.xlu0 %954
        %956 = vrot.lane.b32.xlu0 %v940, 17
        %v957 = vpop.permute.xlu0 %956
        %958 = vrot.lane.b32.xlu0 %v942, 17
        %v959 = vpop.permute.xlu0 %958
        %960 = vrot.lane.b32.xlu0 %v929, 17
        %v961 = vpop.permute.xlu0 %960
        %962 = vrot.lane.b32.xlu0 %v931, 17
        %v963 = vpop.permute.xlu0 %962
        %964 = vrot.lane.b32.xlu0 %v933, 17
        %v965 = vpop.permute.xlu0 %964
        %966 = vrot.lane.b32.xlu0 %v935, 17
        %v967 = vpop.permute.xlu0 %966
        %968 = vrot.lane.b32.xlu0 %v937, 17
        %v969 = vpop.permute.xlu0 %968
        %970 = vrot.lane.b32.xlu0 %v939, 17
        %v971 = vpop.permute.xlu0 %970
        %972 = vrot.lane.b32.xlu0 %v941, 17
        %v973 = vpop.permute.xlu0 %972
        %974 = vrot.lane.b32.xlu0 %v943, 17
        %v975 = vpop.permute.xlu0 %974
        %v976 = vsel %vm416, %v945, %v961
        %v977 = vsel %vm416, %v947, %v963
        %v978 = vsel %vm416, %v949, %v965
        %v979 = vsel %vm416, %v951, %v967
        %v980 = vsel %vm416, %v953, %v969
        %v981 = vsel %vm416, %v955, %v971
        %v982 = vsel %vm416, %v957, %v973
        %v983 = vsel %vm416, %v959, %v975
        %v984 = vsel %vm416, %v961, %v945
        %v985 = vsel %vm416, %v963, %v947
        %v986 = vsel %vm416, %v965, %v949
        %v987 = vsel %vm416, %v967, %v951
        %v988 = vsel %vm416, %v969, %v953
        %v989 = vsel %vm416, %v971, %v955
        %v990 = vsel %vm416, %v973, %v957
        %v991 = vsel %vm416, %v975, %v959
        %v992 = vld [vmem:[%s9] ss:$8 sm:$0x3]
        %v994 = vlaneseq
        %v995 = vshrl.u32 %v994, 7
        %v996 = vsub.s32 0, %v995
        %v997 = vrot.slane %v992, %v996
        %v998 = vlaneseq
        %v999 = vshrl.u32 %v998, 7
        %v1000 = vsub.s32 1, %v999
        %v1001 = vrot.slane %v992, %v1000
        %v1004 = vmul.f32 %v984, %v997
        %v1005 = vmul.f32 %v976, %v1001
        %v1006 = vmul.f32 %v985, %v997
        %v1007 = vmul.f32 %v977, %v1001
        %v1008 = vmul.f32 %v986, %v997
        %v1009 = vmul.f32 %v978, %v1001
        %v1010 = vmul.f32 %v987, %v997
        %v1011 = vmul.f32 %v979, %v1001
        %v1012 = vmul.f32 %v988, %v997
        %v1013 = vmul.f32 %v980, %v1001
        %v1014 = vmul.f32 %v989, %v997
        %v1015 = vmul.f32 %v981, %v1001
        %v1016 = vmul.f32 %v990, %v997
        %v1017 = vmul.f32 %v982, %v1001
        %v1018 = vmul.f32 %v991, %v997
        %v1019 = vmul.f32 %v983, %v1001
        %v1020 = vpack.c.bf16 %v1006, %v1004
        %v1021 = vpack.c.bf16 %v1007, %v1005
        %v1022 = vpack.c.bf16 %v1010, %v1008
        %v1023 = vpack.c.bf16 %v1011, %v1009
        %v1024 = vpack.c.bf16 %v1014, %v1012
        %v1025 = vpack.c.bf16 %v1015, %v1013
        %v1026 = vpack.c.bf16 %v1018, %v1016
        %v1027 = vpack.c.bf16 %v1019, %v1017
        %1028 = vst [vmem:[#allocation3] sm:$0xff] %v1020
        %1029 = vst [vmem:[#allocation3 + $0x8] sm:$0xff] %v1021
        %1030 = vst [vmem:[#allocation3 + $0x10] sm:$0xff] %v1022
        %1031 = vst [vmem:[#allocation3 + $0x18] sm:$0xff] %v1023
        %1032 = vst [vmem:[#allocation3 + $0x20] sm:$0xff] %v1024
        %1033 = vst [vmem:[#allocation3 + $0x28] sm:$0xff] %v1025
        %1034 = vst [vmem:[#allocation3 + $0x30] sm:$0xff] %v1026
        %1035 = vst [vmem:[#allocation3 + $0x38] sm:$0xff] %v1027
        %1036 = vrot.lane.b32.xlu0 %v928, 16
        %v1037 = vpop.permute.xlu0 %1036
        %1038 = vrot.lane.b32.xlu0 %v930, 16
        %v1039 = vpop.permute.xlu0 %1038
        %1040 = vrot.lane.b32.xlu0 %v932, 16
        %v1041 = vpop.permute.xlu0 %1040
        %1042 = vrot.lane.b32.xlu0 %v934, 16
        %v1043 = vpop.permute.xlu0 %1042
        %1044 = vrot.lane.b32.xlu0 %v936, 16
        %v1045 = vpop.permute.xlu0 %1044
        %1046 = vrot.lane.b32.xlu0 %v938, 16
        %v1047 = vpop.permute.xlu0 %1046
        %1048 = vrot.lane.b32.xlu0 %v940, 16
        %v1049 = vpop.permute.xlu0 %1048
        %1050 = vrot.lane.b32.xlu0 %v942, 16
        %v1051 = vpop.permute.xlu0 %1050
        %1052 = vrot.lane.b32.xlu0 %v929, 16
        %v1053 = vpop.permute.xlu0 %1052
        %1054 = vrot.lane.b32.xlu0 %v931, 16
        %v1055 = vpop.permute.xlu0 %1054
        %1056 = vrot.lane.b32.xlu0 %v933, 16
        %v1057 = vpop.permute.xlu0 %1056
        %1058 = vrot.lane.b32.xlu0 %v935, 16
        %v1059 = vpop.permute.xlu0 %1058
        %1060 = vrot.lane.b32.xlu0 %v937, 16
        %v1061 = vpop.permute.xlu0 %1060
        %1062 = vrot.lane.b32.xlu0 %v939, 16
        %v1063 = vpop.permute.xlu0 %1062
        %1064 = vrot.lane.b32.xlu0 %v941, 16
        %v1065 = vpop.permute.xlu0 %1064
        %1066 = vrot.lane.b32.xlu0 %v943, 16
        %v1067 = vpop.permute.xlu0 %1066
        %v1068 = vsel %vm437, %v1037, %v1053
        %v1069 = vsel %vm437, %v1039, %v1055
        %v1070 = vsel %vm437, %v1041, %v1057
        %v1071 = vsel %vm437, %v1043, %v1059
        %v1072 = vsel %vm437, %v1045, %v1061
        %v1073 = vsel %vm437, %v1047, %v1063
        %v1074 = vsel %vm437, %v1049, %v1065
        %v1075 = vsel %vm437, %v1051, %v1067
        %v1076 = vsel %vm437, %v1053, %v1037
        %v1077 = vsel %vm437, %v1055, %v1039
        %v1078 = vsel %vm437, %v1057, %v1041
        %v1079 = vsel %vm437, %v1059, %v1043
        %v1080 = vsel %vm437, %v1061, %v1045
        %v1081 = vsel %vm437, %v1063, %v1047
        %v1082 = vsel %vm437, %v1065, %v1049
        %v1083 = vsel %vm437, %v1067, %v1051
        %v1084 = vld [vmem:[%s440] ss:$8 sm:$0x3]
        %v1086 = vlaneseq
        %v1087 = vshrl.u32 %v1086, 7
        %v1088 = vsub.s32 0, %v1087
        %v1089 = vrot.slane %v1084, %v1088
        %v1090 = vlaneseq
        %v1091 = vshrl.u32 %v1090, 7
        %v1092 = vsub.s32 1, %v1091
        %v1093 = vrot.slane %v1084, %v1092
        %v1096 = vmul.f32 %v1076, %v1089
        %v1097 = vmul.f32 %v1068, %v1093
        %v1098 = vmul.f32 %v1077, %v1089
        %v1099 = vmul.f32 %v1069, %v1093
        %v1100 = vmul.f32 %v1078, %v1089
        %v1101 = vmul.f32 %v1070, %v1093
        %v1102 = vmul.f32 %v1079, %v1089
        %v1103 = vmul.f32 %v1071, %v1093
        %v1104 = vmul.f32 %v1080, %v1089
        %v1105 = vmul.f32 %v1072, %v1093
        %v1106 = vmul.f32 %v1081, %v1089
        %v1107 = vmul.f32 %v1073, %v1093
        %v1108 = vmul.f32 %v1082, %v1089
        %v1109 = vmul.f32 %v1074, %v1093
        %v1110 = vmul.f32 %v1083, %v1089
        %v1111 = vmul.f32 %v1075, %v1093
        %v1112 = vpack.c.bf16 %v1098, %v1096
        %v1113 = vpack.c.bf16 %v1099, %v1097
        %v1114 = vpack.c.bf16 %v1102, %v1100
        %v1115 = vpack.c.bf16 %v1103, %v1101
        %v1116 = vpack.c.bf16 %v1106, %v1104
        %v1117 = vpack.c.bf16 %v1107, %v1105
        %v1118 = vpack.c.bf16 %v1110, %v1108
        %v1119 = vpack.c.bf16 %v1111, %v1109
        %1120 = vst [vmem:[#allocation3 + $0x40] sm:$0xff] %v1112
        %1121 = vst [vmem:[#allocation3 + $0x48] sm:$0xff] %v1113
        %1122 = vst [vmem:[#allocation3 + $0x50] sm:$0xff] %v1114
        %1123 = vst [vmem:[#allocation3 + $0x58] sm:$0xff] %v1115
        %1124 = vst [vmem:[#allocation3 + $0x60] sm:$0xff] %v1116
        %1125 = vst [vmem:[#allocation3 + $0x68] sm:$0xff] %v1117
        %1126 = vst [vmem:[#allocation3 + $0x70] sm:$0xff] %v1118
        %1127 = vst [vmem:[#allocation3 + $0x78] sm:$0xff] %v1119
        %1128 = vrot.lane.b32.xlu0 %v928, 15
        %v1129 = vpop.permute.xlu0 %1128
        %1130 = vrot.lane.b32.xlu0 %v930, 15
        %v1131 = vpop.permute.xlu0 %1130
        %1132 = vrot.lane.b32.xlu0 %v932, 15
        %v1133 = vpop.permute.xlu0 %1132
        %1134 = vrot.lane.b32.xlu0 %v934, 15
        %v1135 = vpop.permute.xlu0 %1134
        %1136 = vrot.lane.b32.xlu0 %v936, 15
        %v1137 = vpop.permute.xlu0 %1136
        %1138 = vrot.lane.b32.xlu0 %v938, 15
        %v1139 = vpop.permute.xlu0 %1138
        %1140 = vrot.lane.b32.xlu0 %v940, 15
        %v1141 = vpop.permute.xlu0 %1140
        %1142 = vrot.lane.b32.xlu0 %v942, 15
        %v1143 = vpop.permute.xlu0 %1142
        %1144 = vrot.lane.b32.xlu0 %v929, 15
        %v1145 = vpop.permute.xlu0 %1144
        %1146 = vrot.lane.b32.xlu0 %v931, 15
        %v1147 = vpop.permute.xlu0 %1146
        %1148 = vrot.lane.b32.xlu0 %v933, 15
        %v1149 = vpop.permute.xlu0 %1148
        %1150 = vrot.lane.b32.xlu0 %v935, 15
        %v1151 = vpop.permute.xlu0 %1150
        %1152 = vrot.lane.b32.xlu0 %v937, 15
        %v1153 = vpop.permute.xlu0 %1152
        %1154 = vrot.lane.b32.xlu0 %v939, 15
        %v1155 = vpop.permute.xlu0 %1154
        %1156 = vrot.lane.b32.xlu0 %v941, 15
        %v1157 = vpop.permute.xlu0 %1156
        %1158 = vrot.lane.b32.xlu0 %v943, 15
        %v1159 = vpop.permute.xlu0 %1158
        %v1160 = vsel %vm459, %v1129, %v1145
        %v1161 = vsel %vm459, %v1131, %v1147
        %v1162 = vsel %vm459, %v1133, %v1149
        %v1163 = vsel %vm459, %v1135, %v1151
        %v1164 = vsel %vm459, %v1137, %v1153
        %v1165 = vsel %vm459, %v1139, %v1155
        %v1166 = vsel %vm459, %v1141, %v1157
        %v1167 = vsel %vm459, %v1143, %v1159
        %v1168 = vsel %vm459, %v1145, %v1129
        %v1169 = vsel %vm459, %v1147, %v1131
        %v1170 = vsel %vm459, %v1149, %v1133
        %v1171 = vsel %vm459, %v1151, %v1135
        %v1172 = vsel %vm459, %v1153, %v1137
        %v1173 = vsel %vm459, %v1155, %v1139
        %v1174 = vsel %vm459, %v1157, %v1141
        %v1175 = vsel %vm459, %v1159, %v1143
        %v1176 = vld [vmem:[%s462] ss:$8 sm:$0x3]
        %v1178 = vlaneseq
        %v1179 = vshrl.u32 %v1178, 7
        %v1180 = vsub.s32 0, %v1179
        %v1181 = vrot.slane %v1176, %v1180
        %v1182 = vlaneseq
        %v1183 = vshrl.u32 %v1182, 7
        %v1184 = vsub.s32 1, %v1183
        %v1185 = vrot.slane %v1176, %v1184
        %v1188 = vmul.f32 %v1168, %v1181
        %v1189 = vmul.f32 %v1160, %v1185
        %v1190 = vmul.f32 %v1169, %v1181
        %v1191 = vmul.f32 %v1161, %v1185
        %v1192 = vmul.f32 %v1170, %v1181
        %v1193 = vmul.f32 %v1162, %v1185
        %v1194 = vmul.f32 %v1171, %v1181
        %v1195 = vmul.f32 %v1163, %v1185
        %v1196 = vmul.f32 %v1172, %v1181
        %v1197 = vmul.f32 %v1164, %v1185
        %v1198 = vmul.f32 %v1173, %v1181
        %v1199 = vmul.f32 %v1165, %v1185
        %v1200 = vmul.f32 %v1174, %v1181
        %v1201 = vmul.f32 %v1166, %v1185
        %v1202 = vmul.f32 %v1175, %v1181
        %v1203 = vmul.f32 %v1167, %v1185
        %v1204 = vpack.c.bf16 %v1190, %v1188
        %v1205 = vpack.c.bf16 %v1191, %v1189
        %v1206 = vpack.c.bf16 %v1194, %v1192
        %v1207 = vpack.c.bf16 %v1195, %v1193
        %v1208 = vpack.c.bf16 %v1198, %v1196
        %v1209 = vpack.c.bf16 %v1199, %v1197
        %v1210 = vpack.c.bf16 %v1202, %v1200
        %v1211 = vpack.c.bf16 %v1203, %v1201
        %1212 = vst [vmem:[#allocation3 + $0x80] sm:$0xff] %v1204
        %1213 = vst [vmem:[#allocation3 + $0x88] sm:$0xff] %v1205
        %1214 = vst [vmem:[#allocation3 + $0x90] sm:$0xff] %v1206
        %1215 = vst [vmem:[#allocation3 + $0x98] sm:$0xff] %v1207
        %1216 = vst [vmem:[#allocation3 + $0xa0] sm:$0xff] %v1208
        %1217 = vst [vmem:[#allocation3 + $0xa8] sm:$0xff] %v1209
        %1218 = vst [vmem:[#allocation3 + $0xb0] sm:$0xff] %v1210
        %1219 = vst [vmem:[#allocation3 + $0xb8] sm:$0xff] %v1211
        %1220 = vrot.lane.b32.xlu0 %v928, 1
        %v1221 = vpop.permute.xlu0 %1220
        %1222 = vrot.lane.b32.xlu0 %v930, 1
        %v1223 = vpop.permute.xlu0 %1222
        %1224 = vrot.lane.b32.xlu0 %v932, 1
        %v1225 = vpop.permute.xlu0 %1224
        %1226 = vrot.lane.b32.xlu0 %v934, 1
        %v1227 = vpop.permute.xlu0 %1226
        %1228 = vrot.lane.b32.xlu0 %v936, 1
        %v1229 = vpop.permute.xlu0 %1228
        %1230 = vrot.lane.b32.xlu0 %v938, 1
        %v1231 = vpop.permute.xlu0 %1230
        %1232 = vrot.lane.b32.xlu0 %v940, 1
        %v1233 = vpop.permute.xlu0 %1232
        %1234 = vrot.lane.b32.xlu0 %v942, 1
        %v1235 = vpop.permute.xlu0 %1234
        %1236 = vrot.lane.b32.xlu0 %v929, 1
        %v1237 = vpop.permute.xlu0 %1236
        %1238 = vrot.lane.b32.xlu0 %v931, 1
        %v1239 = vpop.permute.xlu0 %1238
        %1240 = vrot.lane.b32.xlu0 %v933, 1
        %v1241 = vpop.permute.xlu0 %1240
        %1242 = vrot.lane.b32.xlu0 %v935, 1
        %v1243 = vpop.permute.xlu0 %1242
        %1244 = vrot.lane.b32.xlu0 %v937, 1
        %v1245 = vpop.permute.xlu0 %1244
        %1246 = vrot.lane.b32.xlu0 %v939, 1
        %v1247 = vpop.permute.xlu0 %1246
        %1248 = vrot.lane.b32.xlu0 %v941, 1
        %v1249 = vpop.permute.xlu0 %1248
        %1250 = vrot.lane.b32.xlu0 %v943, 1
        %v1251 = vpop.permute.xlu0 %1250
        %v1252 = vsel %vm481, %v1221, %v1237
        %v1253 = vsel %vm481, %v1223, %v1239
        %v1254 = vsel %vm481, %v1225, %v1241
        %v1255 = vsel %vm481, %v1227, %v1243
        %v1256 = vsel %vm481, %v1229, %v1245
        %v1257 = vsel %vm481, %v1231, %v1247
        %v1258 = vsel %vm481, %v1233, %v1249
        %v1259 = vsel %vm481, %v1235, %v1251
        %v1260 = vsel %vm481, %v1237, %v1221
        %v1261 = vsel %vm481, %v1239, %v1223
        %v1262 = vsel %vm481, %v1241, %v1225
        %v1263 = vsel %vm481, %v1243, %v1227
        %v1264 = vsel %vm481, %v1245, %v1229
        %v1265 = vsel %vm481, %v1247, %v1231
        %v1266 = vsel %vm481, %v1249, %v1233
        %v1267 = vsel %vm481, %v1251, %v1235
        %v1268 = vld [vmem:[%s484] ss:$8 sm:$0x3]
        %v1270 = vlaneseq
        %v1271 = vshrl.u32 %v1270, 7
        %v1272 = vsub.s32 0, %v1271
        %v1273 = vrot.slane %v1268, %v1272
        %v1274 = vlaneseq
        %v1275 = vshrl.u32 %v1274, 7
        %v1276 = vsub.s32 1, %v1275
        %v1277 = vrot.slane %v1268, %v1276
        %v1280 = vmul.f32 %v1260, %v1273
        %v1281 = vmul.f32 %v1252, %v1277
        %v1282 = vmul.f32 %v1261, %v1273
        %v1283 = vmul.f32 %v1253, %v1277
        %v1284 = vmul.f32 %v1262, %v1273
        %v1285 = vmul.f32 %v1254, %v1277
        %v1286 = vmul.f32 %v1263, %v1273
        %v1287 = vmul.f32 %v1255, %v1277
        %v1288 = vmul.f32 %v1264, %v1273
        %v1289 = vmul.f32 %v1256, %v1277
        %v1290 = vmul.f32 %v1265, %v1273
        %v1291 = vmul.f32 %v1257, %v1277
        %v1292 = vmul.f32 %v1266, %v1273
        %v1293 = vmul.f32 %v1258, %v1277
        %v1294 = vmul.f32 %v1267, %v1273
        %v1295 = vmul.f32 %v1259, %v1277
        %v1296 = vpack.c.bf16 %v1282, %v1280
        %v1297 = vpack.c.bf16 %v1283, %v1281
        %v1298 = vpack.c.bf16 %v1286, %v1284
        %v1299 = vpack.c.bf16 %v1287, %v1285
        %v1300 = vpack.c.bf16 %v1290, %v1288
        %v1301 = vpack.c.bf16 %v1291, %v1289
        %v1302 = vpack.c.bf16 %v1294, %v1292
        %v1303 = vpack.c.bf16 %v1295, %v1293
        %1304 = vst [vmem:[#allocation3 + $0xc0] sm:$0xff] %v1296
        %1305 = vst [vmem:[#allocation3 + $0xc8] sm:$0xff] %v1297
        %1306 = vst [vmem:[#allocation3 + $0xd0] sm:$0xff] %v1298
        %1307 = vst [vmem:[#allocation3 + $0xd8] sm:$0xff] %v1299
        %1308 = vst [vmem:[#allocation3 + $0xe0] sm:$0xff] %v1300
        %1309 = vst [vmem:[#allocation3 + $0xe8] sm:$0xff] %v1301
        %1310 = vst [vmem:[#allocation3 + $0xf0] sm:$0xff] %v1302
        %1311 = vst [vmem:[#allocation3 + $0xf8] sm:$0xff] %v1303
        %v1312 = vpack.c.bf16 %v930, %v928
        %v1313 = vpack.c.bf16 %v931, %v929
        %v1314 = vpack.c.bf16 %v934, %v932
        %v1315 = vpack.c.bf16 %v935, %v933
        %v1316 = vpack.c.bf16 %v938, %v936
        %v1317 = vpack.c.bf16 %v939, %v937
        %v1318 = vpack.c.bf16 %v942, %v940
        %v1319 = vpack.c.bf16 %v943, %v941
        %1320 = vst [vmem:[#allocation3 + $0x100] sm:$0xff] %v1312
        %1321 = vst [vmem:[#allocation3 + $0x108] sm:$0xff] %v1313
        %1322 = vst [vmem:[#allocation3 + $0x110] sm:$0xff] %v1314
        %1323 = vst [vmem:[#allocation3 + $0x118] sm:$0xff] %v1315
        %1324 = vst [vmem:[#allocation3 + $0x120] sm:$0xff] %v1316
        %1325 = vst [vmem:[#allocation3 + $0x128] sm:$0xff] %v1317
        %1326 = vst [vmem:[#allocation3 + $0x130] sm:$0xff] %v1318
        %1327 = vst [vmem:[#allocation3 + $0x138] sm:$0xff] %v1319
        %1328 = vrot.lane.b32.xlu0 %v928, 127
        %v1329 = vpop.permute.xlu0 %1328
        %1330 = vrot.lane.b32.xlu0 %v930, 127
        %v1331 = vpop.permute.xlu0 %1330
        %1332 = vrot.lane.b32.xlu0 %v932, 127
        %v1333 = vpop.permute.xlu0 %1332
        %1334 = vrot.lane.b32.xlu0 %v934, 127
        %v1335 = vpop.permute.xlu0 %1334
        %1336 = vrot.lane.b32.xlu0 %v936, 127
        %v1337 = vpop.permute.xlu0 %1336
        %1338 = vrot.lane.b32.xlu0 %v938, 127
        %v1339 = vpop.permute.xlu0 %1338
        %1340 = vrot.lane.b32.xlu0 %v940, 127
        %v1341 = vpop.permute.xlu0 %1340
        %1342 = vrot.lane.b32.xlu0 %v942, 127
        %v1343 = vpop.permute.xlu0 %1342
        %1344 = vrot.lane.b32.xlu0 %v929, 127
        %v1345 = vpop.permute.xlu0 %1344
        %1346 = vrot.lane.b32.xlu0 %v931, 127
        %v1347 = vpop.permute.xlu0 %1346
        %1348 = vrot.lane.b32.xlu0 %v933, 127
        %v1349 = vpop.permute.xlu0 %1348
        %1350 = vrot.lane.b32.xlu0 %v935, 127
        %v1351 = vpop.permute.xlu0 %1350
        %1352 = vrot.lane.b32.xlu0 %v937, 127
        %v1353 = vpop.permute.xlu0 %1352
        %1354 = vrot.lane.b32.xlu0 %v939, 127
        %v1355 = vpop.permute.xlu0 %1354
        %1356 = vrot.lane.b32.xlu0 %v941, 127
        %v1357 = vpop.permute.xlu0 %1356
        %1358 = vrot.lane.b32.xlu0 %v943, 127
        %v1359 = vpop.permute.xlu0 %1358
        %v1360 = vsel %vm503, %v1329, %v1345
        %v1361 = vsel %vm503, %v1331, %v1347
        %v1362 = vsel %vm503, %v1333, %v1349
        %v1363 = vsel %vm503, %v1335, %v1351
        %v1364 = vsel %vm503, %v1337, %v1353
        %v1365 = vsel %vm503, %v1339, %v1355
        %v1366 = vsel %vm503, %v1341, %v1357
        %v1367 = vsel %vm503, %v1343, %v1359
        %v1368 = vsel %vm503, %v1345, %v1329
        %v1369 = vsel %vm503, %v1347, %v1331
        %v1370 = vsel %vm503, %v1349, %v1333
        %v1371 = vsel %vm503, %v1351, %v1335
        %v1372 = vsel %vm503, %v1353, %v1337
        %v1373 = vsel %vm503, %v1355, %v1339
        %v1374 = vsel %vm503, %v1357, %v1341
        %v1375 = vsel %vm503, %v1359, %v1343
        %v1376 = vld [vmem:[%s506] ss:$8 sm:$0x3]
        %v1378 = vlaneseq
        %v1379 = vshrl.u32 %v1378, 7
        %v1380 = vsub.s32 0, %v1379
        %v1381 = vrot.slane %v1376, %v1380
        %v1382 = vlaneseq
        %v1383 = vshrl.u32 %v1382, 7
        %v1384 = vsub.s32 1, %v1383
        %v1385 = vrot.slane %v1376, %v1384
        %v1388 = vmul.f32 %v1360, %v1381
        %v1389 = vmul.f32 %v1368, %v1385
        %v1390 = vmul.f32 %v1361, %v1381
        %v1391 = vmul.f32 %v1369, %v1385
        %v1392 = vmul.f32 %v1362, %v1381
        %v1393 = vmul.f32 %v1370, %v1385
        %v1394 = vmul.f32 %v1363, %v1381
        %v1395 = vmul.f32 %v1371, %v1385
        %v1396 = vmul.f32 %v1364, %v1381
        %v1397 = vmul.f32 %v1372, %v1385
        %v1398 = vmul.f32 %v1365, %v1381
        %v1399 = vmul.f32 %v1373, %v1385
        %v1400 = vmul.f32 %v1366, %v1381
        %v1401 = vmul.f32 %v1374, %v1385
        %v1402 = vmul.f32 %v1367, %v1381
        %v1403 = vmul.f32 %v1375, %v1385
        %v1404 = vpack.c.bf16 %v1390, %v1388
        %v1405 = vpack.c.bf16 %v1391, %v1389
        %v1406 = vpack.c.bf16 %v1394, %v1392
        %v1407 = vpack.c.bf16 %v1395, %v1393
        %v1408 = vpack.c.bf16 %v1398, %v1396
        %v1409 = vpack.c.bf16 %v1399, %v1397
        %v1410 = vpack.c.bf16 %v1402, %v1400
        %v1411 = vpack.c.bf16 %v1403, %v1401
        %1412 = vst [vmem:[#allocation3 + $0x140] sm:$0xff] %v1404
        %1413 = vst [vmem:[#allocation3 + $0x148] sm:$0xff] %v1405
        %1414 = vst [vmem:[#allocation3 + $0x150] sm:$0xff] %v1406
        %1415 = vst [vmem:[#allocation3 + $0x158] sm:$0xff] %v1407
        %1416 = vst [vmem:[#allocation3 + $0x160] sm:$0xff] %v1408
        %1417 = vst [vmem:[#allocation3 + $0x168] sm:$0xff] %v1409
        %1418 = vst [vmem:[#allocation3 + $0x170] sm:$0xff] %v1410
        %1419 = vst [vmem:[#allocation3 + $0x178] sm:$0xff] %v1411
        %1420 = vrot.lane.b32.xlu0 %v928, 113
        %v1421 = vpop.permute.xlu0 %1420
        %1422 = vrot.lane.b32.xlu0 %v930, 113
        %v1423 = vpop.permute.xlu0 %1422
        %1424 = vrot.lane.b32.xlu0 %v932, 113
        %v1425 = vpop.permute.xlu0 %1424
        %1426 = vrot.lane.b32.xlu0 %v934, 113
        %v1427 = vpop.permute.xlu0 %1426
        %1428 = vrot.lane.b32.xlu0 %v936, 113
        %v1429 = vpop.permute.xlu0 %1428
        %1430 = vrot.lane.b32.xlu0 %v938, 113
        %v1431 = vpop.permute.xlu0 %1430
        %1432 = vrot.lane.b32.xlu0 %v940, 113
        %v1433 = vpop.permute.xlu0 %1432
        %1434 = vrot.lane.b32.xlu0 %v942, 113
        %v1435 = vpop.permute.xlu0 %1434
        %1436 = vrot.lane.b32.xlu0 %v929, 113
        %v1437 = vpop.permute.xlu0 %1436
        %1438 = vrot.lane.b32.xlu0 %v931, 113
        %v1439 = vpop.permute.xlu0 %1438
        %1440 = vrot.lane.b32.xlu0 %v933, 113
        %v1441 = vpop.permute.xlu0 %1440
        %1442 = vrot.lane.b32.xlu0 %v935, 113
        %v1443 = vpop.permute.xlu0 %1442
        %1444 = vrot.lane.b32.xlu0 %v937, 113
        %v1445 = vpop.permute.xlu0 %1444
        %1446 = vrot.lane.b32.xlu0 %v939, 113
        %v1447 = vpop.permute.xlu0 %1446
        %1448 = vrot.lane.b32.xlu0 %v941, 113
        %v1449 = vpop.permute.xlu0 %1448
        %1450 = vrot.lane.b32.xlu0 %v943, 113
        %v1451 = vpop.permute.xlu0 %1450
        %v1452 = vsel %vm525, %v1421, %v1437
        %v1453 = vsel %vm525, %v1423, %v1439
        %v1454 = vsel %vm525, %v1425, %v1441
        %v1455 = vsel %vm525, %v1427, %v1443
        %v1456 = vsel %vm525, %v1429, %v1445
        %v1457 = vsel %vm525, %v1431, %v1447
        %v1458 = vsel %vm525, %v1433, %v1449
        %v1459 = vsel %vm525, %v1435, %v1451
        %v1460 = vsel %vm525, %v1437, %v1421
        %v1461 = vsel %vm525, %v1439, %v1423
        %v1462 = vsel %vm525, %v1441, %v1425
        %v1463 = vsel %vm525, %v1443, %v1427
        %v1464 = vsel %vm525, %v1445, %v1429
        %v1465 = vsel %vm525, %v1447, %v1431
        %v1466 = vsel %vm525, %v1449, %v1433
        %v1467 = vsel %vm525, %v1451, %v1435
        %v1468 = vld [vmem:[%s528] ss:$8 sm:$0x3]
        %v1470 = vlaneseq
        %v1471 = vshrl.u32 %v1470, 7
        %v1472 = vsub.s32 0, %v1471
        %v1473 = vrot.slane %v1468, %v1472
        %v1474 = vlaneseq
        %v1475 = vshrl.u32 %v1474, 7
        %v1476 = vsub.s32 1, %v1475
        %v1477 = vrot.slane %v1468, %v1476
        %v1480 = vmul.f32 %v1452, %v1473
        %v1481 = vmul.f32 %v1460, %v1477
        %v1482 = vmul.f32 %v1453, %v1473
        %v1483 = vmul.f32 %v1461, %v1477
        %v1484 = vmul.f32 %v1454, %v1473
        %v1485 = vmul.f32 %v1462, %v1477
        %v1486 = vmul.f32 %v1455, %v1473
        %v1487 = vmul.f32 %v1463, %v1477
        %v1488 = vmul.f32 %v1456, %v1473
        %v1489 = vmul.f32 %v1464, %v1477
        %v1490 = vmul.f32 %v1457, %v1473
        %v1491 = vmul.f32 %v1465, %v1477
        %v1492 = vmul.f32 %v1458, %v1473
        %v1493 = vmul.f32 %v1466, %v1477
        %v1494 = vmul.f32 %v1459, %v1473
        %v1495 = vmul.f32 %v1467, %v1477
        %v1496 = vpack.c.bf16 %v1482, %v1480
        %v1497 = vpack.c.bf16 %v1483, %v1481
        %v1498 = vpack.c.bf16 %v1486, %v1484
        %v1499 = vpack.c.bf16 %v1487, %v1485
        %v1500 = vpack.c.bf16 %v1490, %v1488
        %v1501 = vpack.c.bf16 %v1491, %v1489
        %v1502 = vpack.c.bf16 %v1494, %v1492
        %v1503 = vpack.c.bf16 %v1495, %v1493
        %1504 = vst [vmem:[#allocation3 + $0x180] sm:$0xff] %v1496
        %1505 = vst [vmem:[#allocation3 + $0x188] sm:$0xff] %v1497
        %1506 = vst [vmem:[#allocation3 + $0x190] sm:$0xff] %v1498
        %1507 = vst [vmem:[#allocation3 + $0x198] sm:$0xff] %v1499
        %1508 = vst [vmem:[#allocation3 + $0x1a0] sm:$0xff] %v1500
        %1509 = vst [vmem:[#allocation3 + $0x1a8] sm:$0xff] %v1501
        %1510 = vst [vmem:[#allocation3 + $0x1b0] sm:$0xff] %v1502
        %1511 = vst [vmem:[#allocation3 + $0x1b8] sm:$0xff] %v1503
        %1512 = vrot.lane.b32.xlu0 %v928, 112
        %v1513 = vpop.permute.xlu0 %1512
        %1514 = vrot.lane.b32.xlu0 %v930, 112
        %v1515 = vpop.permute.xlu0 %1514
        %1516 = vrot.lane.b32.xlu0 %v932, 112
        %v1517 = vpop.permute.xlu0 %1516
        %1518 = vrot.lane.b32.xlu0 %v934, 112
        %v1519 = vpop.permute.xlu0 %1518
        %1520 = vrot.lane.b32.xlu0 %v936, 112
        %v1521 = vpop.permute.xlu0 %1520
        %1522 = vrot.lane.b32.xlu0 %v938, 112
        %v1523 = vpop.permute.xlu0 %1522
        %1524 = vrot.lane.b32.xlu0 %v940, 112
        %v1525 = vpop.permute.xlu0 %1524
        %1526 = vrot.lane.b32.xlu0 %v942, 112
        %v1527 = vpop.permute.xlu0 %1526
        %1528 = vrot.lane.b32.xlu0 %v929, 112
        %v1529 = vpop.permute.xlu0 %1528
        %1530 = vrot.lane.b32.xlu0 %v931, 112
        %v1531 = vpop.permute.xlu0 %1530
        %1532 = vrot.lane.b32.xlu0 %v933, 112
        %v1533 = vpop.permute.xlu0 %1532
        %1534 = vrot.lane.b32.xlu0 %v935, 112
        %v1535 = vpop.permute.xlu0 %1534
        %1536 = vrot.lane.b32.xlu0 %v937, 112
        %v1537 = vpop.permute.xlu0 %1536
        %1538 = vrot.lane.b32.xlu0 %v939, 112
        %v1539 = vpop.permute.xlu0 %1538
        %1540 = vrot.lane.b32.xlu0 %v941, 112
        %v1541 = vpop.permute.xlu0 %1540
        %1542 = vrot.lane.b32.xlu0 %v943, 112
        %v1543 = vpop.permute.xlu0 %1542
        %v1544 = vsel %vm547, %v1513, %v1529
        %v1545 = vsel %vm547, %v1515, %v1531
        %v1546 = vsel %vm547, %v1517, %v1533
        %v1547 = vsel %vm547, %v1519, %v1535
        %v1548 = vsel %vm547, %v1521, %v1537
        %v1549 = vsel %vm547, %v1523, %v1539
        %v1550 = vsel %vm547, %v1525, %v1541
        %v1551 = vsel %vm547, %v1527, %v1543
        %v1552 = vsel %vm547, %v1529, %v1513
        %v1553 = vsel %vm547, %v1531, %v1515
        %v1554 = vsel %vm547, %v1533, %v1517
        %v1555 = vsel %vm547, %v1535, %v1519
        %v1556 = vsel %vm547, %v1537, %v1521
        %v1557 = vsel %vm547, %v1539, %v1523
        %v1558 = vsel %vm547, %v1541, %v1525
        %v1559 = vsel %vm547, %v1543, %v1527
        %v1560 = vld [vmem:[%s550] ss:$8 sm:$0x3]
        %v1562 = vlaneseq
        %v1563 = vshrl.u32 %v1562, 7
        %v1564 = vsub.s32 0, %v1563
        %v1565 = vrot.slane %v1560, %v1564
        %v1566 = vlaneseq
        %v1567 = vshrl.u32 %v1566, 7
        %v1568 = vsub.s32 1, %v1567
        %v1569 = vrot.slane %v1560, %v1568
        %v1572 = vmul.f32 %v1544, %v1565
        %v1573 = vmul.f32 %v1552, %v1569
        %v1574 = vmul.f32 %v1545, %v1565
        %v1575 = vmul.f32 %v1553, %v1569
        %v1576 = vmul.f32 %v1546, %v1565
        %v1577 = vmul.f32 %v1554, %v1569
        %v1578 = vmul.f32 %v1547, %v1565
        %v1579 = vmul.f32 %v1555, %v1569
        %v1580 = vmul.f32 %v1548, %v1565
        %v1581 = vmul.f32 %v1556, %v1569
        %v1582 = vmul.f32 %v1549, %v1565
        %v1583 = vmul.f32 %v1557, %v1569
        %v1584 = vmul.f32 %v1550, %v1565
        %v1585 = vmul.f32 %v1558, %v1569
        %v1586 = vmul.f32 %v1551, %v1565
        %v1587 = vmul.f32 %v1559, %v1569
        %v1588 = vpack.c.bf16 %v1574, %v1572
        %v1589 = vpack.c.bf16 %v1575, %v1573
        %v1590 = vpack.c.bf16 %v1578, %v1576
        %v1591 = vpack.c.bf16 %v1579, %v1577
        %v1592 = vpack.c.bf16 %v1582, %v1580
        %v1593 = vpack.c.bf16 %v1583, %v1581
        %v1594 = vpack.c.bf16 %v1586, %v1584
        %v1595 = vpack.c.bf16 %v1587, %v1585
        %1596 = vst [vmem:[#allocation3 + $0x1c0] sm:$0xff] %v1588
        %1597 = vst [vmem:[#allocation3 + $0x1c8] sm:$0xff] %v1589
        %1598 = vst [vmem:[#allocation3 + $0x1d0] sm:$0xff] %v1590
        %1599 = vst [vmem:[#allocation3 + $0x1d8] sm:$0xff] %v1591
        %1600 = vst [vmem:[#allocation3 + $0x1e0] sm:$0xff] %v1592
        %1601 = vst [vmem:[#allocation3 + $0x1e8] sm:$0xff] %v1593
        %1602 = vst [vmem:[#allocation3 + $0x1f0] sm:$0xff] %v1594
        %1603 = vst [vmem:[#allocation3 + $0x1f8] sm:$0xff] %v1595
        %1604 = vrot.lane.b32.xlu0 %v928, 111
        %v1605 = vpop.permute.xlu0 %1604
        %1606 = vrot.lane.b32.xlu0 %v930, 111
        %v1607 = vpop.permute.xlu0 %1606
        %1608 = vrot.lane.b32.xlu0 %v932, 111
        %v1609 = vpop.permute.xlu0 %1608
        %1610 = vrot.lane.b32.xlu0 %v934, 111
        %v1611 = vpop.permute.xlu0 %1610
        %1612 = vrot.lane.b32.xlu0 %v936, 111
        %v1613 = vpop.permute.xlu0 %1612
        %1614 = vrot.lane.b32.xlu0 %v938, 111
        %v1615 = vpop.permute.xlu0 %1614
        %1616 = vrot.lane.b32.xlu0 %v940, 111
        %v1617 = vpop.permute.xlu0 %1616
        %1618 = vrot.lane.b32.xlu0 %v942, 111
        %v1619 = vpop.permute.xlu0 %1618
        %1620 = vrot.lane.b32.xlu0 %v929, 111
        %v1621 = vpop.permute.xlu0 %1620
        %1622 = vrot.lane.b32.xlu0 %v931, 111
        %v1623 = vpop.permute.xlu0 %1622
        %1624 = vrot.lane.b32.xlu0 %v933, 111
        %v1625 = vpop.permute.xlu0 %1624
        %1626 = vrot.lane.b32.xlu0 %v935, 111
        %v1627 = vpop.permute.xlu0 %1626
        %1628 = vrot.lane.b32.xlu0 %v937, 111
        %v1629 = vpop.permute.xlu0 %1628
        %1630 = vrot.lane.b32.xlu0 %v939, 111
        %v1631 = vpop.permute.xlu0 %1630
        %1632 = vrot.lane.b32.xlu0 %v941, 111
        %v1633 = vpop.permute.xlu0 %1632
        %1634 = vrot.lane.b32.xlu0 %v943, 111
        %v1635 = vpop.permute.xlu0 %1634
        %v1636 = vsel %vm569, %v1605, %v1621
        %v1637 = vsel %vm569, %v1607, %v1623
        %v1638 = vsel %vm569, %v1609, %v1625
        %v1639 = vsel %vm569, %v1611, %v1627
        %v1640 = vsel %vm569, %v1613, %v1629
        %v1641 = vsel %vm569, %v1615, %v1631
        %v1642 = vsel %vm569, %v1617, %v1633
        %v1643 = vsel %vm569, %v1619, %v1635
        %v1644 = vsel %vm569, %v1621, %v1605
        %v1645 = vsel %vm569, %v1623, %v1607
        %v1646 = vsel %vm569, %v1625, %v1609
        %v1647 = vsel %vm569, %v1627, %v1611
        %v1648 = vsel %vm569, %v1629, %v1613
        %v1649 = vsel %vm569, %v1631, %v1615
        %v1650 = vsel %vm569, %v1633, %v1617
        %v1651 = vsel %vm569, %v1635, %v1619
        %v1652 = vld [vmem:[%s572] ss:$8 sm:$0x3]
        %v1654 = vlaneseq
        %v1655 = vshrl.u32 %v1654, 7
        %v1656 = vsub.s32 0, %v1655
        %v1657 = vrot.slane %v1652, %v1656
        %v1658 = vlaneseq
        %v1659 = vshrl.u32 %v1658, 7
        %v1660 = vsub.s32 1, %v1659
        %v1661 = vrot.slane %v1652, %v1660
        %v1664 = vmul.f32 %v1636, %v1657
        %v1665 = vmul.f32 %v1644, %v1661
        %v1666 = vmul.f32 %v1637, %v1657
        %v1667 = vmul.f32 %v1645, %v1661
        %v1668 = vmul.f32 %v1638, %v1657
        %v1669 = vmul.f32 %v1646, %v1661
        %v1670 = vmul.f32 %v1639, %v1657
        %v1671 = vmul.f32 %v1647, %v1661
        %v1672 = vmul.f32 %v1640, %v1657
        %v1673 = vmul.f32 %v1648, %v1661
        %v1674 = vmul.f32 %v1641, %v1657
        %v1675 = vmul.f32 %v1649, %v1661
        %v1676 = vmul.f32 %v1642, %v1657
        %v1677 = vmul.f32 %v1650, %v1661
        %v1678 = vmul.f32 %v1643, %v1657
        %v1679 = vmul.f32 %v1651, %v1661
        %v1680 = vpack.c.bf16 %v1666, %v1664
        %v1681 = vpack.c.bf16 %v1667, %v1665
        %v1682 = vpack.c.bf16 %v1670, %v1668
        %v1683 = vpack.c.bf16 %v1671, %v1669
        %v1684 = vpack.c.bf16 %v1674, %v1672
        %v1685 = vpack.c.bf16 %v1675, %v1673
        %v1686 = vpack.c.bf16 %v1678, %v1676
        %v1687 = vpack.c.bf16 %v1679, %v1677
        %1688 = vst [vmem:[#allocation3 + $0x200] sm:$0xff] %v1680
        %1689 = vst [vmem:[#allocation3 + $0x208] sm:$0xff] %v1681
        %1690 = vst [vmem:[#allocation3 + $0x210] sm:$0xff] %v1682
        %1691 = vst [vmem:[#allocation3 + $0x218] sm:$0xff] %v1683
        %1692 = vst [vmem:[#allocation3 + $0x220] sm:$0xff] %v1684
        %1693 = vst [vmem:[#allocation3 + $0x228] sm:$0xff] %v1685
        %1694 = vst [vmem:[#allocation3 + $0x230] sm:$0xff] %v1686
        %1695 = vst [vmem:[#allocation3 + $0x238] sm:$0xff] %v1687
        %v1696 = vld [vmem:[#allocation3] sm:$0xff]
        %v1697 = vld [vmem:[#allocation3 + $0x8] sm:$0xff]
        %v1698 = vld [vmem:[#allocation3 + $0x10] sm:$0xff]
        %v1699 = vld [vmem:[#allocation3 + $0x18] sm:$0xff]
        %v1700 = vld [vmem:[#allocation3 + $0x20] sm:$0xff]
        %v1701 = vld [vmem:[#allocation3 + $0x28] sm:$0xff]
        %v1702 = vld [vmem:[#allocation3 + $0x30] sm:$0xff]
        %v1703 = vld [vmem:[#allocation3 + $0x38] sm:$0xff]
        %v1704 = vld [vmem:[#allocation3 + $0x40] sm:$0xff]
        %v1705 = vld [vmem:[#allocation3 + $0x48] sm:$0xff]
        %v1706 = vld [vmem:[#allocation3 + $0x50] sm:$0xff]
        %v1707 = vld [vmem:[#allocation3 + $0x58] sm:$0xff]
        %v1708 = vld [vmem:[#allocation3 + $0x60] sm:$0xff]
        %v1709 = vld [vmem:[#allocation3 + $0x68] sm:$0xff]
        %v1710 = vld [vmem:[#allocation3 + $0x70] sm:$0xff]
        %v1711 = vld [vmem:[#allocation3 + $0x78] sm:$0xff]
        %v1712 = vld [vmem:[#allocation3 + $0x80] sm:$0xff]
        %v1713 = vld [vmem:[#allocation3 + $0x88] sm:$0xff]
        %v1714 = vld [vmem:[#allocation3 + $0x90] sm:$0xff]
        %v1715 = vld [vmem:[#allocation3 + $0x98] sm:$0xff]
        %v1716 = vld [vmem:[#allocation3 + $0xa0] sm:$0xff]
        %v1717 = vld [vmem:[#allocation3 + $0xa8] sm:$0xff]
        %v1718 = vld [vmem:[#allocation3 + $0xb0] sm:$0xff]
        %v1719 = vld [vmem:[#allocation3 + $0xb8] sm:$0xff]
        %v1720 = vld [vmem:[#allocation3 + $0xc0] sm:$0xff]
        %v1721 = vld [vmem:[#allocation3 + $0xc8] sm:$0xff]
        %v1722 = vld [vmem:[#allocation3 + $0xd0] sm:$0xff]
        %v1723 = vld [vmem:[#allocation3 + $0xd8] sm:$0xff]
        %v1724 = vld [vmem:[#allocation3 + $0xe0] sm:$0xff]
        %v1725 = vld [vmem:[#allocation3 + $0xe8] sm:$0xff]
        %v1726 = vld [vmem:[#allocation3 + $0xf0] sm:$0xff]
        %v1727 = vld [vmem:[#allocation3 + $0xf8] sm:$0xff]
        %v1728 = vld [vmem:[#allocation3 + $0x100] sm:$0xff]
        %v1729 = vld [vmem:[#allocation3 + $0x108] sm:$0xff]
        %v1730 = vld [vmem:[#allocation3 + $0x110] sm:$0xff]
        %v1731 = vld [vmem:[#allocation3 + $0x118] sm:$0xff]
        %v1732 = vld [vmem:[#allocation3 + $0x120] sm:$0xff]
        %v1733 = vld [vmem:[#allocation3 + $0x128] sm:$0xff]
        %v1734 = vld [vmem:[#allocation3 + $0x130] sm:$0xff]
        %v1735 = vld [vmem:[#allocation3 + $0x138] sm:$0xff]
        %v1736 = vld [vmem:[#allocation3 + $0x140] sm:$0xff]
        %v1737 = vld [vmem:[#allocation3 + $0x148] sm:$0xff]
        %v1738 = vld [vmem:[#allocation3 + $0x150] sm:$0xff]
        %v1739 = vld [vmem:[#allocation3 + $0x158] sm:$0xff]
        %v1740 = vld [vmem:[#allocation3 + $0x160] sm:$0xff]
        %v1741 = vld [vmem:[#allocation3 + $0x168] sm:$0xff]
        %v1742 = vld [vmem:[#allocation3 + $0x170] sm:$0xff]
        %v1743 = vld [vmem:[#allocation3 + $0x178] sm:$0xff]
        %v1744 = vld [vmem:[#allocation3 + $0x180] sm:$0xff]
        %v1745 = vld [vmem:[#allocation3 + $0x188] sm:$0xff]
        %v1746 = vld [vmem:[#allocation3 + $0x190] sm:$0xff]
        %v1747 = vld [vmem:[#allocation3 + $0x198] sm:$0xff]
        %v1748 = vld [vmem:[#allocation3 + $0x1a0] sm:$0xff]
        %v1749 = vld [vmem:[#allocation3 + $0x1a8] sm:$0xff]
        %v1750 = vld [vmem:[#allocation3 + $0x1b0] sm:$0xff]
        %v1751 = vld [vmem:[#allocation3 + $0x1b8] sm:$0xff]
        %v1752 = vld [vmem:[#allocation3 + $0x1c0] sm:$0xff]
        %v1753 = vld [vmem:[#allocation3 + $0x1c8] sm:$0xff]
        %v1754 = vld [vmem:[#allocation3 + $0x1d0] sm:$0xff]
        %v1755 = vld [vmem:[#allocation3 + $0x1d8] sm:$0xff]
        %v1756 = vld [vmem:[#allocation3 + $0x1e0] sm:$0xff]
        %v1757 = vld [vmem:[#allocation3 + $0x1e8] sm:$0xff]
        %v1758 = vld [vmem:[#allocation3 + $0x1f0] sm:$0xff]
        %v1759 = vld [vmem:[#allocation3 + $0x1f8] sm:$0xff]
        %v1760 = vld [vmem:[#allocation3 + $0x200] sm:$0xff]
        %v1761 = vld [vmem:[#allocation3 + $0x208] sm:$0xff]
        %v1762 = vld [vmem:[#allocation3 + $0x210] sm:$0xff]
        %v1763 = vld [vmem:[#allocation3 + $0x218] sm:$0xff]
        %v1764 = vld [vmem:[#allocation3 + $0x220] sm:$0xff]
        %v1765 = vld [vmem:[#allocation3 + $0x228] sm:$0xff]
        %v1766 = vld [vmem:[#allocation3 + $0x230] sm:$0xff]
        %v1767 = vld [vmem:[#allocation3 + $0x238] sm:$0xff]
        %v1768 = vld [vmem:[%s2] sm:$0xff]
        %v1769 = vld [vmem:[%s2 + $0x8] sm:$0xff]
        %v1770 = vld [vmem:[%s2 + $0x10] sm:$0xf]
        %v1771 = vld [vmem:[%s2 + $0x14] sm:$0xff]
        %v1772 = vld [vmem:[%s2 + $0x1c] sm:$0xff]
        %v1773 = vld [vmem:[%s2 + $0x24] sm:$0xf]
        %v1774 = vld [vmem:[%s2 + $0x28] sm:$0xff]
        %v1775 = vld [vmem:[%s2 + $0x30] sm:$0xff]
        %v1776 = vld [vmem:[%s2 + $0x38] sm:$0xf]
        %v1777 = vld [vmem:[%s2 + $0x3c] sm:$0xff]
        %v1778 = vld [vmem:[%s2 + $0x44] sm:$0xff]
        %v1779 = vld [vmem:[%s2 + $0x4c] sm:$0xf]
        %v1780 = vld [vmem:[%s6] sm:$0xff]
        %v1781 = vld [vmem:[%s6 + $0x8] sm:$0xff]
        %v1782 = vld [vmem:[%s6 + $0x10] sm:$0xff]
        %v1783 = vld [vmem:[%s6 + $0x18] sm:$0xff]
        %1785 = vset.pattern.permute.xlu0 0
        %1786 = vperm.xlu0 %1785, %v1780
        %v1787 = vpop.permute.xlu0 %1786
        %1790 = vset.pattern.permute.xlu0 0
        %1791 = vperm.xlu0 %1790, %v1781
        %v1792 = vpop.permute.xlu0 %1791
        %1795 = vset.pattern.permute.xlu0 0
        %1796 = vperm.xlu0 %1795, %v1782
        %v1797 = vpop.permute.xlu0 %1796
        %1800 = vset.pattern.permute.xlu0 0
        %1801 = vperm.xlu0 %1800, %v1783
        %v1802 = vpop.permute.xlu0 %1801
        %v1816 = vunpack.c.l.b16 %v1768
        %v1817 = vunpack.c.h.b16 %v1768
        %v1818 = vunpack.c.l.b16 %v1769
        %v1819 = vunpack.c.h.b16 %v1769
        %v1820 = vunpack.c.l.b16 %v1770
        %v1821 = vunpack.c.l.b16 %v1771
        %v1822 = vunpack.c.h.b16 %v1771
        %v1823 = vunpack.c.l.b16 %v1772
        %v1824 = vunpack.c.h.b16 %v1772
        %v1825 = vunpack.c.l.b16 %v1773
        %v1826 = vunpack.c.l.b16 %v1774
        %v1827 = vunpack.c.h.b16 %v1774
        %v1828 = vunpack.c.l.b16 %v1775
        %v1829 = vunpack.c.h.b16 %v1775
        %v1830 = vunpack.c.l.b16 %v1776
        %v1831 = vunpack.c.l.b16 %v1777
        %v1832 = vunpack.c.h.b16 %v1777
        %v1833 = vunpack.c.l.b16 %v1778
        %v1834 = vunpack.c.h.b16 %v1778
        %v1835 = vunpack.c.l.b16 %v1779
        %v1836 = vpack.c.b16 %v1821, %v1816
        %v1837 = vpack.c.b16 %v1822, %v1817
        %v1838 = vpack.c.b16 %v1823, %v1818
        %v1839 = vpack.c.b16 %v1824, %v1819
        %v1840 = vpack.c.b16 %v1825, %v1820
        %v1841 = vpack.c.b16 %v1831, %v1826
        %v1842 = vpack.c.b16 %v1832, %v1827
        %v1843 = vpack.c.b16 %v1833, %v1828
        %v1844 = vpack.c.b16 %v1834, %v1829
        %v1845 = vpack.c.b16 %v1835, %v1830
        %vm1854 = vcmask 523264
        %v1856 = vsel %vm1854, %v1840, 0
        %v1859 = vsel %vm1854, %v1845, 0
        %1861 = vmatprep.subr.bf16.mxu0 %v1697
        %1862 = vmatpush1.bf16.msra.mxu0 %v1696
        %1863 = vmatprep.subr.bf16.mxu0 %v1699
        %1864 = vmatpush1.bf16.msra.mxu0 %v1698
        %1865 = vmatprep.subr.bf16.mxu0 %v1701
        %1866 = vmatpush1.bf16.msra.mxu0 %v1700
        %1867 = vmatprep.subr.bf16.mxu0 %v1703
        %1868 = vmatpush1.bf16.msra.mxu0 %v1702
        %1869 = vmatprep.subr.bf16.mxu0 %v1705
        %1870 = vmatpush1.bf16.msra.mxu0 %v1704
        %1871 = vmatprep.subr.bf16.mxu0 %v1707
        %1872 = vmatpush1.bf16.msra.mxu0 %v1706
        %1873 = vmatprep.subr.bf16.mxu0 %v1709
        %1874 = vmatpush1.bf16.msra.mxu0 %v1708
        %1875 = vmatprep.subr.bf16.mxu0 %v1711
        %1876 = vmatpush1.bf16.msra.mxu0 %v1710
        %1877 = vmatprep.subr.bf16.mxu0 %v1713
        %1878 = vmatpush1.bf16.msra.mxu0 %v1712
        %1879 = vmatprep.subr.bf16.mxu0 %v1715
        %1880 = vmatpush1.bf16.msra.mxu0 %v1714
        %1881 = vmatprep.subr.bf16.mxu0 %v1717
        %1882 = vmatpush1.bf16.msra.mxu0 %v1716
        %1883 = vmatprep.subr.bf16.mxu0 %v1719
        %1884 = vmatpush1.bf16.msra.mxu0 %v1718
        %1885 = vmatprep.subr.bf16.mxu0 %v1721
        %1886 = vmatpush1.bf16.msra.mxu0 %v1720
        %1887 = vmatprep.subr.bf16.mxu0 %v1723
        %1888 = vmatpush1.bf16.msra.mxu0 %v1722
        %1889 = vmatprep.subr.bf16.mxu0 %v1725
        %1890 = vmatpush1.bf16.msra.mxu0 %v1724
        %1891 = vmatprep.subr.bf16.mxu0 %v1727
        %1892 = vmatpush1.bf16.msra.mxu0 %v1726
        %1893 = vmatprep.mubr.bf16.mxu0 %v1837
        %1894 = vmatmul.mubr.bf16.gmra.mrb[0].mxu0 %v1836
        %v1895 = vpop.f32.mrb[0].mxu0
        %v1896 = vadd.f32 %v1787, %v1895
        %v1897 = vpop.f32.mrb[0].mxu0
        %v1898 = vadd.f32 %v1787, %v1897
        %v1899 = vpop.f32.mrb[0].mxu0
        %v1900 = vadd.f32 %v1792, %v1899
        %v1901 = vpop.f32.mrb[0].mxu0
        %v1902 = vadd.f32 %v1792, %v1901
        %1903 = vmatprep.mubr.bf16.mxu0 %v1842
        %1904 = vmatmul.mubr.bf16.gmra.mrb[0].mxu0 %v1841
        %v1905 = vpop.f32.mrb[0].mxu0
        %v1906 = vadd.f32 %v1797, %v1905
        %v1907 = vpop.f32.mrb[0].mxu0
        %v1908 = vadd.f32 %v1797, %v1907
        %v1909 = vpop.f32.mrb[0].mxu0
        %v1910 = vadd.f32 %v1802, %v1909
        %v1911 = vpop.f32.mrb[0].mxu0
        %v1912 = vadd.f32 %v1802, %v1911
        %1913 = vdwg.mxu0
        %1914 = vmatprep.subr.bf16.mxu0 %v1729
        %1915 = vmatpush1.bf16.msra.mxu0 %v1728
        %1916 = vmatprep.subr.bf16.mxu0 %v1731
        %1917 = vmatpush1.bf16.msra.mxu0 %v1730
        %1918 = vmatprep.subr.bf16.mxu0 %v1733
        %1919 = vmatpush1.bf16.msra.mxu0 %v1732
        %1920 = vmatprep.subr.bf16.mxu0 %v1735
        %1921 = vmatpush1.bf16.msra.mxu0 %v1734
        %1922 = vmatprep.subr.bf16.mxu0 %v1737
        %1923 = vmatpush1.bf16.msra.mxu0 %v1736
        %1924 = vmatprep.subr.bf16.mxu0 %v1739
        %1925 = vmatpush1.bf16.msra.mxu0 %v1738
        %1926 = vmatprep.subr.bf16.mxu0 %v1741
        %1927 = vmatpush1.bf16.msra.mxu0 %v1740
        %1928 = vmatprep.subr.bf16.mxu0 %v1743
        %1929 = vmatpush1.bf16.msra.mxu0 %v1742
        %1930 = vmatprep.subr.bf16.mxu0 %v1745
        %1931 = vmatpush1.bf16.msra.mxu0 %v1744
        %1932 = vmatprep.subr.bf16.mxu0 %v1747
        %1933 = vmatpush1.bf16.msra.mxu0 %v1746
        %1934 = vmatprep.subr.bf16.mxu0 %v1749
        %1935 = vmatpush1.bf16.msra.mxu0 %v1748
        %1936 = vmatprep.subr.bf16.mxu0 %v1751
        %1937 = vmatpush1.bf16.msra.mxu0 %v1750
        %1938 = vmatprep.subr.bf16.mxu0 %v1753
        %1939 = vmatpush1.bf16.msra.mxu0 %v1752
        %1940 = vmatprep.subr.bf16.mxu0 %v1755
        %1941 = vmatpush1.bf16.msra.mxu0 %v1754
        %1942 = vmatprep.subr.bf16.mxu0 %v1757
        %1943 = vmatpush1.bf16.msra.mxu0 %v1756
        %1944 = vmatprep.subr.bf16.mxu0 %v1759
        %1945 = vmatpush1.bf16.msra.mxu0 %v1758
        %1946 = vmatprep.mubr.bf16.mxu0 %v1839
        %1947 = vmatmul.mubr.bf16.gmra.mrb[0].mxu0 %v1838
        %v1948 = vpop.f32.mrb[0].mxu0
        %v1949 = vadd.f32 %v1896, %v1948
        %v1950 = vpop.f32.mrb[0].mxu0
        %v1951 = vadd.f32 %v1898, %v1950
        %v1952 = vpop.f32.mrb[0].mxu0
        %v1953 = vadd.f32 %v1900, %v1952
        %v1954 = vpop.f32.mrb[0].mxu0
        %v1955 = vadd.f32 %v1902, %v1954
        %1956 = vmatprep.mubr.bf16.mxu0 %v1844
        %1957 = vmatmul.mubr.bf16.gmra.mrb[0].mxu0 %v1843
        %v1958 = vpop.f32.mrb[0].mxu0
        %v1959 = vadd.f32 %v1906, %v1958
        %v1960 = vpop.f32.mrb[0].mxu0
        %v1961 = vadd.f32 %v1908, %v1960
        %v1962 = vpop.f32.mrb[0].mxu0
        %v1963 = vadd.f32 %v1910, %v1962
        %v1964 = vpop.f32.mrb[0].mxu0
        %v1965 = vadd.f32 %v1912, %v1964
        %1966 = vdwg.mxu0
        %1967 = vmatprep.subr.bf16.mxu0 %v1761
        %1968 = vmatpush1.bf16.msra.mxu0 %v1760
        %1969 = vmatprep.subr.bf16.mxu0 %v1763
        %1970 = vmatpush1.bf16.msra.mxu0 %v1762
        %1971 = vmatprep.subr.bf16.mxu0 %v1765
        %1972 = vmatpush1.bf16.msra.mxu0 %v1764
        %1973 = vmatprep.subr.bf16.mxu0 %v1767
        %1974 = vmatpush1.bf16.msra.mxu0 %v1766
        %1975 = vmatprep.subr.bf16.mxu0 0
        %1976 = vmatpush1.bf16.msra.mxu0 0
        %1977 = vmatprep.subr.bf16.mxu0 0
        %1978 = vmatpush1.bf16.msra.mxu0 0
        %1979 = vmatprep.subr.bf16.mxu0 0
        %1980 = vmatpush1.bf16.msra.mxu0 0
        %1981 = vmatprep.subr.bf16.mxu0 0
        %1982 = vmatpush1.bf16.msra.mxu0 0
        %1983 = vmatprep.subr.bf16.mxu0 0
        %1984 = vmatpush1.bf16.msra.mxu0 0
        %1985 = vmatprep.subr.bf16.mxu0 0
        %1986 = vmatpush1.bf16.msra.mxu0 0
        %1987 = vmatprep.subr.bf16.mxu0 0
        %1988 = vmatpush1.bf16.msra.mxu0 0
        %1989 = vmatprep.subr.bf16.mxu0 0
        %1990 = vmatpush1.bf16.msra.mxu0 0
        %1991 = vmatprep.subr.bf16.mxu0 0
        %1992 = vmatpush1.bf16.msra.mxu0 0
        %1993 = vmatprep.subr.bf16.mxu0 0
        %1994 = vmatpush1.bf16.msra.mxu0 0
        %1995 = vmatprep.subr.bf16.mxu0 0
        %1996 = vmatpush1.bf16.msra.mxu0 0
        %1997 = vmatprep.subr.bf16.mxu0 0
        %1998 = vmatpush1.bf16.msra.mxu0 0
        %1999 = vmatprep.mubr.bf16.mxu0 0
        %2000 = vmatmul.mubr.bf16.gmra.mrb[0].mxu0 %v1856
        %v2001 = vpop.f32.mrb[0].mxu0
        %v2002 = vadd.f32 %v1949, %v2001
        %v2003 = vpop.f32.mrb[0].mxu0
        %v2004 = vadd.f32 %v1951, %v2003
        %v2005 = vpop.f32.mrb[0].mxu0
        %v2006 = vadd.f32 %v1953, %v2005
        %v2007 = vpop.f32.mrb[0].mxu0
        %v2008 = vadd.f32 %v1955, %v2007
        %2009 = vmatprep.mubr.bf16.mxu0 0
        %2010 = vmatmul.mubr.bf16.gmra.mrb[0].mxu0 %v1859
        %v2011 = vpop.f32.mrb[0].mxu0
        %v2012 = vadd.f32 %v1959, %v2011
        %v2013 = vpop.f32.mrb[0].mxu0
        %v2014 = vadd.f32 %v1961, %v2013
        %v2015 = vpop.f32.mrb[0].mxu0
        %v2016 = vadd.f32 %v1963, %v2015
        %v2017 = vpop.f32.mrb[0].mxu0
        %v2018 = vadd.f32 %v1965, %v2017
        %2019 = vdwg.mxu0
        %vm2020 = vcmp.gt.f32.partialorder %v2002, 0.0
        %vm2021 = vcmp.gt.f32.partialorder %v2004, 0.0
        %vm2022 = vcmp.gt.f32.partialorder %v2006, 0.0
        %vm2023 = vcmp.gt.f32.partialorder %v2008, 0.0
        %vm2024 = vcmp.gt.f32.partialorder %v2012, 0.0
        %vm2025 = vcmp.gt.f32.partialorder %v2014, 0.0
        %vm2026 = vcmp.gt.f32.partialorder %v2016, 0.0
        %vm2027 = vcmp.gt.f32.partialorder %v2018, 0.0
        %v2028 = vmin.f32 %v2002, 0.0
        %v2029 = vmin.f32 %v2004, 0.0
        %v2030 = vmin.f32 %v2006, 0.0
        %v2031 = vmin.f32 %v2008, 0.0
        %v2032 = vmin.f32 %v2012, 0.0
        %v2033 = vmin.f32 %v2014, 0.0
        %v2034 = vmin.f32 %v2016, 0.0
        %v2035 = vmin.f32 %v2018, 0.0
        %v2036 = vmul.f32 %v2028, 1.442695
        %v2037 = vpow.pop %v2036
        %v2038 = vmul.f32 %v2029, 1.442695
        %v2039 = vpow.pop %v2038
        %v2040 = vmul.f32 %v2030, 1.442695
        %v2041 = vpow.pop %v2040
        %v2042 = vmul.f32 %v2031, 1.442695
        %v2043 = vpow.pop %v2042
        %v2044 = vmul.f32 %v2032, 1.442695
        %v2045 = vpow.pop %v2044
        %v2046 = vmul.f32 %v2033, 1.442695
        %v2047 = vpow.pop %v2046
        %v2048 = vmul.f32 %v2034, 1.442695
        %v2049 = vpow.pop %v2048
        %v2050 = vmul.f32 %v2035, 1.442695
        %v2051 = vpow.pop %v2050
        %v2052 = vsub.f32 %v2037, 1.0
        %v2053 = vsub.f32 %v2039, 1.0
        %v2054 = vsub.f32 %v2041, 1.0
        %v2055 = vsub.f32 %v2043, 1.0
        %v2056 = vsub.f32 %v2045, 1.0
        %v2057 = vsub.f32 %v2047, 1.0
        %v2058 = vsub.f32 %v2049, 1.0
        %v2059 = vsub.f32 %v2051, 1.0
        %v2060 = vsel %vm2020, %v2002, %v2052
        %v2061 = vsel %vm2021, %v2004, %v2053
        %v2062 = vsel %vm2022, %v2006, %v2054
        %v2063 = vsel %vm2023, %v2008, %v2055
        %v2064 = vsel %vm2024, %v2012, %v2056
        %v2065 = vsel %vm2025, %v2014, %v2057
        %v2066 = vsel %vm2026, %v2016, %v2058
        %v2067 = vsel %vm2027, %v2018, %v2059
        %2068 = vst [vmem:[#allocation2] sm:$0xff] %v2060
        %2069 = vst [vmem:[#allocation2 + $0x8] sm:$0xff] %v2061
        %2070 = vst [vmem:[#allocation2 + $0x10] sm:$0xff] %v2062
        %2071 = vst [vmem:[#allocation2 + $0x18] sm:$0xff] %v2063
        %2072 = vst [vmem:[#allocation2 + $0x20] sm:$0xff] %v2064
        %2073 = vst [vmem:[#allocation2 + $0x28] sm:$0xff] %v2065
        %2074 = vst [vmem:[#allocation2 + $0x30] sm:$0xff] %v2066
        %2075 = vst [vmem:[#allocation2 + $0x38] sm:$0xff] %v2067
        %v2076 = vld [vmem:[#allocation2] sm:$0xff]
        %v2077 = vld [vmem:[#allocation2 + $0x8] sm:$0xff]
        %v2078 = vld [vmem:[#allocation2 + $0x10] sm:$0xff]
        %v2079 = vld [vmem:[#allocation2 + $0x18] sm:$0xff]
        %v2080 = vld [vmem:[#allocation2 + $0x20] sm:$0xff]
        %v2081 = vld [vmem:[#allocation2 + $0x28] sm:$0xff]
        %v2082 = vld [vmem:[#allocation2 + $0x30] sm:$0xff]
        %v2083 = vld [vmem:[#allocation2 + $0x38] sm:$0xff]
        %2084 = vrot.lane.b32.xlu0 %v2076, 17
        %v2085 = vpop.permute.xlu0 %2084
        %2086 = vrot.lane.b32.xlu0 %v2078, 17
        %v2087 = vpop.permute.xlu0 %2086
        %2088 = vrot.lane.b32.xlu0 %v2080, 17
        %v2089 = vpop.permute.xlu0 %2088
        %2090 = vrot.lane.b32.xlu0 %v2082, 17
        %v2091 = vpop.permute.xlu0 %2090
        %2092 = vrot.lane.b32.xlu0 %v2077, 17
        %v2093 = vpop.permute.xlu0 %2092
        %2094 = vrot.lane.b32.xlu0 %v2079, 17
        %v2095 = vpop.permute.xlu0 %2094
        %2096 = vrot.lane.b32.xlu0 %v2081, 17
        %v2097 = vpop.permute.xlu0 %2096
        %2098 = vrot.lane.b32.xlu0 %v2083, 17
        %v2099 = vpop.permute.xlu0 %2098
        %v2100 = vsel %vm416, %v2085, %v2093
        %v2101 = vsel %vm416, %v2087, %v2095
        %v2102 = vsel %vm416, %v2089, %v2097
        %v2103 = vsel %vm416, %v2091, %v2099
        %v2104 = vsel %vm416, %v2093, %v2085
        %v2105 = vsel %vm416, %v2095, %v2087
        %v2106 = vsel %vm416, %v2097, %v2089
        %v2107 = vsel %vm416, %v2099, %v2091
        %v2108 = vld [vmem:[%s9] ss:$8 sm:$0x3]
        %v2110 = vlaneseq
        %v2111 = vshrl.u32 %v2110, 7
        %v2112 = vsub.s32 0, %v2111
        %v2113 = vrot.slane %v2108, %v2112
        %v2114 = vlaneseq
        %v2115 = vshrl.u32 %v2114, 7
        %v2116 = vsub.s32 1, %v2115
        %v2117 = vrot.slane %v2108, %v2116
        %v2120 = vmul.f32 %v2104, %v2113
        %v2121 = vmul.f32 %v2100, %v2117
        %v2122 = vmul.f32 %v2105, %v2113
        %v2123 = vmul.f32 %v2101, %v2117
        %v2124 = vmul.f32 %v2106, %v2113
        %v2125 = vmul.f32 %v2102, %v2117
        %v2126 = vmul.f32 %v2107, %v2113
        %v2127 = vmul.f32 %v2103, %v2117
        %v2128 = vpack.c.bf16 %v2122, %v2120
        %v2129 = vpack.c.bf16 %v2123, %v2121
        %v2130 = vpack.c.bf16 %v2126, %v2124
        %v2131 = vpack.c.bf16 %v2127, %v2125
        %2132 = vst [vmem:[#allocation3] sm:$0xff] %v2128
        %2133 = vst [vmem:[#allocation3 + $0x8] sm:$0xff] %v2129
        %2134 = vst [vmem:[#allocation3 + $0x10] sm:$0xff] %v2130
        %2135 = vst [vmem:[#allocation3 + $0x18] sm:$0xff] %v2131
        %2136 = vrot.lane.b32.xlu0 %v2076, 16
        %v2137 = vpop.permute.xlu0 %2136
        %2138 = vrot.lane.b32.xlu0 %v2078, 16
        %v2139 = vpop.permute.xlu0 %2138
        %2140 = vrot.lane.b32.xlu0 %v2080, 16
        %v2141 = vpop.permute.xlu0 %2140
        %2142 = vrot.lane.b32.xlu0 %v2082, 16
        %v2143 = vpop.permute.xlu0 %2142
        %2144 = vrot.lane.b32.xlu0 %v2077, 16
        %v2145 = vpop.permute.xlu0 %2144
        %2146 = vrot.lane.b32.xlu0 %v2079, 16
        %v2147 = vpop.permute.xlu0 %2146
        %2148 = vrot.lane.b32.xlu0 %v2081, 16
        %v2149 = vpop.permute.xlu0 %2148
        %2150 = vrot.lane.b32.xlu0 %v2083, 16
        %v2151 = vpop.permute.xlu0 %2150
        %v2152 = vsel %vm437, %v2137, %v2145
        %v2153 = vsel %vm437, %v2139, %v2147
        %v2154 = vsel %vm437, %v2141, %v2149
        %v2155 = vsel %vm437, %v2143, %v2151
        %v2156 = vsel %vm437, %v2145, %v2137
        %v2157 = vsel %vm437, %v2147, %v2139
        %v2158 = vsel %vm437, %v2149, %v2141
        %v2159 = vsel %vm437, %v2151, %v2143
        %v2160 = vld [vmem:[%s440] ss:$8 sm:$0x3]
        %v2162 = vlaneseq
        %v2163 = vshrl.u32 %v2162, 7
        %v2164 = vsub.s32 0, %v2163
        %v2165 = vrot.slane %v2160, %v2164
        %v2166 = vlaneseq
        %v2167 = vshrl.u32 %v2166, 7
        %v2168 = vsub.s32 1, %v2167
        %v2169 = vrot.slane %v2160, %v2168
        %v2172 = vmul.f32 %v2156, %v2165
        %v2173 = vmul.f32 %v2152, %v2169
        %v2174 = vmul.f32 %v2157, %v2165
        %v2175 = vmul.f32 %v2153, %v2169
        %v2176 = vmul.f32 %v2158, %v2165
        %v2177 = vmul.f32 %v2154, %v2169
        %v2178 = vmul.f32 %v2159, %v2165
        %v2179 = vmul.f32 %v2155, %v2169
        %v2180 = vpack.c.bf16 %v2174, %v2172
        %v2181 = vpack.c.bf16 %v2175, %v2173
        %v2182 = vpack.c.bf16 %v2178, %v2176
        %v2183 = vpack.c.bf16 %v2179, %v2177
        %2184 = vst [vmem:[#allocation3 + $0x20] sm:$0xff] %v2180
        %2185 = vst [vmem:[#allocation3 + $0x28] sm:$0xff] %v2181
        %2186 = vst [vmem:[#allocation3 + $0x30] sm:$0xff] %v2182
        %2187 = vst [vmem:[#allocation3 + $0x38] sm:$0xff] %v2183
        %2188 = vrot.lane.b32.xlu0 %v2076, 15
        %v2189 = vpop.permute.xlu0 %2188
        %2190 = vrot.lane.b32.xlu0 %v2078, 15
        %v2191 = vpop.permute.xlu0 %2190
        %2192 = vrot.lane.b32.xlu0 %v2080, 15
        %v2193 = vpop.permute.xlu0 %2192
        %2194 = vrot.lane.b32.xlu0 %v2082, 15
        %v2195 = vpop.permute.xlu0 %2194
        %2196 = vrot.lane.b32.xlu0 %v2077, 15
        %v2197 = vpop.permute.xlu0 %2196
        %2198 = vrot.lane.b32.xlu0 %v2079, 15
        %v2199 = vpop.permute.xlu0 %2198
        %2200 = vrot.lane.b32.xlu0 %v2081, 15
        %v2201 = vpop.permute.xlu0 %2200
        %2202 = vrot.lane.b32.xlu0 %v2083, 15
        %v2203 = vpop.permute.xlu0 %2202
        %v2204 = vsel %vm459, %v2189, %v2197
        %v2205 = vsel %vm459, %v2191, %v2199
        %v2206 = vsel %vm459, %v2193, %v2201
        %v2207 = vsel %vm459, %v2195, %v2203
        %v2208 = vsel %vm459, %v2197, %v2189
        %v2209 = vsel %vm459, %v2199, %v2191
        %v2210 = vsel %vm459, %v2201, %v2193
        %v2211 = vsel %vm459, %v2203, %v2195
        %v2212 = vld [vmem:[%s462] ss:$8 sm:$0x3]
        %v2214 = vlaneseq
        %v2215 = vshrl.u32 %v2214, 7
        %v2216 = vsub.s32 0, %v2215
        %v2217 = vrot.slane %v2212, %v2216
        %v2218 = vlaneseq
        %v2219 = vshrl.u32 %v2218, 7
        %v2220 = vsub.s32 1, %v2219
        %v2221 = vrot.slane %v2212, %v2220
        %v2224 = vmul.f32 %v2208, %v2217
        %v2225 = vmul.f32 %v2204, %v2221
        %v2226 = vmul.f32 %v2209, %v2217
        %v2227 = vmul.f32 %v2205, %v2221
        %v2228 = vmul.f32 %v2210, %v2217
        %v2229 = vmul.f32 %v2206, %v2221
        %v2230 = vmul.f32 %v2211, %v2217
        %v2231 = vmul.f32 %v2207, %v2221
        %v2232 = vpack.c.bf16 %v2226, %v2224
        %v2233 = vpack.c.bf16 %v2227, %v2225
        %v2234 = vpack.c.bf16 %v2230, %v2228
        %v2235 = vpack.c.bf16 %v2231, %v2229
        %2236 = vst [vmem:[#allocation3 + $0x40] sm:$0xff] %v2232
        %2237 = vst [vmem:[#allocation3 + $0x48] sm:$0xff] %v2233
        %2238 = vst [vmem:[#allocation3 + $0x50] sm:$0xff] %v2234
        %2239 = vst [vmem:[#allocation3 + $0x58] sm:$0xff] %v2235
        %2240 = vrot.lane.b32.xlu0 %v2076, 1
        %v2241 = vpop.permute.xlu0 %2240
        %2242 = vrot.lane.b32.xlu0 %v2078, 1
        %v2243 = vpop.permute.xlu0 %2242
        %2244 = vrot.lane.b32.xlu0 %v2080, 1
        %v2245 = vpop.permute.xlu0 %2244
        %2246 = vrot.lane.b32.xlu0 %v2082, 1
        %v2247 = vpop.permute.xlu0 %2246
        %2248 = vrot.lane.b32.xlu0 %v2077, 1
        %v2249 = vpop.permute.xlu0 %2248
        %2250 = vrot.lane.b32.xlu0 %v2079, 1
        %v2251 = vpop.permute.xlu0 %2250
        %2252 = vrot.lane.b32.xlu0 %v2081, 1
        %v2253 = vpop.permute.xlu0 %2252
        %2254 = vrot.lane.b32.xlu0 %v2083, 1
        %v2255 = vpop.permute.xlu0 %2254
        %v2256 = vsel %vm481, %v2241, %v2249
        %v2257 = vsel %vm481, %v2243, %v2251
        %v2258 = vsel %vm481, %v2245, %v2253
        %v2259 = vsel %vm481, %v2247, %v2255
        %v2260 = vsel %vm481, %v2249, %v2241
        %v2261 = vsel %vm481, %v2251, %v2243
        %v2262 = vsel %vm481, %v2253, %v2245
        %v2263 = vsel %vm481, %v2255, %v2247
        %v2264 = vld [vmem:[%s484] ss:$8 sm:$0x3]
        %v2266 = vlaneseq
        %v2267 = vshrl.u32 %v2266, 7
        %v2268 = vsub.s32 0, %v2267
        %v2269 = vrot.slane %v2264, %v2268
        %v2270 = vlaneseq
        %v2271 = vshrl.u32 %v2270, 7
        %v2272 = vsub.s32 1, %v2271
        %v2273 = vrot.slane %v2264, %v2272
        %v2276 = vmul.f32 %v2260, %v2269
        %v2277 = vmul.f32 %v2256, %v2273
        %v2278 = vmul.f32 %v2261, %v2269
        %v2279 = vmul.f32 %v2257, %v2273
        %v2280 = vmul.f32 %v2262, %v2269
        %v2281 = vmul.f32 %v2258, %v2273
        %v2282 = vmul.f32 %v2263, %v2269
        %v2283 = vmul.f32 %v2259, %v2273
        %v2284 = vpack.c.bf16 %v2278, %v2276
        %v2285 = vpack.c.bf16 %v2279, %v2277
        %v2286 = vpack.c.bf16 %v2282, %v2280
        %v2287 = vpack.c.bf16 %v2283, %v2281
        %2288 = vst [vmem:[#allocation3 + $0x60] sm:$0xff] %v2284
        %2289 = vst [vmem:[#allocation3 + $0x68] sm:$0xff] %v2285
        %2290 = vst [vmem:[#allocation3 + $0x70] sm:$0xff] %v2286
        %2291 = vst [vmem:[#allocation3 + $0x78] sm:$0xff] %v2287
        %v2292 = vpack.c.bf16 %v2078, %v2076
        %v2293 = vpack.c.bf16 %v2079, %v2077
        %v2294 = vpack.c.bf16 %v2082, %v2080
        %v2295 = vpack.c.bf16 %v2083, %v2081
        %2296 = vst [vmem:[#allocation3 + $0x80] sm:$0xff] %v2292
        %2297 = vst [vmem:[#allocation3 + $0x88] sm:$0xff] %v2293
        %2298 = vst [vmem:[#allocation3 + $0x90] sm:$0xff] %v2294
        %2299 = vst [vmem:[#allocation3 + $0x98] sm:$0xff] %v2295
        %2300 = vrot.lane.b32.xlu0 %v2076, 127
        %v2301 = vpop.permute.xlu0 %2300
        %2302 = vrot.lane.b32.xlu0 %v2078, 127
        %v2303 = vpop.permute.xlu0 %2302
        %2304 = vrot.lane.b32.xlu0 %v2080, 127
        %v2305 = vpop.permute.xlu0 %2304
        %2306 = vrot.lane.b32.xlu0 %v2082, 127
        %v2307 = vpop.permute.xlu0 %2306
        %2308 = vrot.lane.b32.xlu0 %v2077, 127
        %v2309 = vpop.permute.xlu0 %2308
        %2310 = vrot.lane.b32.xlu0 %v2079, 127
        %v2311 = vpop.permute.xlu0 %2310
        %2312 = vrot.lane.b32.xlu0 %v2081, 127
        %v2313 = vpop.permute.xlu0 %2312
        %2314 = vrot.lane.b32.xlu0 %v2083, 127
        %v2315 = vpop.permute.xlu0 %2314
        %v2316 = vsel %vm503, %v2301, %v2309
        %v2317 = vsel %vm503, %v2303, %v2311
        %v2318 = vsel %vm503, %v2305, %v2313
        %v2319 = vsel %vm503, %v2307, %v2315
        %v2320 = vsel %vm503, %v2309, %v2301
        %v2321 = vsel %vm503, %v2311, %v2303
        %v2322 = vsel %vm503, %v2313, %v2305
        %v2323 = vsel %vm503, %v2315, %v2307
        %v2324 = vld [vmem:[%s506] ss:$8 sm:$0x3]
        %v2326 = vlaneseq
        %v2327 = vshrl.u32 %v2326, 7
        %v2328 = vsub.s32 0, %v2327
        %v2329 = vrot.slane %v2324, %v2328
        %v2330 = vlaneseq
        %v2331 = vshrl.u32 %v2330, 7
        %v2332 = vsub.s32 1, %v2331
        %v2333 = vrot.slane %v2324, %v2332
        %v2336 = vmul.f32 %v2316, %v2329
        %v2337 = vmul.f32 %v2320, %v2333
        %v2338 = vmul.f32 %v2317, %v2329
        %v2339 = vmul.f32 %v2321, %v2333
        %v2340 = vmul.f32 %v2318, %v2329
        %v2341 = vmul.f32 %v2322, %v2333
        %v2342 = vmul.f32 %v2319, %v2329
        %v2343 = vmul.f32 %v2323, %v2333
        %v2344 = vpack.c.bf16 %v2338, %v2336
        %v2345 = vpack.c.bf16 %v2339, %v2337
        %v2346 = vpack.c.bf16 %v2342, %v2340
        %v2347 = vpack.c.bf16 %v2343, %v2341
        %2348 = vst [vmem:[#allocation3 + $0xa0] sm:$0xff] %v2344
        %2349 = vst [vmem:[#allocation3 + $0xa8] sm:$0xff] %v2345
        %2350 = vst [vmem:[#allocation3 + $0xb0] sm:$0xff] %v2346
        %2351 = vst [vmem:[#allocation3 + $0xb8] sm:$0xff] %v2347
        %2352 = vrot.lane.b32.xlu0 %v2076, 113
        %v2353 = vpop.permute.xlu0 %2352
        %2354 = vrot.lane.b32.xlu0 %v2078, 113
        %v2355 = vpop.permute.xlu0 %2354
        %2356 = vrot.lane.b32.xlu0 %v2080, 113
        %v2357 = vpop.permute.xlu0 %2356
        %2358 = vrot.lane.b32.xlu0 %v2082, 113
        %v2359 = vpop.permute.xlu0 %2358
        %2360 = vrot.lane.b32.xlu0 %v2077, 113
        %v2361 = vpop.permute.xlu0 %2360
        %2362 = vrot.lane.b32.xlu0 %v2079, 113
        %v2363 = vpop.permute.xlu0 %2362
        %2364 = vrot.lane.b32.xlu0 %v2081, 113
        %v2365 = vpop.permute.xlu0 %2364
        %2366 = vrot.lane.b32.xlu0 %v2083, 113
        %v2367 = vpop.permute.xlu0 %2366
        %v2368 = vsel %vm525, %v2353, %v2361
        %v2369 = vsel %vm525, %v2355, %v2363
        %v2370 = vsel %vm525, %v2357, %v2365
        %v2371 = vsel %vm525, %v2359, %v2367
        %v2372 = vsel %vm525, %v2361, %v2353
        %v2373 = vsel %vm525, %v2363, %v2355
        %v2374 = vsel %vm525, %v2365, %v2357
        %v2375 = vsel %vm525, %v2367, %v2359
        %v2376 = vld [vmem:[%s528] ss:$8 sm:$0x3]
        %v2378 = vlaneseq
        %v2379 = vshrl.u32 %v2378, 7
        %v2380 = vsub.s32 0, %v2379
        %v2381 = vrot.slane %v2376, %v2380
        %v2382 = vlaneseq
        %v2383 = vshrl.u32 %v2382, 7
        %v2384 = vsub.s32 1, %v2383
        %v2385 = vrot.slane %v2376, %v2384
        %v2388 = vmul.f32 %v2368, %v2381
        %v2389 = vmul.f32 %v2372, %v2385
        %v2390 = vmul.f32 %v2369, %v2381
        %v2391 = vmul.f32 %v2373, %v2385
        %v2392 = vmul.f32 %v2370, %v2381
        %v2393 = vmul.f32 %v2374, %v2385
        %v2394 = vmul.f32 %v2371, %v2381
        %v2395 = vmul.f32 %v2375, %v2385
        %v2396 = vpack.c.bf16 %v2390, %v2388
        %v2397 = vpack.c.bf16 %v2391, %v2389
        %v2398 = vpack.c.bf16 %v2394, %v2392
        %v2399 = vpack.c.bf16 %v2395, %v2393
        %2400 = vst [vmem:[#allocation3 + $0xc0] sm:$0xff] %v2396
        %2401 = vst [vmem:[#allocation3 + $0xc8] sm:$0xff] %v2397
        %2402 = vst [vmem:[#allocation3 + $0xd0] sm:$0xff] %v2398
        %2403 = vst [vmem:[#allocation3 + $0xd8] sm:$0xff] %v2399
        %2404 = vrot.lane.b32.xlu0 %v2076, 112
        %v2405 = vpop.permute.xlu0 %2404
        %2406 = vrot.lane.b32.xlu0 %v2078, 112
        %v2407 = vpop.permute.xlu0 %2406
        %2408 = vrot.lane.b32.xlu0 %v2080, 112
        %v2409 = vpop.permute.xlu0 %2408
        %2410 = vrot.lane.b32.xlu0 %v2082, 112
        %v2411 = vpop.permute.xlu0 %2410
        %2412 = vrot.lane.b32.xlu0 %v2077, 112
        %v2413 = vpop.permute.xlu0 %2412
        %2414 = vrot.lane.b32.xlu0 %v2079, 112
        %v2415 = vpop.permute.xlu0 %2414
        %2416 = vrot.lane.b32.xlu0 %v2081, 112
        %v2417 = vpop.permute.xlu0 %2416
        %2418 = vrot.lane.b32.xlu0 %v2083, 112
        %v2419 = vpop.permute.xlu0 %2418
        %v2420 = vsel %vm547, %v2405, %v2413
        %v2421 = vsel %vm547, %v2407, %v2415
        %v2422 = vsel %vm547, %v2409, %v2417
        %v2423 = vsel %vm547, %v2411, %v2419
        %v2424 = vsel %vm547, %v2413, %v2405
        %v2425 = vsel %vm547, %v2415, %v2407
        %v2426 = vsel %vm547, %v2417, %v2409
        %v2427 = vsel %vm547, %v2419, %v2411
        %v2428 = vld [vmem:[%s550] ss:$8 sm:$0x3]
        %v2430 = vlaneseq
        %v2431 = vshrl.u32 %v2430, 7
        %v2432 = vsub.s32 0, %v2431
        %v2433 = vrot.slane %v2428, %v2432
        %v2434 = vlaneseq
        %v2435 = vshrl.u32 %v2434, 7
        %v2436 = vsub.s32 1, %v2435
        %v2437 = vrot.slane %v2428, %v2436
        %v2440 = vmul.f32 %v2420, %v2433
        %v2441 = vmul.f32 %v2424, %v2437
        %v2442 = vmul.f32 %v2421, %v2433
        %v2443 = vmul.f32 %v2425, %v2437
        %v2444 = vmul.f32 %v2422, %v2433
        %v2445 = vmul.f32 %v2426, %v2437
        %v2446 = vmul.f32 %v2423, %v2433
        %v2447 = vmul.f32 %v2427, %v2437
        %v2448 = vpack.c.bf16 %v2442, %v2440
        %v2449 = vpack.c.bf16 %v2443, %v2441
        %v2450 = vpack.c.bf16 %v2446, %v2444
        %v2451 = vpack.c.bf16 %v2447, %v2445
        %2452 = vst [vmem:[#allocation3 + $0xe0] sm:$0xff] %v2448
        %2453 = vst [vmem:[#allocation3 + $0xe8] sm:$0xff] %v2449
        %2454 = vst [vmem:[#allocation3 + $0xf0] sm:$0xff] %v2450
        %2455 = vst [vmem:[#allocation3 + $0xf8] sm:$0xff] %v2451
        %2456 = vrot.lane.b32.xlu0 %v2076, 111
        %v2457 = vpop.permute.xlu0 %2456
        %2458 = vrot.lane.b32.xlu0 %v2078, 111
        %v2459 = vpop.permute.xlu0 %2458
        %2460 = vrot.lane.b32.xlu0 %v2080, 111
        %v2461 = vpop.permute.xlu0 %2460
        %2462 = vrot.lane.b32.xlu0 %v2082, 111
        %v2463 = vpop.permute.xlu0 %2462
        %2464 = vrot.lane.b32.xlu0 %v2077, 111
        %v2465 = vpop.permute.xlu0 %2464
        %2466 = vrot.lane.b32.xlu0 %v2079, 111
        %v2467 = vpop.permute.xlu0 %2466
        %2468 = vrot.lane.b32.xlu0 %v2081, 111
        %v2469 = vpop.permute.xlu0 %2468
        %2470 = vrot.lane.b32.xlu0 %v2083, 111
        %v2471 = vpop.permute.xlu0 %2470
        %v2472 = vsel %vm569, %v2457, %v2465
        %v2473 = vsel %vm569, %v2459, %v2467
        %v2474 = vsel %vm569, %v2461, %v2469
        %v2475 = vsel %vm569, %v2463, %v2471
        %v2476 = vsel %vm569, %v2465, %v2457
        %v2477 = vsel %vm569, %v2467, %v2459
        %v2478 = vsel %vm569, %v2469, %v2461
        %v2479 = vsel %vm569, %v2471, %v2463
        %v2480 = vld [vmem:[%s572] ss:$8 sm:$0x3]
        %v2482 = vlaneseq
        %v2483 = vshrl.u32 %v2482, 7
        %v2484 = vsub.s32 0, %v2483
        %v2485 = vrot.slane %v2480, %v2484
        %v2486 = vlaneseq
        %v2487 = vshrl.u32 %v2486, 7
        %v2488 = vsub.s32 1, %v2487
        %v2489 = vrot.slane %v2480, %v2488
        %v2492 = vmul.f32 %v2472, %v2485
        %v2493 = vmul.f32 %v2476, %v2489
        %v2494 = vmul.f32 %v2473, %v2485
        %v2495 = vmul.f32 %v2477, %v2489
        %v2496 = vmul.f32 %v2474, %v2485
        %v2497 = vmul.f32 %v2478, %v2489
        %v2498 = vmul.f32 %v2475, %v2485
        %v2499 = vmul.f32 %v2479, %v2489
        %v2500 = vpack.c.bf16 %v2494, %v2492
        %v2501 = vpack.c.bf16 %v2495, %v2493
        %v2502 = vpack.c.bf16 %v2498, %v2496
        %v2503 = vpack.c.bf16 %v2499, %v2497
        %2504 = vst [vmem:[#allocation3 + $0x100] sm:$0xff] %v2500
        %2505 = vst [vmem:[#allocation3 + $0x108] sm:$0xff] %v2501
        %2506 = vst [vmem:[#allocation3 + $0x110] sm:$0xff] %v2502
        %2507 = vst [vmem:[#allocation3 + $0x118] sm:$0xff] %v2503
        %v2508 = vld [vmem:[#allocation3] sm:$0xff]
        %v2509 = vld [vmem:[#allocation3 + $0x8] sm:$0xff]
        %v2510 = vld [vmem:[#allocation3 + $0x10] sm:$0xff]
        %v2511 = vld [vmem:[#allocation3 + $0x18] sm:$0xff]
        %v2512 = vld [vmem:[#allocation3 + $0x20] sm:$0xff]
        %v2513 = vld [vmem:[#allocation3 + $0x28] sm:$0xff]
        %v2514 = vld [vmem:[#allocation3 + $0x30] sm:$0xff]
        %v2515 = vld [vmem:[#allocation3 + $0x38] sm:$0xff]
        %v2516 = vld [vmem:[#allocation3 + $0x40] sm:$0xff]
        %v2517 = vld [vmem:[#allocation3 + $0x48] sm:$0xff]
        %v2518 = vld [vmem:[#allocation3 + $0x50] sm:$0xff]
        %v2519 = vld [vmem:[#allocation3 + $0x58] sm:$0xff]
        %v2520 = vld [vmem:[#allocation3 + $0x60] sm:$0xff]
        %v2521 = vld [vmem:[#allocation3 + $0x68] sm:$0xff]
        %v2522 = vld [vmem:[#allocation3 + $0x70] sm:$0xff]
        %v2523 = vld [vmem:[#allocation3 + $0x78] sm:$0xff]
        %v2524 = vld [vmem:[#allocation3 + $0x80] sm:$0xff]
        %v2525 = vld [vmem:[#allocation3 + $0x88] sm:$0xff]
        %v2526 = vld [vmem:[#allocation3 + $0x90] sm:$0xff]
        %v2527 = vld [vmem:[#allocation3 + $0x98] sm:$0xff]
        %v2528 = vld [vmem:[#allocation3 + $0xa0] sm:$0xff]
        %v2529 = vld [vmem:[#allocation3 + $0xa8] sm:$0xff]
        %v2530 = vld [vmem:[#allocation3 + $0xb0] sm:$0xff]
        %v2531 = vld [vmem:[#allocation3 + $0xb8] sm:$0xff]
        %v2532 = vld [vmem:[#allocation3 + $0xc0] sm:$0xff]
        %v2533 = vld [vmem:[#allocation3 + $0xc8] sm:$0xff]
        %v2534 = vld [vmem:[#allocation3 + $0xd0] sm:$0xff]
        %v2535 = vld [vmem:[#allocation3 + $0xd8] sm:$0xff]
        %v2536 = vld [vmem:[#allocation3 + $0xe0] sm:$0xff]
        %v2537 = vld [vmem:[#allocation3 + $0xe8] sm:$0xff]
        %v2538 = vld [vmem:[#allocation3 + $0xf0] sm:$0xff]
        %v2539 = vld [vmem:[#allocation3 + $0xf8] sm:$0xff]
        %v2540 = vld [vmem:[#allocation3 + $0x100] sm:$0xff]
        %v2541 = vld [vmem:[#allocation3 + $0x108] sm:$0xff]
        %v2542 = vld [vmem:[#allocation3 + $0x110] sm:$0xff]
        %v2543 = vld [vmem:[#allocation3 + $0x118] sm:$0xff]
        %v2544 = vld [vmem:[%s3] sm:$0xff]
        %v2545 = vld [vmem:[%s3 + $0x8] sm:$0xf]
        %v2546 = vld [vmem:[%s3 + $0xc] sm:$0xff]
        %v2547 = vld [vmem:[%s3 + $0x14] sm:$0xf]
        %v2548 = vld [vmem:[%s7] sm:$0xff]
        %v2549 = vld [vmem:[%s7 + $0x8] sm:$0xff]
        %2551 = vset.pattern.permute.xlu0 0
        %2552 = vperm.xlu0 %2551, %v2548
        %v2553 = vpop.permute.xlu0 %2552
        %2556 = vset.pattern.permute.xlu0 0
        %2557 = vperm.xlu0 %2556, %v2549
        %v2558 = vpop.permute.xlu0 %2557
        %v2564 = vunpack.c.l.b16 %v2544
        %v2565 = vunpack.c.h.b16 %v2544
        %v2566 = vunpack.c.l.b16 %v2545
        %v2567 = vunpack.c.l.b16 %v2546
        %v2568 = vunpack.c.h.b16 %v2546
        %v2569 = vunpack.c.l.b16 %v2547
        %v2570 = vpack.c.b16 %v2567, %v2564
        %v2571 = vpack.c.b16 %v2568, %v2565
        %v2572 = vpack.c.b16 %v2569, %v2566
        %vm2575 = vcmask 261120
        %v2577 = vsel %vm2575, %v2572, 0
        %2579 = vmatprep.subr.bf16.mxu0 %v2509
        %2580 = vmatpush1.bf16.msra.mxu0 %v2508
        %2581 = vmatprep.subr.bf16.mxu0 %v2511
        %2582 = vmatpush1.bf16.msra.mxu0 %v2510
        %2583 = vmatprep.subr.bf16.mxu0 %v2513
        %2584 = vmatpush1.bf16.msra.mxu0 %v2512
        %2585 = vmatprep.subr.bf16.mxu0 %v2515
        %2586 = vmatpush1.bf16.msra.mxu0 %v2514
        %2587 = vmatprep.subr.bf16.mxu0 %v2517
        %2588 = vmatpush1.bf16.msra.mxu0 %v2516
        %2589 = vmatprep.subr.bf16.mxu0 %v2519
        %2590 = vmatpush1.bf16.msra.mxu0 %v2518
        %2591 = vmatprep.subr.bf16.mxu0 %v2521
        %2592 = vmatpush1.bf16.msra.mxu0 %v2520
        %2593 = vmatprep.subr.bf16.mxu0 %v2523
        %2594 = vmatpush1.bf16.msra.mxu0 %v2522
        %2595 = vmatprep.subr.bf16.mxu0 %v2525
        %2596 = vmatpush1.bf16.msra.mxu0 %v2524
        %2597 = vmatprep.subr.bf16.mxu0 %v2527
        %2598 = vmatpush1.bf16.msra.mxu0 %v2526
        %2599 = vmatprep.subr.bf16.mxu0 %v2529
        %2600 = vmatpush1.bf16.msra.mxu0 %v2528
        %2601 = vmatprep.subr.bf16.mxu0 %v2531
        %2602 = vmatpush1.bf16.msra.mxu0 %v2530
        %2603 = vmatprep.subr.bf16.mxu0 %v2533
        %2604 = vmatpush1.bf16.msra.mxu0 %v2532
        %2605 = vmatprep.subr.bf16.mxu0 %v2535
        %2606 = vmatpush1.bf16.msra.mxu0 %v2534
        %2607 = vmatprep.subr.bf16.mxu0 %v2537
        %2608 = vmatpush1.bf16.msra.mxu0 %v2536
        %2609 = vmatprep.subr.bf16.mxu0 %v2539
        %2610 = vmatpush1.bf16.msra.mxu0 %v2538
        %2611 = vmatprep.mubr.bf16.mxu0 %v2571
        %2612 = vmatmul.mubr.bf16.gmra.mrb[0].mxu0 %v2570
        %v2613 = vpop.f32.mrb[0].mxu0
        %v2614 = vadd.f32 %v2553, %v2613
        %v2615 = vpop.f32.mrb[0].mxu0
        %v2616 = vadd.f32 %v2553, %v2615
        %v2617 = vpop.f32.mrb[0].mxu0
        %v2618 = vadd.f32 %v2558, %v2617
        %v2619 = vpop.f32.mrb[0].mxu0
        %v2620 = vadd.f32 %v2558, %v2619
        %2621 = vdwg.mxu0
        %2622 = vmatprep.subr.bf16.mxu0 %v2541
        %2623 = vmatpush1.bf16.msra.mxu0 %v2540
        %2624 = vmatprep.subr.bf16.mxu0 %v2543
        %2625 = vmatpush1.bf16.msra.mxu0 %v2542
        %2626 = vmatprep.subr.bf16.mxu0 0
        %2627 = vmatpush1.bf16.msra.mxu0 0
        %2628 = vmatprep.subr.bf16.mxu0 0
        %2629 = vmatpush1.bf16.msra.mxu0 0
        %2630 = vmatprep.subr.bf16.mxu0 0
        %2631 = vmatpush1.bf16.msra.mxu0 0
        %2632 = vmatprep.subr.bf16.mxu0 0
        %2633 = vmatpush1.bf16.msra.mxu0 0
        %2634 = vmatprep.subr.bf16.mxu0 0
        %2635 = vmatpush1.bf16.msra.mxu0 0
        %2636 = vmatprep.subr.bf16.mxu0 0
        %2637 = vmatpush1.bf16.msra.mxu0 0
        %2638 = vmatprep.subr.bf16.mxu0 0
        %2639 = vmatpush1.bf16.msra.mxu0 0
        %2640 = vmatprep.subr.bf16.mxu0 0
        %2641 = vmatpush1.bf16.msra.mxu0 0
        %2642 = vmatprep.subr.bf16.mxu0 0
        %2643 = vmatpush1.bf16.msra.mxu0 0
        %2644 = vmatprep.subr.bf16.mxu0 0
        %2645 = vmatpush1.bf16.msra.mxu0 0
        %2646 = vmatprep.subr.bf16.mxu0 0
        %2647 = vmatpush1.bf16.msra.mxu0 0
        %2648 = vmatprep.subr.bf16.mxu0 0
        %2649 = vmatpush1.bf16.msra.mxu0 0
        %2650 = vmatprep.subr.bf16.mxu0 0
        %2651 = vmatpush1.bf16.msra.mxu0 0
        %2652 = vmatprep.subr.bf16.mxu0 0
        %2653 = vmatpush1.bf16.msra.mxu0 0
        %2654 = vmatprep.mubr.bf16.mxu0 0
        %2655 = vmatmul.mubr.bf16.gmra.mrb[0].mxu0 %v2577
        %v2656 = vpop.f32.mrb[0].mxu0
        %v2657 = vadd.f32 %v2614, %v2656
        %v2658 = vpop.f32.mrb[0].mxu0
        %v2659 = vadd.f32 %v2616, %v2658
        %v2660 = vpop.f32.mrb[0].mxu0
        %v2661 = vadd.f32 %v2618, %v2660
        %v2662 = vpop.f32.mrb[0].mxu0
        %v2663 = vadd.f32 %v2620, %v2662
        %2664 = vdwg.mxu0
        %vm2665 = vcmp.gt.f32.partialorder %v2657, 0.0
        %vm2666 = vcmp.gt.f32.partialorder %v2659, 0.0
        %vm2667 = vcmp.gt.f32.partialorder %v2661, 0.0
        %vm2668 = vcmp.gt.f32.partialorder %v2663, 0.0
        %v2669 = vmin.f32 %v2657, 0.0
        %v2670 = vmin.f32 %v2659, 0.0
        %v2671 = vmin.f32 %v2661, 0.0
        %v2672 = vmin.f32 %v2663, 0.0
        %v2673 = vmul.f32 %v2669, 1.442695
        %v2674 = vpow.pop %v2673
        %v2675 = vmul.f32 %v2670, 1.442695
        %v2676 = vpow.pop %v2675
        %v2677 = vmul.f32 %v2671, 1.442695
        %v2678 = vpow.pop %v2677
        %v2679 = vmul.f32 %v2672, 1.442695
        %v2680 = vpow.pop %v2679
        %v2681 = vsub.f32 %v2674, 1.0
        %v2682 = vsub.f32 %v2676, 1.0
        %v2683 = vsub.f32 %v2678, 1.0
        %v2684 = vsub.f32 %v2680, 1.0
        %v2685 = vsel %vm2665, %v2657, %v2681
        %v2686 = vsel %vm2666, %v2659, %v2682
        %v2687 = vsel %vm2667, %v2661, %v2683
        %v2688 = vsel %vm2668, %v2663, %v2684
        %2689 = vst [vmem:[#allocation2] sm:$0xff] %v2685
        %2690 = vst [vmem:[#allocation2 + $0x8] sm:$0xff] %v2686
        %2691 = vst [vmem:[#allocation2 + $0x10] sm:$0xff] %v2687
        %2692 = vst [vmem:[#allocation2 + $0x18] sm:$0xff] %v2688
        %v2693 = vld [vmem:[#allocation2] sm:$0xff]
        %v2694 = vld [vmem:[#allocation2 + $0x8] sm:$0xff]
        %v2695 = vld [vmem:[#allocation2 + $0x10] sm:$0xff]
        %v2696 = vld [vmem:[#allocation2 + $0x18] sm:$0xff]
        %2697 = vrot.lane.b32.xlu0 %v2693, 17
        %v2698 = vpop.permute.xlu0 %2697
        %2699 = vrot.lane.b32.xlu0 %v2695, 17
        %v2700 = vpop.permute.xlu0 %2699
        %2701 = vrot.lane.b32.xlu0 %v2694, 17
        %v2702 = vpop.permute.xlu0 %2701
        %2703 = vrot.lane.b32.xlu0 %v2696, 17
        %v2704 = vpop.permute.xlu0 %2703
        %v2705 = vsel %vm416, %v2698, %v2702
        %v2706 = vsel %vm416, %v2700, %v2704
        %v2707 = vsel %vm416, %v2702, %v2698
        %v2708 = vsel %vm416, %v2704, %v2700
        %v2709 = vld [vmem:[%s9] ss:$8 sm:$0x3]
        %v2711 = vlaneseq
        %v2712 = vshrl.u32 %v2711, 7
        %v2713 = vsub.s32 0, %v2712
        %v2714 = vrot.slane %v2709, %v2713
        %v2715 = vlaneseq
        %v2716 = vshrl.u32 %v2715, 7
        %v2717 = vsub.s32 1, %v2716
        %v2718 = vrot.slane %v2709, %v2717
        %v2721 = vmul.f32 %v2707, %v2714
        %v2722 = vmul.f32 %v2705, %v2718
        %v2723 = vmul.f32 %v2708, %v2714
        %v2724 = vmul.f32 %v2706, %v2718
        %v2725 = vpack.c.bf16 %v2723, %v2721
        %v2726 = vpack.c.bf16 %v2724, %v2722
        %2727 = vst [vmem:[#allocation3] sm:$0xff] %v2725
        %2728 = vst [vmem:[#allocation3 + $0x8] sm:$0xff] %v2726
        %2729 = vrot.lane.b32.xlu0 %v2693, 16
        %v2730 = vpop.permute.xlu0 %2729
        %2731 = vrot.lane.b32.xlu0 %v2695, 16
        %v2732 = vpop.permute.xlu0 %2731
        %2733 = vrot.lane.b32.xlu0 %v2694, 16
        %v2734 = vpop.permute.xlu0 %2733
        %2735 = vrot.lane.b32.xlu0 %v2696, 16
        %v2736 = vpop.permute.xlu0 %2735
        %v2737 = vsel %vm437, %v2730, %v2734
        %v2738 = vsel %vm437, %v2732, %v2736
        %v2739 = vsel %vm437, %v2734, %v2730
        %v2740 = vsel %vm437, %v2736, %v2732
        %v2741 = vld [vmem:[%s440] ss:$8 sm:$0x3]
        %v2743 = vlaneseq
        %v2744 = vshrl.u32 %v2743, 7
        %v2745 = vsub.s32 0, %v2744
        %v2746 = vrot.slane %v2741, %v2745
        %v2747 = vlaneseq
        %v2748 = vshrl.u32 %v2747, 7
        %v2749 = vsub.s32 1, %v2748
        %v2750 = vrot.slane %v2741, %v2749
        %v2753 = vmul.f32 %v2739, %v2746
        %v2754 = vmul.f32 %v2737, %v2750
        %v2755 = vmul.f32 %v2740, %v2746
        %v2756 = vmul.f32 %v2738, %v2750
        %v2757 = vpack.c.bf16 %v2755, %v2753
        %v2758 = vpack.c.bf16 %v2756, %v2754
        %2759 = vst [vmem:[#allocation3 + $0x10] sm:$0xff] %v2757
        %2760 = vst [vmem:[#allocation3 + $0x18] sm:$0xff] %v2758
        %2761 = vrot.lane.b32.xlu0 %v2693, 15
        %v2762 = vpop.permute.xlu0 %2761
        %2763 = vrot.lane.b32.xlu0 %v2695, 15
        %v2764 = vpop.permute.xlu0 %2763
        %2765 = vrot.lane.b32.xlu0 %v2694, 15
        %v2766 = vpop.permute.xlu0 %2765
        %2767 = vrot.lane.b32.xlu0 %v2696, 15
        %v2768 = vpop.permute.xlu0 %2767
        %v2769 = vsel %vm459, %v2762, %v2766
        %v2770 = vsel %vm459, %v2764, %v2768
        %v2771 = vsel %vm459, %v2766, %v2762
        %v2772 = vsel %vm459, %v2768, %v2764
        %v2773 = vld [vmem:[%s462] ss:$8 sm:$0x3]
        %v2775 = vlaneseq
        %v2776 = vshrl.u32 %v2775, 7
        %v2777 = vsub.s32 0, %v2776
        %v2778 = vrot.slane %v2773, %v2777
        %v2779 = vlaneseq
        %v2780 = vshrl.u32 %v2779, 7
        %v2781 = vsub.s32 1, %v2780
        %v2782 = vrot.slane %v2773, %v2781
        %v2785 = vmul.f32 %v2771, %v2778
        %v2786 = vmul.f32 %v2769, %v2782
        %v2787 = vmul.f32 %v2772, %v2778
        %v2788 = vmul.f32 %v2770, %v2782
        %v2789 = vpack.c.bf16 %v2787, %v2785
        %v2790 = vpack.c.bf16 %v2788, %v2786
        %2791 = vst [vmem:[#allocation3 + $0x20] sm:$0xff] %v2789
        %2792 = vst [vmem:[#allocation3 + $0x28] sm:$0xff] %v2790
        %2793 = vrot.lane.b32.xlu0 %v2693, 1
        %v2794 = vpop.permute.xlu0 %2793
        %2795 = vrot.lane.b32.xlu0 %v2695, 1
        %v2796 = vpop.permute.xlu0 %2795
        %2797 = vrot.lane.b32.xlu0 %v2694, 1
        %v2798 = vpop.permute.xlu0 %2797
        %2799 = vrot.lane.b32.xlu0 %v2696, 1
        %v2800 = vpop.permute.xlu0 %2799
        %v2801 = vsel %vm481, %v2794, %v2798
        %v2802 = vsel %vm481, %v2796, %v2800
        %v2803 = vsel %vm481, %v2798, %v2794
        %v2804 = vsel %vm481, %v2800, %v2796
        %v2805 = vld [vmem:[%s484] ss:$8 sm:$0x3]
        %v2807 = vlaneseq
        %v2808 = vshrl.u32 %v2807, 7
        %v2809 = vsub.s32 0, %v2808
        %v2810 = vrot.slane %v2805, %v2809
        %v2811 = vlaneseq
        %v2812 = vshrl.u32 %v2811, 7
        %v2813 = vsub.s32 1, %v2812
        %v2814 = vrot.slane %v2805, %v2813
        %v2817 = vmul.f32 %v2803, %v2810
        %v2818 = vmul.f32 %v2801, %v2814
        %v2819 = vmul.f32 %v2804, %v2810
        %v2820 = vmul.f32 %v2802, %v2814
        %v2821 = vpack.c.bf16 %v2819, %v2817
        %v2822 = vpack.c.bf16 %v2820, %v2818
        %2823 = vst [vmem:[#allocation3 + $0x30] sm:$0xff] %v2821
        %2824 = vst [vmem:[#allocation3 + $0x38] sm:$0xff] %v2822
        %v2825 = vpack.c.bf16 %v2695, %v2693
        %v2826 = vpack.c.bf16 %v2696, %v2694
        %2827 = vst [vmem:[#allocation3 + $0x40] sm:$0xff] %v2825
        %2828 = vst [vmem:[#allocation3 + $0x48] sm:$0xff] %v2826
        %2829 = vrot.lane.b32.xlu0 %v2693, 127
        %v2830 = vpop.permute.xlu0 %2829
        %2831 = vrot.lane.b32.xlu0 %v2695, 127
        %v2832 = vpop.permute.xlu0 %2831
        %2833 = vrot.lane.b32.xlu0 %v2694, 127
        %v2834 = vpop.permute.xlu0 %2833
        %2835 = vrot.lane.b32.xlu0 %v2696, 127
        %v2836 = vpop.permute.xlu0 %2835
        %v2837 = vsel %vm503, %v2830, %v2834
        %v2838 = vsel %vm503, %v2832, %v2836
        %v2839 = vsel %vm503, %v2834, %v2830
        %v2840 = vsel %vm503, %v2836, %v2832
        %v2841 = vld [vmem:[%s506] ss:$8 sm:$0x3]
        %v2843 = vlaneseq
        %v2844 = vshrl.u32 %v2843, 7
        %v2845 = vsub.s32 0, %v2844
        %v2846 = vrot.slane %v2841, %v2845
        %v2847 = vlaneseq
        %v2848 = vshrl.u32 %v2847, 7
        %v2849 = vsub.s32 1, %v2848
        %v2850 = vrot.slane %v2841, %v2849
        %v2853 = vmul.f32 %v2837, %v2846
        %v2854 = vmul.f32 %v2839, %v2850
        %v2855 = vmul.f32 %v2838, %v2846
        %v2856 = vmul.f32 %v2840, %v2850
        %v2857 = vpack.c.bf16 %v2855, %v2853
        %v2858 = vpack.c.bf16 %v2856, %v2854
        %2859 = vst [vmem:[#allocation3 + $0x50] sm:$0xff] %v2857
        %2860 = vst [vmem:[#allocation3 + $0x58] sm:$0xff] %v2858
        %2861 = vrot.lane.b32.xlu0 %v2693, 113
        %v2862 = vpop.permute.xlu0 %2861
        %2863 = vrot.lane.b32.xlu0 %v2695, 113
        %v2864 = vpop.permute.xlu0 %2863
        %2865 = vrot.lane.b32.xlu0 %v2694, 113
        %v2866 = vpop.permute.xlu0 %2865
        %2867 = vrot.lane.b32.xlu0 %v2696, 113
        %v2868 = vpop.permute.xlu0 %2867
        %v2869 = vsel %vm525, %v2862, %v2866
        %v2870 = vsel %vm525, %v2864, %v2868
        %v2871 = vsel %vm525, %v2866, %v2862
        %v2872 = vsel %vm525, %v2868, %v2864
        %v2873 = vld [vmem:[%s528] ss:$8 sm:$0x3]
        %v2875 = vlaneseq
        %v2876 = vshrl.u32 %v2875, 7
        %v2877 = vsub.s32 0, %v2876
        %v2878 = vrot.slane %v2873, %v2877
        %v2879 = vlaneseq
        %v2880 = vshrl.u32 %v2879, 7
        %v2881 = vsub.s32 1, %v2880
        %v2882 = vrot.slane %v2873, %v2881
        %v2885 = vmul.f32 %v2869, %v2878
        %v2886 = vmul.f32 %v2871, %v2882
        %v2887 = vmul.f32 %v2870, %v2878
        %v2888 = vmul.f32 %v2872, %v2882
        %v2889 = vpack.c.bf16 %v2887, %v2885
        %v2890 = vpack.c.bf16 %v2888, %v2886
        %2891 = vst [vmem:[#allocation3 + $0x60] sm:$0xff] %v2889
        %2892 = vst [vmem:[#allocation3 + $0x68] sm:$0xff] %v2890
        %2893 = vrot.lane.b32.xlu0 %v2693, 112
        %v2894 = vpop.permute.xlu0 %2893
        %2895 = vrot.lane.b32.xlu0 %v2695, 112
        %v2896 = vpop.permute.xlu0 %2895
        %2897 = vrot.lane.b32.xlu0 %v2694, 112
        %v2898 = vpop.permute.xlu0 %2897
        %2899 = vrot.lane.b32.xlu0 %v2696, 112
        %v2900 = vpop.permute.xlu0 %2899
        %v2901 = vsel %vm547, %v2894, %v2898
        %v2902 = vsel %vm547, %v2896, %v2900
        %v2903 = vsel %vm547, %v2898, %v2894
        %v2904 = vsel %vm547, %v2900, %v2896
        %v2905 = vld [vmem:[%s550] ss:$8 sm:$0x3]
        %v2907 = vlaneseq
        %v2908 = vshrl.u32 %v2907, 7
        %v2909 = vsub.s32 0, %v2908
        %v2910 = vrot.slane %v2905, %v2909
        %v2911 = vlaneseq
        %v2912 = vshrl.u32 %v2911, 7
        %v2913 = vsub.s32 1, %v2912
        %v2914 = vrot.slane %v2905, %v2913
        %v2917 = vmul.f32 %v2901, %v2910
        %v2918 = vmul.f32 %v2903, %v2914
        %v2919 = vmul.f32 %v2902, %v2910
        %v2920 = vmul.f32 %v2904, %v2914
        %v2921 = vpack.c.bf16 %v2919, %v2917
        %v2922 = vpack.c.bf16 %v2920, %v2918
        %2923 = vst [vmem:[#allocation3 + $0x70] sm:$0xff] %v2921
        %2924 = vst [vmem:[#allocation3 + $0x78] sm:$0xff] %v2922
        %2925 = vrot.lane.b32.xlu0 %v2693, 111
        %v2926 = vpop.permute.xlu0 %2925
        %2927 = vrot.lane.b32.xlu0 %v2695, 111
        %v2928 = vpop.permute.xlu0 %2927
        %2929 = vrot.lane.b32.xlu0 %v2694, 111
        %v2930 = vpop.permute.xlu0 %2929
        %2931 = vrot.lane.b32.xlu0 %v2696, 111
        %v2932 = vpop.permute.xlu0 %2931
        %v2933 = vsel %vm569, %v2926, %v2930
        %v2934 = vsel %vm569, %v2928, %v2932
        %v2935 = vsel %vm569, %v2930, %v2926
        %v2936 = vsel %vm569, %v2932, %v2928
        %v2937 = vld [vmem:[%s572] ss:$8 sm:$0x3]
        %v2939 = vlaneseq
        %v2940 = vshrl.u32 %v2939, 7
        %v2941 = vsub.s32 0, %v2940
        %v2942 = vrot.slane %v2937, %v2941
        %v2943 = vlaneseq
        %v2944 = vshrl.u32 %v2943, 7
        %v2945 = vsub.s32 1, %v2944
        %v2946 = vrot.slane %v2937, %v2945
        %v2949 = vmul.f32 %v2933, %v2942
        %v2950 = vmul.f32 %v2935, %v2946
        %v2951 = vmul.f32 %v2934, %v2942
        %v2952 = vmul.f32 %v2936, %v2946
        %v2953 = vpack.c.bf16 %v2951, %v2949
        %v2954 = vpack.c.bf16 %v2952, %v2950
        %2955 = vst [vmem:[#allocation3 + $0x80] sm:$0xff] %v2953
        %2956 = vst [vmem:[#allocation3 + $0x88] sm:$0xff] %v2954
        %v2957 = vld [vmem:[#allocation3] sm:$0xff]
        %v2958 = vld [vmem:[#allocation3 + $0x8] sm:$0xff]
        %v2959 = vld [vmem:[#allocation3 + $0x10] sm:$0xff]
        %v2960 = vld [vmem:[#allocation3 + $0x18] sm:$0xff]
        %v2961 = vld [vmem:[#allocation3 + $0x20] sm:$0xff]
        %v2962 = vld [vmem:[#allocation3 + $0x28] sm:$0xff]
        %v2963 = vld [vmem:[#allocation3 + $0x30] sm:$0xff]
        %v2964 = vld [vmem:[#allocation3 + $0x38] sm:$0xff]
        %v2965 = vld [vmem:[#allocation3 + $0x40] sm:$0xff]
        %v2966 = vld [vmem:[#allocation3 + $0x48] sm:$0xff]
        %v2967 = vld [vmem:[#allocation3 + $0x50] sm:$0xff]
        %v2968 = vld [vmem:[#allocation3 + $0x58] sm:$0xff]
        %v2969 = vld [vmem:[#allocation3 + $0x60] sm:$0xff]
        %v2970 = vld [vmem:[#allocation3 + $0x68] sm:$0xff]
        %v2971 = vld [vmem:[#allocation3 + $0x70] sm:$0xff]
        %v2972 = vld [vmem:[#allocation3 + $0x78] sm:$0xff]
        %v2973 = vld [vmem:[#allocation3 + $0x80] sm:$0xff]
        %v2974 = vld [vmem:[#allocation3 + $0x88] sm:$0xff]
        %v2975 = vld [vmem:[%s4] sm:$0xff]
        %v2976 = vld [vmem:[%s8] sm:$0xff]
        %2978 = vset.pattern.permute.xlu0 0
        %2979 = vperm.xlu0 %2978, %v2976
        %v2980 = vpop.permute.xlu0 %2979
        %v2983 = vunpack.c.l.b16 %v2975
        %v2984 = vunpack.c.h.b16 %v2975
        %v2985 = vpack.c.b16 %v2983, %v2983
        %v2986 = vpack.c.b16 %v2984, %v2984
        %vm2988 = vcmask 130048
        %v2990 = vsel %vm2988, %v2986, 0
        %2992 = vmatprep.subr.bf16.mxu0 %v2958
        %2993 = vmatpush1.bf16.msra.mxu0 %v2957
        %2994 = vmatprep.subr.bf16.mxu0 %v2960
        %2995 = vmatpush1.bf16.msra.mxu0 %v2959
        %2996 = vmatprep.subr.bf16.mxu0 %v2962
        %2997 = vmatpush1.bf16.msra.mxu0 %v2961
        %2998 = vmatprep.subr.bf16.mxu0 %v2964
        %2999 = vmatpush1.bf16.msra.mxu0 %v2963
        %3000 = vmatprep.subr.bf16.mxu0 %v2966
        %3001 = vmatpush1.bf16.msra.mxu0 %v2965
        %3002 = vmatprep.subr.bf16.mxu0 %v2968
        %3003 = vmatpush1.bf16.msra.mxu0 %v2967
        %3004 = vmatprep.subr.bf16.mxu0 %v2970
        %3005 = vmatpush1.bf16.msra.mxu0 %v2969
        %3006 = vmatprep.subr.bf16.mxu0 %v2972
        %3007 = vmatpush1.bf16.msra.mxu0 %v2971
        %3008 = vmatprep.subr.bf16.mxu0 %v2974
        %3009 = vmatpush1.bf16.msra.mxu0 %v2973
        %3010 = vmatprep.subr.bf16.mxu0 0
        %3011 = vmatpush1.bf16.msra.mxu0 0
        %3012 = vmatprep.subr.bf16.mxu0 0
        %3013 = vmatpush1.bf16.msra.mxu0 0
        %3014 = vmatprep.subr.bf16.mxu0 0
        %3015 = vmatpush1.bf16.msra.mxu0 0
        %3016 = vmatprep.subr.bf16.mxu0 0
        %3017 = vmatpush1.bf16.msra.mxu0 0
        %3018 = vmatprep.subr.bf16.mxu0 0
        %3019 = vmatpush1.bf16.msra.mxu0 0
        %3020 = vmatprep.subr.bf16.mxu0 0
        %3021 = vmatpush1.bf16.msra.mxu0 0
        %3022 = vmatprep.subr.bf16.mxu0 0
        %3023 = vmatpush1.bf16.msra.mxu0 0
        %3024 = vmatprep.mubr.bf16.mxu0 %v2990
        %3025 = vmatmul.mubr.bf16.gmra.mrb[0].mxu0 %v2985
        %v3026 = vpop.f32.mrb[0].mxu0
        %v3027 = vadd.f32 %v2980, %v3026
        %v3028 = vpop.f32.mrb[0].mxu0
        %v3029 = vadd.f32 %v2980, %v3028
        %v3030 = vpop.f32.mrb[0].mxu0
        %v3031 = vpop.f32.mrb[0].mxu0
        %3032 = vdwg.mxu0
        %vm3033 = vcmp.gt.f32.partialorder %v3027, 0.0
        %vm3034 = vcmp.gt.f32.partialorder %v3029, 0.0
        %v3035 = vmin.f32 %v3027, 0.0
        %v3036 = vmin.f32 %v3029, 0.0
        %v3037 = vmul.f32 %v3035, 1.442695
        %v3038 = vpow.pop %v3037
        %v3039 = vmul.f32 %v3036, 1.442695
        %v3040 = vpow.pop %v3039
        %v3041 = vsub.f32 %v3038, 1.0
        %v3042 = vsub.f32 %v3040, 1.0
        %v3043 = vsel %vm3033, %v3027, %v3041
        %v3044 = vsel %vm3034, %v3029, %v3042
        %3045 = vst [vmem:[#allocation2] sm:$0xff] %v3043
        %3046 = vst [vmem:[#allocation2 + $0x8] sm:$0xff] %v3044
        %v3047 = vld [vmem:[#allocation2] sm:$0xff]
        %v3048 = vld [vmem:[#allocation2 + $0x8] sm:$0xff]
        %v3049 = vpack.c.bf16 %v3047, %v3047
        %v3050 = vpack.c.bf16 %v3048, %v3048
        %v3051 = vld [vmem:[#allocation4] sm:$0xff]
        %v3052 = vld [vmem:[#allocation4 + $0x8] sm:$0xff]
        %v3053 = vld [vmem:[#allocation4 + $0x10] sm:$0xff]
        %v3054 = vld [vmem:[#allocation4 + $0x18] sm:$0xff]
        %v3055 = vld [vmem:[#allocation4 + $0x20] sm:$0xff]
        %v3056 = vld [vmem:[#allocation4 + $0x28] sm:$0xff]
        %v3057 = vld [vmem:[#allocation4 + $0x30] sm:$0xff]
        %v3058 = vld [vmem:[#allocation4 + $0x38] sm:$0xff]
        %v3059 = vld [vmem:[#allocation4 + $0x40] sm:$0xff]
        %v3060 = vld [vmem:[#allocation4 + $0x48] sm:$0xff]
        %v3061 = vld [vmem:[#allocation4 + $0x50] sm:$0xff]
        %v3062 = vld [vmem:[#allocation4 + $0x58] sm:$0xff]
        %v3063 = vld [vmem:[#allocation4 + $0x60] sm:$0xff]
        %v3064 = vld [vmem:[#allocation4 + $0x68] sm:$0xff]
        %v3065 = vld [vmem:[#allocation4 + $0x70] sm:$0xff]
        %v3066 = vld [vmem:[#allocation4 + $0x78] sm:$0xff]
        %v3067 = vld [vmem:[#allocation4 + $0x80] sm:$0xff]
        %v3068 = vld [vmem:[#allocation4 + $0x88] sm:$0xff]
        %v3069 = vld [vmem:[#allocation4 + $0x90] sm:$0xff]
        %v3070 = vld [vmem:[#allocation4 + $0x98] sm:$0xff]
        %v3071 = vld [vmem:[#allocation4 + $0xa0] sm:$0xff]
        %v3072 = vld [vmem:[#allocation4 + $0xa8] sm:$0xff]
        %v3073 = vld [vmem:[#allocation4 + $0xb0] sm:$0xff]
        %v3074 = vld [vmem:[#allocation4 + $0xb8] sm:$0xff]
        %v3075 = vld [vmem:[#allocation4 + $0xc0] sm:$0xff]
        %v3076 = vld [vmem:[#allocation4 + $0xc8] sm:$0xff]
        %v3077 = vld [vmem:[#allocation4 + $0xd0] sm:$0xff]
        %v3078 = vld [vmem:[#allocation4 + $0xd8] sm:$0xff]
        %v3079 = vld [vmem:[#allocation4 + $0xe0] sm:$0xff]
        %v3080 = vld [vmem:[#allocation4 + $0xe8] sm:$0xff]
        %v3081 = vld [vmem:[#allocation4 + $0xf0] sm:$0xff]
        %v3082 = vld [vmem:[#allocation4 + $0xf8] sm:$0xff]
        %v3083 = vld [vmem:[#allocation4 + $0x100] sm:$0xff]
        %v3084 = vld [vmem:[#allocation4 + $0x108] sm:$0xff]
        %v3085 = vld [vmem:[#allocation4 + $0x110] sm:$0xff]
        %v3086 = vld [vmem:[#allocation4 + $0x118] sm:$0xff]
        %v3087 = vld [vmem:[#allocation4 + $0x120] sm:$0xff]
        %v3088 = vld [vmem:[#allocation4 + $0x128] sm:$0xff]
        %v3089 = vld [vmem:[#allocation4 + $0x130] sm:$0xff]
        %v3090 = vld [vmem:[#allocation4 + $0x138] sm:$0xff]
        %v3091 = vld [vmem:[#allocation4 + $0x140] sm:$0xff]
        %v3092 = vld [vmem:[#allocation4 + $0x148] sm:$0xff]
        %v3093 = vld [vmem:[#allocation4 + $0x150] sm:$0xff]
        %v3094 = vld [vmem:[#allocation4 + $0x158] sm:$0xff]
        %v3095 = vld [vmem:[#allocation4 + $0x160] sm:$0xff]
        %v3096 = vld [vmem:[#allocation4 + $0x168] sm:$0xff]
        %v3097 = vld [vmem:[#allocation4 + $0x170] sm:$0xff]
        %v3098 = vld [vmem:[#allocation4 + $0x178] sm:$0xff]
        %v3099 = vld [vmem:[#allocation4 + $0x180] sm:$0xff]
        %v3100 = vld [vmem:[#allocation4 + $0x188] sm:$0xff]
        %v3101 = vld [vmem:[#allocation4 + $0x190] sm:$0xff]
        %v3102 = vld [vmem:[#allocation4 + $0x198] sm:$0xff]
        %v3103 = vld [vmem:[#allocation4 + $0x1a0] sm:$0xff]
        %v3104 = vld [vmem:[#allocation4 + $0x1a8] sm:$0xff]
        %v3105 = vld [vmem:[#allocation4 + $0x1b0] sm:$0xff]
        %v3106 = vld [vmem:[#allocation4 + $0x1b8] sm:$0xff]
        %v3107 = vld [vmem:[#allocation4 + $0x1c0] sm:$0xff]
        %v3108 = vld [vmem:[#allocation4 + $0x1c8] sm:$0xff]
        %v3109 = vld [vmem:[#allocation4 + $0x1d0] sm:$0xff]
        %v3110 = vld [vmem:[#allocation4 + $0x1d8] sm:$0xff]
        %v3111 = vld [vmem:[#allocation4 + $0x1e0] sm:$0xff]
        %v3112 = vld [vmem:[#allocation4 + $0x1e8] sm:$0xff]
        %v3113 = vld [vmem:[#allocation4 + $0x1f0] sm:$0xff]
        %v3114 = vld [vmem:[#allocation4 + $0x1f8] sm:$0xff]
        %v3115 = vld [vmem:[#allocation4 + $0x200] sm:$0xff]
        %v3116 = vld [vmem:[#allocation4 + $0x208] sm:$0xff]
        %v3117 = vld [vmem:[#allocation4 + $0x210] sm:$0xff]
        %v3118 = vld [vmem:[#allocation4 + $0x218] sm:$0xff]
        %v3119 = vld [vmem:[#allocation4 + $0x220] sm:$0xff]
        %v3120 = vld [vmem:[#allocation4 + $0x228] sm:$0xff]
        %v3121 = vld [vmem:[#allocation4 + $0x230] sm:$0xff]
        %v3122 = vld [vmem:[#allocation4 + $0x238] sm:$0xff]
        %v3123 = vld [vmem:[#allocation4 + $0x240] sm:$0xff]
        %v3124 = vld [vmem:[#allocation4 + $0x248] sm:$0xff]
        %v3125 = vld [vmem:[#allocation4 + $0x250] sm:$0xff]
        %v3126 = vld [vmem:[#allocation4 + $0x258] sm:$0xff]
        %v3127 = vld [vmem:[#allocation4 + $0x260] sm:$0xff]
        %v3128 = vld [vmem:[#allocation4 + $0x268] sm:$0xff]
        %v3129 = vld [vmem:[#allocation4 + $0x270] sm:$0xff]
        %v3130 = vld [vmem:[#allocation4 + $0x278] sm:$0xff]
        %v3131 = vld [vmem:[#allocation4 + $0x280] sm:$0xff]
        %v3132 = vld [vmem:[#allocation4 + $0x288] sm:$0xff]
        %v3133 = vld [vmem:[#allocation4 + $0x290] sm:$0xff]
        %v3134 = vld [vmem:[#allocation4 + $0x298] sm:$0xff]
        %v3135 = vld [vmem:[#allocation4 + $0x2a0] sm:$0xff]
        %v3136 = vld [vmem:[#allocation4 + $0x2a8] sm:$0xff]
        %v3137 = vld [vmem:[#allocation4 + $0x2b0] sm:$0xff]
        %v3138 = vld [vmem:[#allocation4 + $0x2b8] sm:$0xff]
        %v3139 = vld [vmem:[#allocation4 + $0x2c0] sm:$0xff]
        %v3140 = vld [vmem:[#allocation4 + $0x2c8] sm:$0xff]
        %v3141 = vld [vmem:[#allocation4 + $0x2d0] sm:$0xff]
        %v3142 = vld [vmem:[#allocation4 + $0x2d8] sm:$0xff]
        %v3143 = vld [vmem:[#allocation4 + $0x2e0] sm:$0xff]
        %v3144 = vld [vmem:[#allocation4 + $0x2e8] sm:$0xff]
        %v3145 = vld [vmem:[#allocation4 + $0x2f0] sm:$0xff]
        %v3146 = vld [vmem:[#allocation4 + $0x2f8] sm:$0xff]
        %v3147 = vld [vmem:[#allocation4 + $0x300] sm:$0xff]
        %v3148 = vld [vmem:[#allocation4 + $0x308] sm:$0xff]
        %v3149 = vld [vmem:[#allocation4 + $0x310] sm:$0xff]
        %v3150 = vld [vmem:[#allocation4 + $0x318] sm:$0xff]
        %v3151 = vld [vmem:[#allocation4 + $0x320] sm:$0xff]
        %v3152 = vld [vmem:[#allocation4 + $0x328] sm:$0xff]
        %v3153 = vld [vmem:[#allocation4 + $0x330] sm:$0xff]
        %v3154 = vld [vmem:[#allocation4 + $0x338] sm:$0xff]
        %v3155 = vld [vmem:[#allocation4 + $0x340] sm:$0xff]
        %v3156 = vld [vmem:[#allocation4 + $0x348] sm:$0xff]
        %v3157 = vld [vmem:[#allocation4 + $0x350] sm:$0xff]
        %v3158 = vld [vmem:[#allocation4 + $0x358] sm:$0xff]
        %v3159 = vld [vmem:[#allocation4 + $0x360] sm:$0xff]
        %v3160 = vld [vmem:[#allocation4 + $0x368] sm:$0xff]
        %v3161 = vld [vmem:[#allocation4 + $0x370] sm:$0xff]
        %v3162 = vld [vmem:[#allocation4 + $0x378] sm:$0xff]
        %v3163 = vld [vmem:[#allocation4 + $0x380] sm:$0xff]
        %v3164 = vld [vmem:[#allocation4 + $0x388] sm:$0xff]
        %v3165 = vld [vmem:[#allocation4 + $0x390] sm:$0xff]
        %v3166 = vld [vmem:[#allocation4 + $0x398] sm:$0xff]
        %v3167 = vld [vmem:[#allocation4 + $0x3a0] sm:$0xff]
        %v3168 = vld [vmem:[#allocation4 + $0x3a8] sm:$0xff]
        %v3169 = vld [vmem:[#allocation4 + $0x3b0] sm:$0xff]
        %v3170 = vld [vmem:[#allocation4 + $0x3b8] sm:$0xff]
        %v3171 = vld [vmem:[#allocation4 + $0x3c0] sm:$0xff]
        %v3172 = vld [vmem:[#allocation4 + $0x3c8] sm:$0xff]
        %v3173 = vld [vmem:[#allocation4 + $0x3d0] sm:$0xff]
        %v3174 = vld [vmem:[#allocation4 + $0x3d8] sm:$0xff]
        %v3175 = vld [vmem:[#allocation4 + $0x3e0] sm:$0xff]
        %v3176 = vld [vmem:[#allocation4 + $0x3e8] sm:$0xff]
        %v3177 = vld [vmem:[#allocation4 + $0x3f0] sm:$0xff]
        %v3178 = vld [vmem:[#allocation4 + $0x3f8] sm:$0xff]
        %v3307 = vunpack.c.l.b16 %v3051
        %v3308 = vunpack.c.h.b16 %v3051
        %v3309 = vunpack.c.l.b16 %v3052
        %v3310 = vunpack.c.h.b16 %v3052
        %v3311 = vunpack.c.l.b16 %v3053
        %v3312 = vunpack.c.h.b16 %v3053
        %v3313 = vunpack.c.l.b16 %v3054
        %v3314 = vunpack.c.h.b16 %v3054
        %v3315 = vunpack.c.l.b16 %v3055
        %v3316 = vunpack.c.h.b16 %v3055
        %v3317 = vunpack.c.l.b16 %v3056
        %v3318 = vunpack.c.h.b16 %v3056
        %v3319 = vunpack.c.l.b16 %v3057
        %v3320 = vunpack.c.h.b16 %v3057
        %v3321 = vunpack.c.l.b16 %v3058
        %v3322 = vunpack.c.h.b16 %v3058
        %v3323 = vunpack.c.l.b16 %v3059
        %v3324 = vunpack.c.h.b16 %v3059
        %v3325 = vunpack.c.l.b16 %v3060
        %v3326 = vunpack.c.h.b16 %v3060
        %v3327 = vunpack.c.l.b16 %v3061
        %v3328 = vunpack.c.h.b16 %v3061
        %v3329 = vunpack.c.l.b16 %v3062
        %v3330 = vunpack.c.h.b16 %v3062
        %v3331 = vunpack.c.l.b16 %v3063
        %v3332 = vunpack.c.h.b16 %v3063
        %v3333 = vunpack.c.l.b16 %v3064
        %v3334 = vunpack.c.h.b16 %v3064
        %v3335 = vunpack.c.l.b16 %v3065
        %v3336 = vunpack.c.h.b16 %v3065
        %v3337 = vunpack.c.l.b16 %v3066
        %v3338 = vunpack.c.h.b16 %v3066
        %v3339 = vunpack.c.l.b16 %v3067
        %v3340 = vunpack.c.h.b16 %v3067
        %v3341 = vunpack.c.l.b16 %v3068
        %v3342 = vunpack.c.h.b16 %v3068
        %v3343 = vunpack.c.l.b16 %v3069
        %v3344 = vunpack.c.h.b16 %v3069
        %v3345 = vunpack.c.l.b16 %v3070
        %v3346 = vunpack.c.h.b16 %v3070
        %v3347 = vunpack.c.l.b16 %v3071
        %v3348 = vunpack.c.h.b16 %v3071
        %v3349 = vunpack.c.l.b16 %v3072
        %v3350 = vunpack.c.h.b16 %v3072
        %v3351 = vunpack.c.l.b16 %v3073
        %v3352 = vunpack.c.h.b16 %v3073
        %v3353 = vunpack.c.l.b16 %v3074
        %v3354 = vunpack.c.h.b16 %v3074
        %v3355 = vunpack.c.l.b16 %v3075
        %v3356 = vunpack.c.h.b16 %v3075
        %v3357 = vunpack.c.l.b16 %v3076
        %v3358 = vunpack.c.h.b16 %v3076
        %v3359 = vunpack.c.l.b16 %v3077
        %v3360 = vunpack.c.h.b16 %v3077
        %v3361 = vunpack.c.l.b16 %v3078
        %v3362 = vunpack.c.h.b16 %v3078
        %v3363 = vunpack.c.l.b16 %v3079
        %v3364 = vunpack.c.h.b16 %v3079
        %v3365 = vunpack.c.l.b16 %v3080
        %v3366 = vunpack.c.h.b16 %v3080
        %v3367 = vunpack.c.l.b16 %v3081
        %v3368 = vunpack.c.h.b16 %v3081
        %v3369 = vunpack.c.l.b16 %v3082
        %v3370 = vunpack.c.h.b16 %v3082
        %v3371 = vunpack.c.l.b16 %v3083
        %v3372 = vunpack.c.h.b16 %v3083
        %v3373 = vunpack.c.l.b16 %v3084
        %v3374 = vunpack.c.h.b16 %v3084
        %v3375 = vunpack.c.l.b16 %v3085
        %v3376 = vunpack.c.h.b16 %v3085
        %v3377 = vunpack.c.l.b16 %v3086
        %v3378 = vunpack.c.h.b16 %v3086
        %v3379 = vunpack.c.l.b16 %v3087
        %v3380 = vunpack.c.h.b16 %v3087
        %v3381 = vunpack.c.l.b16 %v3088
        %v3382 = vunpack.c.h.b16 %v3088
        %v3383 = vunpack.c.l.b16 %v3089
        %v3384 = vunpack.c.h.b16 %v3089
        %v3385 = vunpack.c.l.b16 %v3090
        %v3386 = vunpack.c.h.b16 %v3090
        %v3387 = vunpack.c.l.b16 %v3091
        %v3388 = vunpack.c.h.b16 %v3091
        %v3389 = vunpack.c.l.b16 %v3092
        %v3390 = vunpack.c.h.b16 %v3092
        %v3391 = vunpack.c.l.b16 %v3093
        %v3392 = vunpack.c.h.b16 %v3093
        %v3393 = vunpack.c.l.b16 %v3094
        %v3394 = vunpack.c.h.b16 %v3094
        %v3395 = vunpack.c.l.b16 %v3095
        %v3396 = vunpack.c.h.b16 %v3095
        %v3397 = vunpack.c.l.b16 %v3096
        %v3398 = vunpack.c.h.b16 %v3096
        %v3399 = vunpack.c.l.b16 %v3097
        %v3400 = vunpack.c.h.b16 %v3097
        %v3401 = vunpack.c.l.b16 %v3098
        %v3402 = vunpack.c.h.b16 %v3098
        %v3403 = vunpack.c.l.b16 %v3099
        %v3404 = vunpack.c.h.b16 %v3099
        %v3405 = vunpack.c.l.b16 %v3100
        %v3406 = vunpack.c.h.b16 %v3100
        %v3407 = vunpack.c.l.b16 %v3101
        %v3408 = vunpack.c.h.b16 %v3101
        %v3409 = vunpack.c.l.b16 %v3102
        %v3410 = vunpack.c.h.b16 %v3102
        %v3411 = vunpack.c.l.b16 %v3103
        %v3412 = vunpack.c.h.b16 %v3103
        %v3413 = vunpack.c.l.b16 %v3104
        %v3414 = vunpack.c.h.b16 %v3104
        %v3415 = vunpack.c.l.b16 %v3105
        %v3416 = vunpack.c.h.b16 %v3105
        %v3417 = vunpack.c.l.b16 %v3106
        %v3418 = vunpack.c.h.b16 %v3106
        %v3419 = vunpack.c.l.b16 %v3107
        %v3420 = vunpack.c.h.b16 %v3107
        %v3421 = vunpack.c.l.b16 %v3108
        %v3422 = vunpack.c.h.b16 %v3108
        %v3423 = vunpack.c.l.b16 %v3109
        %v3424 = vunpack.c.h.b16 %v3109
        %v3425 = vunpack.c.l.b16 %v3110
        %v3426 = vunpack.c.h.b16 %v3110
        %v3427 = vunpack.c.l.b16 %v3111
        %v3428 = vunpack.c.h.b16 %v3111
        %v3429 = vunpack.c.l.b16 %v3112
        %v3430 = vunpack.c.h.b16 %v3112
        %v3431 = vunpack.c.l.b16 %v3113
        %v3432 = vunpack.c.h.b16 %v3113
        %v3433 = vunpack.c.l.b16 %v3114
        %v3434 = vunpack.c.h.b16 %v3114
        %v3435 = vunpack.c.l.b16 %v3115
        %v3436 = vunpack.c.h.b16 %v3115
        %v3437 = vunpack.c.l.b16 %v3116
        %v3438 = vunpack.c.h.b16 %v3116
        %v3439 = vunpack.c.l.b16 %v3117
        %v3440 = vunpack.c.h.b16 %v3117
        %v3441 = vunpack.c.l.b16 %v3118
        %v3442 = vunpack.c.h.b16 %v3118
        %v3443 = vunpack.c.l.b16 %v3119
        %v3444 = vunpack.c.h.b16 %v3119
        %v3445 = vunpack.c.l.b16 %v3120
        %v3446 = vunpack.c.h.b16 %v3120
        %v3447 = vunpack.c.l.b16 %v3121
        %v3448 = vunpack.c.h.b16 %v3121
        %v3449 = vunpack.c.l.b16 %v3122
        %v3450 = vunpack.c.h.b16 %v3122
        %v3451 = vunpack.c.l.b16 %v3123
        %v3452 = vunpack.c.h.b16 %v3123
        %v3453 = vunpack.c.l.b16 %v3124
        %v3454 = vunpack.c.h.b16 %v3124
        %v3455 = vunpack.c.l.b16 %v3125
        %v3456 = vunpack.c.h.b16 %v3125
        %v3457 = vunpack.c.l.b16 %v3126
        %v3458 = vunpack.c.h.b16 %v3126
        %v3459 = vunpack.c.l.b16 %v3127
        %v3460 = vunpack.c.h.b16 %v3127
        %v3461 = vunpack.c.l.b16 %v3128
        %v3462 = vunpack.c.h.b16 %v3128
        %v3463 = vunpack.c.l.b16 %v3129
        %v3464 = vunpack.c.h.b16 %v3129
        %v3465 = vunpack.c.l.b16 %v3130
        %v3466 = vunpack.c.h.b16 %v3130
        %v3467 = vunpack.c.l.b16 %v3131
        %v3468 = vunpack.c.h.b16 %v3131
        %v3469 = vunpack.c.l.b16 %v3132
        %v3470 = vunpack.c.h.b16 %v3132
        %v3471 = vunpack.c.l.b16 %v3133
        %v3472 = vunpack.c.h.b16 %v3133
        %v3473 = vunpack.c.l.b16 %v3134
        %v3474 = vunpack.c.h.b16 %v3134
        %v3475 = vunpack.c.l.b16 %v3135
        %v3476 = vunpack.c.h.b16 %v3135
        %v3477 = vunpack.c.l.b16 %v3136
        %v3478 = vunpack.c.h.b16 %v3136
        %v3479 = vunpack.c.l.b16 %v3137
        %v3480 = vunpack.c.h.b16 %v3137
        %v3481 = vunpack.c.l.b16 %v3138
        %v3482 = vunpack.c.h.b16 %v3138
        %v3483 = vunpack.c.l.b16 %v3139
        %v3484 = vunpack.c.h.b16 %v3139
        %v3485 = vunpack.c.l.b16 %v3140
        %v3486 = vunpack.c.h.b16 %v3140
        %v3487 = vunpack.c.l.b16 %v3141
        %v3488 = vunpack.c.h.b16 %v3141
        %v3489 = vunpack.c.l.b16 %v3142
        %v3490 = vunpack.c.h.b16 %v3142
        %v3491 = vunpack.c.l.b16 %v3143
        %v3492 = vunpack.c.h.b16 %v3143
        %v3493 = vunpack.c.l.b16 %v3144
        %v3494 = vunpack.c.h.b16 %v3144
        %v3495 = vunpack.c.l.b16 %v3145
        %v3496 = vunpack.c.h.b16 %v3145
        %v3497 = vunpack.c.l.b16 %v3146
        %v3498 = vunpack.c.h.b16 %v3146
        %v3499 = vunpack.c.l.b16 %v3147
        %v3500 = vunpack.c.h.b16 %v3147
        %v3501 = vunpack.c.l.b16 %v3148
        %v3502 = vunpack.c.h.b16 %v3148
        %v3503 = vunpack.c.l.b16 %v3149
        %v3504 = vunpack.c.h.b16 %v3149
        %v3505 = vunpack.c.l.b16 %v3150
        %v3506 = vunpack.c.h.b16 %v3150
        %v3507 = vunpack.c.l.b16 %v3151
        %v3508 = vunpack.c.h.b16 %v3151
        %v3509 = vunpack.c.l.b16 %v3152
        %v3510 = vunpack.c.h.b16 %v3152
        %v3511 = vunpack.c.l.b16 %v3153
        %v3512 = vunpack.c.h.b16 %v3153
        %v3513 = vunpack.c.l.b16 %v3154
        %v3514 = vunpack.c.h.b16 %v3154
        %v3515 = vunpack.c.l.b16 %v3155
        %v3516 = vunpack.c.h.b16 %v3155
        %v3517 = vunpack.c.l.b16 %v3156
        %v3518 = vunpack.c.h.b16 %v3156
        %v3519 = vunpack.c.l.b16 %v3157
        %v3520 = vunpack.c.h.b16 %v3157
        %v3521 = vunpack.c.l.b16 %v3158
        %v3522 = vunpack.c.h.b16 %v3158
        %v3523 = vunpack.c.l.b16 %v3159
        %v3524 = vunpack.c.h.b16 %v3159
        %v3525 = vunpack.c.l.b16 %v3160
        %v3526 = vunpack.c.h.b16 %v3160
        %v3527 = vunpack.c.l.b16 %v3161
        %v3528 = vunpack.c.h.b16 %v3161
        %v3529 = vunpack.c.l.b16 %v3162
        %v3530 = vunpack.c.h.b16 %v3162
        %v3531 = vunpack.c.l.b16 %v3163
        %v3532 = vunpack.c.h.b16 %v3163
        %v3533 = vunpack.c.l.b16 %v3164
        %v3534 = vunpack.c.h.b16 %v3164
        %v3535 = vunpack.c.l.b16 %v3165
        %v3536 = vunpack.c.h.b16 %v3165
        %v3537 = vunpack.c.l.b16 %v3166
        %v3538 = vunpack.c.h.b16 %v3166
        %v3539 = vunpack.c.l.b16 %v3167
        %v3540 = vunpack.c.h.b16 %v3167
        %v3541 = vunpack.c.l.b16 %v3168
        %v3542 = vunpack.c.h.b16 %v3168
        %v3543 = vunpack.c.l.b16 %v3169
        %v3544 = vunpack.c.h.b16 %v3169
        %v3545 = vunpack.c.l.b16 %v3170
        %v3546 = vunpack.c.h.b16 %v3170
        %v3547 = vunpack.c.l.b16 %v3171
        %v3548 = vunpack.c.h.b16 %v3171
        %v3549 = vunpack.c.l.b16 %v3172
        %v3550 = vunpack.c.h.b16 %v3172
        %v3551 = vunpack.c.l.b16 %v3173
        %v3552 = vunpack.c.h.b16 %v3173
        %v3553 = vunpack.c.l.b16 %v3174
        %v3554 = vunpack.c.h.b16 %v3174
        %v3555 = vunpack.c.l.b16 %v3175
        %v3556 = vunpack.c.h.b16 %v3175
        %v3557 = vunpack.c.l.b16 %v3176
        %v3558 = vunpack.c.h.b16 %v3176
        %v3559 = vunpack.c.l.b16 %v3177
        %v3560 = vunpack.c.h.b16 %v3177
        %v3561 = vunpack.c.l.b16 %v3178
        %v3562 = vunpack.c.h.b16 %v3178
        %v3563 = vpack.c.b16 %v3315, %v3307
        %v3564 = vpack.c.b16 %v3316, %v3308
        %v3565 = vpack.c.b16 %v3317, %v3309
        %v3566 = vpack.c.b16 %v3318, %v3310
        %v3567 = vpack.c.b16 %v3319, %v3311
        %v3568 = vpack.c.b16 %v3320, %v3312
        %v3569 = vpack.c.b16 %v3321, %v3313
        %v3570 = vpack.c.b16 %v3322, %v3314
        %v3571 = vpack.c.b16 %v3331, %v3323
        %v3572 = vpack.c.b16 %v3332, %v3324
        %v3573 = vpack.c.b16 %v3333, %v3325
        %v3574 = vpack.c.b16 %v3334, %v3326
        %v3575 = vpack.c.b16 %v3335, %v3327
        %v3576 = vpack.c.b16 %v3336, %v3328
        %v3577 = vpack.c.b16 %v3337, %v3329
        %v3578 = vpack.c.b16 %v3338, %v3330
        %v3579 = vpack.c.b16 %v3347, %v3339
        %v3580 = vpack.c.b16 %v3348, %v3340
        %v3581 = vpack.c.b16 %v3349, %v3341
        %v3582 = vpack.c.b16 %v3350, %v3342
        %v3583 = vpack.c.b16 %v3351, %v3343
        %v3584 = vpack.c.b16 %v3352, %v3344
        %v3585 = vpack.c.b16 %v3353, %v3345
        %v3586 = vpack.c.b16 %v3354, %v3346
        %v3587 = vpack.c.b16 %v3363, %v3355
        %v3588 = vpack.c.b16 %v3364, %v3356
        %v3589 = vpack.c.b16 %v3365, %v3357
        %v3590 = vpack.c.b16 %v3366, %v3358
        %v3591 = vpack.c.b16 %v3367, %v3359
        %v3592 = vpack.c.b16 %v3368, %v3360
        %v3593 = vpack.c.b16 %v3369, %v3361
        %v3594 = vpack.c.b16 %v3370, %v3362
        %v3595 = vpack.c.b16 %v3379, %v3371
        %v3596 = vpack.c.b16 %v3380, %v3372
        %v3597 = vpack.c.b16 %v3381, %v3373
        %v3598 = vpack.c.b16 %v3382, %v3374
        %v3599 = vpack.c.b16 %v3383, %v3375
        %v3600 = vpack.c.b16 %v3384, %v3376
        %v3601 = vpack.c.b16 %v3385, %v3377
        %v3602 = vpack.c.b16 %v3386, %v3378
        %v3603 = vpack.c.b16 %v3395, %v3387
        %v3604 = vpack.c.b16 %v3396, %v3388
        %v3605 = vpack.c.b16 %v3397, %v3389
        %v3606 = vpack.c.b16 %v3398, %v3390
        %v3607 = vpack.c.b16 %v3399, %v3391
        %v3608 = vpack.c.b16 %v3400, %v3392
        %v3609 = vpack.c.b16 %v3401, %v3393
        %v3610 = vpack.c.b16 %v3402, %v3394
        %v3611 = vpack.c.b16 %v3411, %v3403
        %v3612 = vpack.c.b16 %v3412, %v3404
        %v3613 = vpack.c.b16 %v3413, %v3405
        %v3614 = vpack.c.b16 %v3414, %v3406
        %v3615 = vpack.c.b16 %v3415, %v3407
        %v3616 = vpack.c.b16 %v3416, %v3408
        %v3617 = vpack.c.b16 %v3417, %v3409
        %v3618 = vpack.c.b16 %v3418, %v3410
        %v3619 = vpack.c.b16 %v3427, %v3419
        %v3620 = vpack.c.b16 %v3428, %v3420
        %v3621 = vpack.c.b16 %v3429, %v3421
        %v3622 = vpack.c.b16 %v3430, %v3422
        %v3623 = vpack.c.b16 %v3431, %v3423
        %v3624 = vpack.c.b16 %v3432, %v3424
        %v3625 = vpack.c.b16 %v3433, %v3425
        %v3626 = vpack.c.b16 %v3434, %v3426
        %v3627 = vpack.c.b16 %v3443, %v3435
        %v3628 = vpack.c.b16 %v3444, %v3436
        %v3629 = vpack.c.b16 %v3445, %v3437
        %v3630 = vpack.c.b16 %v3446, %v3438
        %v3631 = vpack.c.b16 %v3447, %v3439
        %v3632 = vpack.c.b16 %v3448, %v3440
        %v3633 = vpack.c.b16 %v3449, %v3441
        %v3634 = vpack.c.b16 %v3450, %v3442
        %v3635 = vpack.c.b16 %v3459, %v3451
        %v3636 = vpack.c.b16 %v3460, %v3452
        %v3637 = vpack.c.b16 %v3461, %v3453
        %v3638 = vpack.c.b16 %v3462, %v3454
        %v3639 = vpack.c.b16 %v3463, %v3455
        %v3640 = vpack.c.b16 %v3464, %v3456
        %v3641 = vpack.c.b16 %v3465, %v3457
        %v3642 = vpack.c.b16 %v3466, %v3458
        %v3643 = vpack.c.b16 %v3475, %v3467
        %v3644 = vpack.c.b16 %v3476, %v3468
        %v3645 = vpack.c.b16 %v3477, %v3469
        %v3646 = vpack.c.b16 %v3478, %v3470
        %v3647 = vpack.c.b16 %v3479, %v3471
        %v3648 = vpack.c.b16 %v3480, %v3472
        %v3649 = vpack.c.b16 %v3481, %v3473
        %v3650 = vpack.c.b16 %v3482, %v3474
        %v3651 = vpack.c.b16 %v3491, %v3483
        %v3652 = vpack.c.b16 %v3492, %v3484
        %v3653 = vpack.c.b16 %v3493, %v3485
        %v3654 = vpack.c.b16 %v3494, %v3486
        %v3655 = vpack.c.b16 %v3495, %v3487
        %v3656 = vpack.c.b16 %v3496, %v3488
        %v3657 = vpack.c.b16 %v3497, %v3489
        %v3658 = vpack.c.b16 %v3498, %v3490
        %v3659 = vpack.c.b16 %v3507, %v3499
        %v3660 = vpack.c.b16 %v3508, %v3500
        %v3661 = vpack.c.b16 %v3509, %v3501
        %v3662 = vpack.c.b16 %v3510, %v3502
        %v3663 = vpack.c.b16 %v3511, %v3503
        %v3664 = vpack.c.b16 %v3512, %v3504
        %v3665 = vpack.c.b16 %v3513, %v3505
        %v3666 = vpack.c.b16 %v3514, %v3506
        %v3667 = vpack.c.b16 %v3523, %v3515
        %v3668 = vpack.c.b16 %v3524, %v3516
        %v3669 = vpack.c.b16 %v3525, %v3517
        %v3670 = vpack.c.b16 %v3526, %v3518
        %v3671 = vpack.c.b16 %v3527, %v3519
        %v3672 = vpack.c.b16 %v3528, %v3520
        %v3673 = vpack.c.b16 %v3529, %v3521
        %v3674 = vpack.c.b16 %v3530, %v3522
        %v3675 = vpack.c.b16 %v3539, %v3531
        %v3676 = vpack.c.b16 %v3540, %v3532
        %v3677 = vpack.c.b16 %v3541, %v3533
        %v3678 = vpack.c.b16 %v3542, %v3534
        %v3679 = vpack.c.b16 %v3543, %v3535
        %v3680 = vpack.c.b16 %v3544, %v3536
        %v3681 = vpack.c.b16 %v3545, %v3537
        %v3682 = vpack.c.b16 %v3546, %v3538
        %v3683 = vpack.c.b16 %v3555, %v3547
        %v3684 = vpack.c.b16 %v3556, %v3548
        %v3685 = vpack.c.b16 %v3557, %v3549
        %v3686 = vpack.c.b16 %v3558, %v3550
        %v3687 = vpack.c.b16 %v3559, %v3551
        %v3688 = vpack.c.b16 %v3560, %v3552
        %v3689 = vpack.c.b16 %v3561, %v3553
        %v3690 = vpack.c.b16 %v3562, %v3554
        %3819 = vmatprep.subr.bf16.mxu0 %v3564
        %3820 = vmatpush1.bf16.msra.mxu0 %v3563
        %3821 = vmatprep.subr.bf16.mxu0 %v3572
        %3822 = vmatpush1.bf16.msra.mxu0 %v3571
        %3823 = vmatprep.subr.bf16.mxu0 %v3580
        %3824 = vmatpush1.bf16.msra.mxu0 %v3579
        %3825 = vmatprep.subr.bf16.mxu0 %v3588
        %3826 = vmatpush1.bf16.msra.mxu0 %v3587
        %3827 = vmatprep.subr.bf16.mxu0 %v3596
        %3828 = vmatpush1.bf16.msra.mxu0 %v3595
        %3829 = vmatprep.subr.bf16.mxu0 %v3604
        %3830 = vmatpush1.bf16.msra.mxu0 %v3603
        %3831 = vmatprep.subr.bf16.mxu0 %v3612
        %3832 = vmatpush1.bf16.msra.mxu0 %v3611
        %3833 = vmatprep.subr.bf16.mxu0 %v3620
        %3834 = vmatpush1.bf16.msra.mxu0 %v3619
        %3835 = vmatprep.subr.bf16.mxu0 %v3628
        %3836 = vmatpush1.bf16.msra.mxu0 %v3627
        %3837 = vmatprep.subr.bf16.mxu0 %v3636
        %3838 = vmatpush1.bf16.msra.mxu0 %v3635
        %3839 = vmatprep.subr.bf16.mxu0 %v3644
        %3840 = vmatpush1.bf16.msra.mxu0 %v3643
        %3841 = vmatprep.subr.bf16.mxu0 %v3652
        %3842 = vmatpush1.bf16.msra.mxu0 %v3651
        %3843 = vmatprep.subr.bf16.mxu0 %v3660
        %3844 = vmatpush1.bf16.msra.mxu0 %v3659
        %3845 = vmatprep.subr.bf16.mxu0 %v3668
        %3846 = vmatpush1.bf16.msra.mxu0 %v3667
        %3847 = vmatprep.subr.bf16.mxu0 %v3676
        %3848 = vmatpush1.bf16.msra.mxu0 %v3675
        %3849 = vmatprep.subr.bf16.mxu0 %v3684
        %3850 = vmatpush1.bf16.msra.mxu0 %v3683
        %3851 = vmatprep.mubr.bf16.mxu0 %v3050
        %3852 = vmatmul.mubr.bf16.gmra.mrb[0].mxu0 %v3049
        %v3853 = vpop.f32.mrb[0].mxu0
        %v3854 = vadd.f32 0.0, %v3853
        %v3855 = vpop.f32.mrb[0].mxu0
        %v3856 = vadd.f32 0.0, %v3855
        %v3857 = vpop.f32.mrb[0].mxu0
        %v3858 = vpop.f32.mrb[0].mxu0
        %3859 = vdwg.mxu0
        %3860 = vmatprep.subr.bf16.mxu0 %v3566
        %3861 = vmatpush1.bf16.msra.mxu0 %v3565
        %3862 = vmatprep.subr.bf16.mxu0 %v3574
        %3863 = vmatpush1.bf16.msra.mxu0 %v3573
        %3864 = vmatprep.subr.bf16.mxu0 %v3582
        %3865 = vmatpush1.bf16.msra.mxu0 %v3581
        %3866 = vmatprep.subr.bf16.mxu0 %v3590
        %3867 = vmatpush1.bf16.msra.mxu0 %v3589
        %3868 = vmatprep.subr.bf16.mxu0 %v3598
        %3869 = vmatpush1.bf16.msra.mxu0 %v3597
        %3870 = vmatprep.subr.bf16.mxu0 %v3606
        %3871 = vmatpush1.bf16.msra.mxu0 %v3605
        %3872 = vmatprep.subr.bf16.mxu0 %v3614
        %3873 = vmatpush1.bf16.msra.mxu0 %v3613
        %3874 = vmatprep.subr.bf16.mxu0 %v3622
        %3875 = vmatpush1.bf16.msra.mxu0 %v3621
        %3876 = vmatprep.subr.bf16.mxu0 %v3630
        %3877 = vmatpush1.bf16.msra.mxu0 %v3629
        %3878 = vmatprep.subr.bf16.mxu0 %v3638
        %3879 = vmatpush1.bf16.msra.mxu0 %v3637
        %3880 = vmatprep.subr.bf16.mxu0 %v3646
        %3881 = vmatpush1.bf16.msra.mxu0 %v3645
        %3882 = vmatprep.subr.bf16.mxu0 %v3654
        %3883 = vmatpush1.bf16.msra.mxu0 %v3653
        %3884 = vmatprep.subr.bf16.mxu0 %v3662
        %3885 = vmatpush1.bf16.msra.mxu0 %v3661
        %3886 = vmatprep.subr.bf16.mxu0 %v3670
        %3887 = vmatpush1.bf16.msra.mxu0 %v3669
        %3888 = vmatprep.subr.bf16.mxu0 %v3678
        %3889 = vmatpush1.bf16.msra.mxu0 %v3677
        %3890 = vmatprep.subr.bf16.mxu0 %v3686
        %3891 = vmatpush1.bf16.msra.mxu0 %v3685
        %3892 = vmatprep.mubr.bf16.mxu0 %v3050
        %3893 = vmatmul.mubr.bf16.gmra.mrb[0].mxu0 %v3049
        %v3894 = vpop.f32.mrb[0].mxu0
        %v3895 = vadd.f32 0.0, %v3894
        %v3896 = vpop.f32.mrb[0].mxu0
        %v3897 = vadd.f32 0.0, %v3896
        %v3898 = vpop.f32.mrb[0].mxu0
        %v3899 = vpop.f32.mrb[0].mxu0
        %3900 = vdwg.mxu0
        %3901 = vmatprep.subr.bf16.mxu0 %v3568
        %3902 = vmatpush1.bf16.msra.mxu0 %v3567
        %3903 = vmatprep.subr.bf16.mxu0 %v3576
        %3904 = vmatpush1.bf16.msra.mxu0 %v3575
        %3905 = vmatprep.subr.bf16.mxu0 %v3584
        %3906 = vmatpush1.bf16.msra.mxu0 %v3583
        %3907 = vmatprep.subr.bf16.mxu0 %v3592
        %3908 = vmatpush1.bf16.msra.mxu0 %v3591
        %3909 = vmatprep.subr.bf16.mxu0 %v3600
        %3910 = vmatpush1.bf16.msra.mxu0 %v3599
        %3911 = vmatprep.subr.bf16.mxu0 %v3608
        %3912 = vmatpush1.bf16.msra.mxu0 %v3607
        %3913 = vmatprep.subr.bf16.mxu0 %v3616
        %3914 = vmatpush1.bf16.msra.mxu0 %v3615
        %3915 = vmatprep.subr.bf16.mxu0 %v3624
        %3916 = vmatpush1.bf16.msra.mxu0 %v3623
        %3917 = vmatprep.subr.bf16.mxu0 %v3632
        %3918 = vmatpush1.bf16.msra.mxu0 %v3631
        %3919 = vmatprep.subr.bf16.mxu0 %v3640
        %3920 = vmatpush1.bf16.msra.mxu0 %v3639
        %3921 = vmatprep.subr.bf16.mxu0 %v3648
        %3922 = vmatpush1.bf16.msra.mxu0 %v3647
        %3923 = vmatprep.subr.bf16.mxu0 %v3656
        %3924 = vmatpush1.bf16.msra.mxu0 %v3655
        %3925 = vmatprep.subr.bf16.mxu0 %v3664
        %3926 = vmatpush1.bf16.msra.mxu0 %v3663
        %3927 = vmatprep.subr.bf16.mxu0 %v3672
        %3928 = vmatpush1.bf16.msra.mxu0 %v3671
        %3929 = vmatprep.subr.bf16.mxu0 %v3680
        %3930 = vmatpush1.bf16.msra.mxu0 %v3679
        %3931 = vmatprep.subr.bf16.mxu0 %v3688
        %3932 = vmatpush1.bf16.msra.mxu0 %v3687
        %3933 = vmatprep.mubr.bf16.mxu0 %v3050
        %3934 = vmatmul.mubr.bf16.gmra.mrb[0].mxu0 %v3049
        %v3935 = vpop.f32.mrb[0].mxu0
        %v3936 = vadd.f32 0.0, %v3935
        %v3937 = vpop.f32.mrb[0].mxu0
        %v3938 = vadd.f32 0.0, %v3937
        %v3939 = vpop.f32.mrb[0].mxu0
        %v3940 = vpop.f32.mrb[0].mxu0
        %3941 = vdwg.mxu0
        %3942 = vmatprep.subr.bf16.mxu0 %v3570
        %3943 = vmatpush1.bf16.msra.mxu0 %v3569
        %3944 = vmatprep.subr.bf16.mxu0 %v3578
        %3945 = vmatpush1.bf16.msra.mxu0 %v3577
        %3946 = vmatprep.subr.bf16.mxu0 %v3586
        %3947 = vmatpush1.bf16.msra.mxu0 %v3585
        %3948 = vmatprep.subr.bf16.mxu0 %v3594
        %3949 = vmatpush1.bf16.msra.mxu0 %v3593
        %3950 = vmatprep.subr.bf16.mxu0 %v3602
        %3951 = vmatpush1.bf16.msra.mxu0 %v3601
        %3952 = vmatprep.subr.bf16.mxu0 %v3610
        %3953 = vmatpush1.bf16.msra.mxu0 %v3609
        %3954 = vmatprep.subr.bf16.mxu0 %v3618
        %3955 = vmatpush1.bf16.msra.mxu0 %v3617
        %3956 = vmatprep.subr.bf16.mxu0 %v3626
        %3957 = vmatpush1.bf16.msra.mxu0 %v3625
        %3958 = vmatprep.subr.bf16.mxu0 %v3634
        %3959 = vmatpush1.bf16.msra.mxu0 %v3633
        %3960 = vmatprep.subr.bf16.mxu0 %v3642
        %3961 = vmatpush1.bf16.msra.mxu0 %v3641
        %3962 = vmatprep.subr.bf16.mxu0 %v3650
        %3963 = vmatpush1.bf16.msra.mxu0 %v3649
        %3964 = vmatprep.subr.bf16.mxu0 %v3658
        %3965 = vmatpush1.bf16.msra.mxu0 %v3657
        %3966 = vmatprep.subr.bf16.mxu0 %v3666
        %3967 = vmatpush1.bf16.msra.mxu0 %v3665
        %3968 = vmatprep.subr.bf16.mxu0 %v3674
        %3969 = vmatpush1.bf16.msra.mxu0 %v3673
        %3970 = vmatprep.subr.bf16.mxu0 %v3682
        %3971 = vmatpush1.bf16.msra.mxu0 %v3681
        %3972 = vmatprep.subr.bf16.mxu0 %v3690
        %3973 = vmatpush1.bf16.msra.mxu0 %v3689
        %3974 = vmatprep.mubr.bf16.mxu0 %v3050
        %3975 = vmatmul.mubr.bf16.gmra.mrb[0].mxu0 %v3049
        %v3976 = vpop.f32.mrb[0].mxu0
        %v3977 = vadd.f32 0.0, %v3976
        %v3978 = vpop.f32.mrb[0].mxu0
        %v3979 = vadd.f32 0.0, %v3978
        %v3980 = vpop.f32.mrb[0].mxu0
        %v3981 = vpop.f32.mrb[0].mxu0
        %3982 = vdwg.mxu0
        %v3983 = vpack.c.bf16 %v3854, %v3854
        %v3984 = vpack.c.bf16 %v3856, %v3856
        %v3985 = vpack.c.bf16 %v3895, %v3895
        %v3986 = vpack.c.bf16 %v3897, %v3897
        %v3987 = vpack.c.bf16 %v3936, %v3936
        %v3988 = vpack.c.bf16 %v3938, %v3938
        %v3989 = vpack.c.bf16 %v3977, %v3977
        %v3990 = vpack.c.bf16 %v3979, %v3979
        %v3999 = vunpack.c.l.b16 %v3983
        %v4000 = vunpack.c.l.b16 %v3984
        %v4001 = vunpack.c.l.b16 %v3985
        %v4002 = vunpack.c.l.b16 %v3986
        %v4003 = vunpack.c.l.b16 %v3987
        %v4004 = vunpack.c.l.b16 %v3988
        %v4005 = vunpack.c.l.b16 %v3989
        %v4006 = vunpack.c.l.b16 %v3990
        %v4007 = vpack.c.b16 %v4000, %v3999
        %v4008 = vpack.c.b16 %v4002, %v4001
        %v4009 = vpack.c.b16 %v4004, %v4003
        %v4010 = vpack.c.b16 %v4006, %v4005
        %4015 = vst [vmem:[%s392] sm:$0xff] %v4007
        %4016 = vst [vmem:[%s392 + $0x8] sm:$0xff] %v4008
        %4017 = vst [vmem:[%s392 + $0x10] sm:$0xff] %v4009
        %4018 = vst [vmem:[%s392 + $0x18] sm:$0xff] %v4010
        %s4019 = sand.u32 %s270, 1
        %s4020 = scalar_lea.sflag [#allocation6], %s4019
        %s4021 = sand.u32 %s270, 1
        %s4022 = smul.addr %s4021, 32
        %s4023 = scalar_lea.vmem [#allocation7], %s4022
        // Predicated region
        $region69: #{tpu_custom_call.1} parent=63 // pred_check
          %p4024 = pneg %p280
        $region70: #{tpu_custom_call.1} parent=63 // pred_check_branch
          %4026 = sbr.rel (%p4024) target = $region72
        $region71: #{tpu_custom_call.1} parent=63 // pred_region
          %s4028 = ssub.s32 512, 512
          %4029 = vsyncadd %s4020, %s4028
          %s4030 = smul.addr %s26, 8
          %s4031 = smul.addr %s4030, 64
          %s4032 = scalar_lea.hbm %s11, %s4031
          %s4034 = sshll.u32 %s4023, 4
          %s4035 = int_to_ptr.vmem [resolvable:$true] %s4034
          %4037 = dma.vmem_to_hbm [thread:$0]  %s4035, 512, %s4032, %s4020
        $region72: #{tpu_custom_call.1} parent=63 // pred_fallthru
          _
      $region64: #{tpu_custom_call.1} parent=5 // pred_fallthru
        _
      %p4038 = scmp.le.s32.totalorder 2, %s21
      // Predicated region
      $region73: #{tpu_custom_call.1} parent=5 // pred_check
        %p4039 = pneg %p4038
      $region74: #{tpu_custom_call.1} parent=5 // pred_check_branch
        %4041 = sbr.rel (%p4039) target = $region76
      $region75: #{tpu_custom_call.1} parent=5 // pred_region
        %s4042 = ssub.s32 %s21, 2
        // Predicated region
        $region77: #{tpu_custom_call.1} parent=75 // pred_check
          %p4043 = pneg %p286
        $region78: #{tpu_custom_call.1} parent=75 // pred_check_branch
          %4045 = sbr.rel (%p4043) target = $region80
        $region79: #{tpu_custom_call.1} parent=75 // pred_region
          %s4046 = sand.u32 %s271, 1
          %s4047 = scalar_lea.sflag [#allocation6], %s4046
          %s4048 = sand.u32 %s271, 1
          %s4049 = smul.addr %s4048, 32
          %s4050 = scalar_lea.vmem [#allocation7], %s4049
          %4051 = dma.done %s4047, 512
        $region80: #{tpu_custom_call.1} parent=75 // pred_fallthru
          _
      $region76: #{tpu_custom_call.1} parent=5 // pred_fallthru
        _
    $region6: #{tpu_custom_call.1} parent=1 // loop_footer
      %s25 = sadd.s32 1, %s21
    $region7: #{tpu_custom_call.1} parent=1 // loop_footer_branch
      %20 = sbr.rel target = $region3
    $region8: #{tpu_custom_call.1} parent=1 // loop_exit
      _
    %4052 = vsyncpa [#allocation5], 1
    %s4053 = scalar_lea.sflag [#allocation5], 1
    %4054 = vsyncpa %s4053, 1
    %4055 = vsyncpa [#allocation6], 1
    %s4056 = scalar_lea.sflag [#allocation6], 1
    %4057 = vsyncpa %s4056, 1

</llo_original>
